<compile_context>
chip_gen: v7x
topology: tpu7x:2x2x1
jax: 0.10.0
libtpu: 0.0.40
codegen_flags: <defaults>
</compile_context>

<pallas_src>
import functools

import jax
import jax.numpy as jnp
import numpy as np
from jax.experimental import pallas as pl
from jax.experimental.pallas import tpu as pltpu


def _round_up(x, m):
    return ((x + m - 1) // m) * m


# --------------------------- host-side weight packing --------------------------

def _pack_gate_matrix(w, hidden, p, k_pad):
    """PyTorch (4*hidden, K) gate matrix (row blocks i,f,g,o) -> (k_pad, 4*p)
    with column blocks reordered to [i, f, o, g] (sigmoid gates contiguous,
    tanh gate last), each gate padded to a full p-lane group; rows K..k_pad
    are zero (so padded lanes of the input/state contribute nothing)."""
    k = w.shape[1]
    wi, wf, wg, wo = (w[0:hidden], w[hidden:2 * hidden],
                      w[2 * hidden:3 * hidden], w[3 * hidden:4 * hidden])
    blocks = []
    for blk in (wi, wf, wo, wg):
        blk_t = jnp.transpose(blk)                              # (K, hidden)
        blocks.append(jnp.pad(blk_t, ((0, k_pad - k), (0, p - hidden))))
    return jnp.concatenate(blocks, axis=1)                      # (k_pad, 4*p)


def _pack_gate_bias(b, hidden, p):
    bi, bf, bg, bo = (b[0:hidden], b[hidden:2 * hidden],
                      b[2 * hidden:3 * hidden], b[3 * hidden:4 * hidden])
    parts = [jnp.pad(v, (0, p - hidden)) for v in (bi, bf, bo, bg)]
    return jnp.concatenate(parts).reshape(1, 4 * p)


# --------------------------------- fused kernel --------------------------------

def _make_fused_kernel(T, Bp, P, num_layers):
    def kernel(*refs):
        idx = 0
        x_ref = refs[idx]; idx += 1                       # (T*Bp, Dp) bf16
        wih0_ref = refs[idx]                              # (Dp, 4P)  bf16
        whh0_ref = refs[idx + 1]                          # (P, 4P)   bf16
        b0_ref = refs[idx + 2]                            # (1, 4P)   f32
        idx += 3
        upper = []                                        # layers 1..L-1
        for _ in range(num_layers - 1):
            upper.append((refs[idx], refs[idx + 1]))      # (2P,4P) bf16, (1,4P) f32
            idx += 2
        fcw_ref, fcb_ref = refs[idx], refs[idx + 1]       # (P, Cp), (1, Cp) f32
        idx += 2
        H_ref, hT_ref, cT_ref, y_ref = refs[idx:idx + 4]
        xw_sc = refs[idx + 4]                             # (T*Bp, 4P) f32 scratch

        # ---- Hoisted layer-0 input projection: one bf16 MXU matmul. ----
        xw_sc[...] = (
            jnp.dot(x_ref[...], wih0_ref[...], preferred_element_type=jnp.float32)
            + b0_ref[...]
        )

        def cell(gates, c):
            # Gate layout [i | f | o | g], each a full 128-lane group; all
            # elementwise/transcendental math in f32.
            sig = jax.nn.sigmoid(gates[:, :3 * P])        # i, f, o in one EUP slab
            g = jnp.tanh(gates[:, 3 * P:])
            c_new = sig[:, P:2 * P] * c + sig[:, :P] * g
            h_new = sig[:, 2 * P:] * jnp.tanh(c_new)
            return h_new, c_new

        h = [jnp.zeros((Bp, P), jnp.float32) for _ in range(num_layers)]
        c = [jnp.zeros((Bp, P), jnp.float32) for _ in range(num_layers)]

        whh0 = whh0_ref[...]                              # hoist weight loads
        wcomb = [upper[l][0][...] for l in range(num_layers - 1)]
        bup = [upper[l][1][...] for l in range(num_layers - 1)]

        # ---- Wavefront recurrence (statically unrolled, T is small). ----
        # Layer (l+1, t) depends only on (l, t) and (l+1, t-1); layer (0, t+1)
        # depends only on (0, t) -> steps across layers overlap in the bundle
        # schedule.
        for t in range(T):
            gates0 = xw_sc[pl.ds(t * Bp, Bp), :] + jnp.dot(
                h[0].astype(jnp.bfloat16), whh0,
                preferred_element_type=jnp.float32)
            h[0], c[0] = cell(gates0, c[0])
            for l in range(1, num_layers):
                inp = jnp.concatenate([h[l - 1], h[l]], axis=1).astype(jnp.bfloat16)
                gates = jnp.dot(inp, wcomb[l - 1],
                                preferred_element_type=jnp.float32) + bup[l - 1]
                h[l], c[l] = cell(gates, c[l])
            H_ref[t] = h[num_layers - 1]                  # lane-dense store in VMEM

        for l in range(num_layers):
            hT_ref[l] = h[l]
            cT_ref[l] = c[l]

        # Final Linear on the last layer's final hidden state (padded lanes 0;
        # C padded to a full 128-lane group -> unmasked vst).
        y_ref[...] = (jnp.dot(h[num_layers - 1], fcw_ref[...],
                              preferred_element_type=jnp.float32) + fcb_ref[...])
    return kernel


# ------------------------------ Full model forward ----------------------------

def lstm_model_forward(x, params):
    """x: (T, B, input_dim) f32.  Returns (H, (h_T, c_T), y_hat) with zero
    initial states, matching LSTMModel.forward."""
    T, B, D = x.shape
    num_layers = len(params["lstm"])
    Hd = params["lstm"][0][1].shape[1]          # w_hh: (4H, H)
    C = params["fc_w"].shape[0]
    P = _round_up(max(Hd, 128), 128)            # per-gate lane-padded width
    Bp = _round_up(max(B, 8), 8)                # sublane-padded batch
    Dp = _round_up(max(D, 128), 128)            # lane-padded input features
    Cp = _round_up(max(C, 128), 128)            # lane-padded FC output

    # Pre-flattened, lane-padded, bf16 input (time-major rows).
    x_p = (jnp.zeros((T, Bp, Dp), jnp.float32)
           .at[:, :B, :D].set(x.astype(jnp.float32))
           .reshape(T * Bp, Dp)
           .astype(jnp.bfloat16))

    inputs = [x_p]
    in_specs = [pl.BlockSpec((T * Bp, Dp), lambda i: (0, 0))]

    # Layer 0: separate W_ih (hoisted projection) and W_hh (per-step).
    w_ih0, w_hh0, b_ih0, b_hh0 = params["lstm"][0]
    wih0 = _pack_gate_matrix(w_ih0, Hd, P, Dp).astype(jnp.bfloat16)   # (Dp, 4P)
    whh0 = _pack_gate_matrix(w_hh0, Hd, P, P).astype(jnp.bfloat16)    # (P, 4P)
    b0 = _pack_gate_bias(b_ih0 + b_hh0, Hd, P)                        # (1, 4P) f32
    inputs += [wih0, whh0, b0]
    in_specs += [pl.BlockSpec(wih0.shape, lambda i: (0, 0)),
                 pl.BlockSpec(whh0.shape, lambda i: (0, 0)),
                 pl.BlockSpec(b0.shape, lambda i: (0, 0))]

    # Layers > 0: fused [W_ih; W_hh] so each wavefront step is one MXU matmul.
    for l in range(1, num_layers):
        w_ih, w_hh, b_ih, b_hh = params["lstm"][l]
        wih_p = _pack_gate_matrix(w_ih, Hd, P, P)
        whh_p = _pack_gate_matrix(w_hh, Hd, P, P)
        wcomb = jnp.concatenate([wih_p, whh_p], axis=0).astype(jnp.bfloat16)  # (2P,4P)
        b_p = _pack_gate_bias(b_ih + b_hh, Hd, P)                              # (1,4P)
        inputs += [wcomb, b_p]
        in_specs += [pl.BlockSpec(wcomb.shape, lambda i: (0, 0)),
                     pl.BlockSpec(b_p.shape, lambda i: (0, 0))]

    fcw_p = jnp.zeros((P, Cp), jnp.float32).at[:Hd, :C].set(
        jnp.transpose(params["fc_w"]))
    fcb_p = jnp.zeros((1, Cp), jnp.float32).at[0, :C].set(params["fc_b"])
    inputs += [fcw_p, fcb_p]
    in_specs += [pl.BlockSpec((P, Cp), lambda i: (0, 0)),
                 pl.BlockSpec((1, Cp), lambda i: (0, 0))]

    out_shape = (
        jax.ShapeDtypeStruct((T, Bp, P), jnp.float32),            # H (padded)
        jax.ShapeDtypeStruct((num_layers, Bp, P), jnp.float32),   # h_T (padded)
        jax.ShapeDtypeStruct((num_layers, Bp, P), jnp.float32),   # c_T (padded)
        jax.ShapeDtypeStruct((Bp, Cp), jnp.float32),              # y_hat (padded)
    )
    out_specs = (
        pl.BlockSpec((T, Bp, P), lambda i: (0, 0, 0)),
        pl.BlockSpec((num_layers, Bp, P), lambda i: (0, 0, 0)),
        pl.BlockSpec((num_layers, Bp, P), lambda i: (0, 0, 0)),
        pl.BlockSpec((Bp, Cp), lambda i: (0, 0)),
    )

    Hp, hTp, cTp, yp = pl.pallas_call(
        _make_fused_kernel(T, Bp, P, num_layers),
        out_shape=out_shape,
        grid=(1,),
        in_specs=in_specs,
        out_specs=out_specs,
        scratch_shapes=[pltpu.VMEM((T * Bp, 4 * P), jnp.float32)],
        compiler_params=pltpu.CompilerParams(
            dimension_semantics=("arbitrary",),
            vmem_limit_bytes=64 * 1024 * 1024),
    )(*inputs)

    H = Hp[:, :B, :Hd]
    h_T = hTp[:, :B, :Hd]
    c_T = cTp[:, :B, :Hd]
    y_hat = yp[:B, :C]
    return H, (h_T, c_T), y_hat


# ------------------------------ Pure-JAX reference ----------------------------

def _ref_forward(x, params):
    prec = jax.lax.Precision.HIGHEST

    def cell(carry, x_t, w_ih, w_hh, b):
        h, c = carry
        gates = (jnp.dot(x_t, w_ih.T, precision=prec)
                 + jnp.dot(h, w_hh.T, precision=prec) + b)
        Hd = h.shape[-1]
        i = jax.nn.sigmoid(gates[:, :Hd])
        f = jax.nn.sigmoid(gates[:, Hd:2 * Hd])
        g = jnp.tanh(gates[:, 2 * Hd:3 * Hd])
        o = jax.nn.sigmoid(gates[:, 3 * Hd:])
        c_new = f * c + i * g
        h_new = o * jnp.tanh(c_new)
        return (h_new, c_new), h_new

    layer_in = x
    hs, cs = [], []
    for (w_ih, w_hh, b_ih, b_hh) in params["lstm"]:
        B = x.shape[1]
        Hd = w_hh.shape[1]
        init = (jnp.zeros((B, Hd)), jnp.zeros((B, Hd)))
        (hT, cT), Hseq = jax.lax.scan(
            functools.partial(cell, w_ih=w_ih, w_hh=w_hh, b=b_ih + b_hh),
            init, layer_in)
        hs.append(hT)
        cs.append(cT)
        layer_in = Hseq
    h_T = jnp.stack(hs, 0)
    c_T = jnp.stack(cs, 0)
    y_hat = jnp.dot(h_T[-1], params["fc_w"].T, precision=prec) + params["fc_b"]
    return layer_in, (h_T, c_T), y_hat


# ----------------------------------- Main -------------------------------------

if __name__ == "__main__":
    # Model hyper-parameters (small, consistent with the module's forward).
    T, B = 8, 2
    input_dim, hidden_dim, num_layers, num_classes = 16, 32, 2, 5

    key = jax.random.PRNGKey(0)
    keys = jax.random.split(key, 4 * num_layers + 3)

    scale = 1.0 / np.sqrt(hidden_dim)
    lstm_params = []
    for l in range(num_layers):
        d_in = input_dim if l == 0 else hidden_dim
        w_ih = jax.random.uniform(keys[4 * l + 0], (4 * hidden_dim, d_in),
                                  minval=-scale, maxval=scale, dtype=jnp.float32)
        w_hh = jax.random.uniform(keys[4 * l + 1], (4 * hidden_dim, hidden_dim),
                                  minval=-scale, maxval=scale, dtype=jnp.float32)
        b_ih = jax.random.uniform(keys[4 * l + 2], (4 * hidden_dim,),
                                  minval=-scale, maxval=scale, dtype=jnp.float32)
        b_hh = jax.random.uniform(keys[4 * l + 3], (4 * hidden_dim,),
                                  minval=-scale, maxval=scale, dtype=jnp.float32)
        lstm_params.append((w_ih, w_hh, b_ih, b_hh))

    fc_w = jax.random.uniform(keys[-3], (num_classes, hidden_dim),
                              minval=-scale, maxval=scale, dtype=jnp.float32)
    fc_b = jax.random.uniform(keys[-2], (num_classes,),
                              minval=-scale, maxval=scale, dtype=jnp.float32)
    params = {"lstm": lstm_params, "fc_w": fc_w, "fc_b": fc_b}

    x = jax.random.normal(keys[-1], (T, B, input_dim), dtype=jnp.float32)

    H, (h_T, c_T), y_hat = lstm_model_forward(x, params)
    jax.block_until_ready((H, h_T, c_T, y_hat))

    # bf16 MXU operands in the kernel vs. f32 HIGHEST-precision reference ->
    # relaxed tolerances (values are O(1), bf16 rel. error ~2^-9 per term).
    H_r, (h_r, c_r), y_r = _ref_forward(x, params)
    np.testing.assert_allclose(np.asarray(H), np.asarray(H_r), atol=3e-2, rtol=3e-2)
    np.testing.assert_allclose(np.asarray(h_T), np.asarray(h_r), atol=3e-2, rtol=3e-2)
    np.testing.assert_allclose(np.asarray(c_T), np.asarray(c_r), atol=3e-2, rtol=3e-2)
    np.testing.assert_allclose(np.asarray(y_hat), np.asarray(y_r), atol=3e-2, rtol=3e-2)

    print("KERNEL_OK")
</pallas_src>

<mosaic_0001>
module attributes {stable_mosaic.version = 11 : i64} {
  func.func @kernel(%arg0: i32, %arg1: memref<64x128xbf16, #tpu.memory_space<vmem>>, %arg2: memref<128x512xbf16, #tpu.memory_space<vmem>>, %arg3: memref<128x512xbf16, #tpu.memory_space<vmem>>, %arg4: memref<1x512xf32, #tpu.memory_space<vmem>>, %arg5: memref<256x512xbf16, #tpu.memory_space<vmem>>, %arg6: memref<1x512xf32, #tpu.memory_space<vmem>>, %arg7: memref<128x128xf32, #tpu.memory_space<vmem>>, %arg8: memref<1x128xf32, #tpu.memory_space<vmem>>, %arg9: memref<8x8x128xf32, #tpu.memory_space<vmem>>, %arg10: memref<2x8x128xf32, #tpu.memory_space<vmem>>, %arg11: memref<2x8x128xf32, #tpu.memory_space<vmem>>, %arg12: memref<8x128xf32, #tpu.memory_space<vmem>>, %arg13: memref<64x512xf32, #tpu.memory_space<vmem>>) attributes {dimension_semantics = [#tpu.dimension_semantics<arbitrary>], iteration_bounds = array<i64: 1>, scalar_prefetch = 0 : i64, scratch_operands = 1 : i64, tpu.core_type = #tpu.core_type<tc>, window_params = [{pipeline_mode = #tpu.pipeline_mode<synchronous>, transform_indices = @transform_0, window_bounds = array<i64: 64, 128>}, {pipeline_mode = #tpu.pipeline_mode<synchronous>, transform_indices = @transform_1, window_bounds = array<i64: 128, 512>}, {pipeline_mode = #tpu.pipeline_mode<synchronous>, transform_indices = @transform_2, window_bounds = array<i64: 128, 512>}, {pipeline_mode = #tpu.pipeline_mode<synchronous>, transform_indices = @transform_3, window_bounds = array<i64: 1, 512>}, {pipeline_mode = #tpu.pipeline_mode<synchronous>, transform_indices = @transform_4, window_bounds = array<i64: 256, 512>}, {pipeline_mode = #tpu.pipeline_mode<synchronous>, transform_indices = @transform_5, window_bounds = array<i64: 1, 512>}, {pipeline_mode = #tpu.pipeline_mode<synchronous>, transform_indices = @transform_6, window_bounds = array<i64: 128, 128>}, {pipeline_mode = #tpu.pipeline_mode<synchronous>, transform_indices = @transform_7, window_bounds = array<i64: 1, 128>}, {pipeline_mode = #tpu.pipeline_mode<synchronous>, transform_indices = @transform_8, window_bounds = array<i64: 8, 8, 128>}, {pipeline_mode = #tpu.pipeline_mode<synchronous>, transform_indices = @transform_9, window_bounds = array<i64: 2, 8, 128>}, {pipeline_mode = #tpu.pipeline_mode<synchronous>, transform_indices = @transform_10, window_bounds = array<i64: 2, 8, 128>}, {pipeline_mode = #tpu.pipeline_mode<synchronous>, transform_indices = @transform_11, window_bounds = array<i64: 8, 128>}]} {
    %c0 = arith.constant 0 : index
    %c0_0 = arith.constant 0 : index
    %0 = vector.load %arg1[%c0, %c0_0] : memref<64x128xbf16, #tpu.memory_space<vmem>>, vector<64x128xbf16>
    %c0_1 = arith.constant 0 : index
    %c0_2 = arith.constant 0 : index
    %1 = vector.load %arg2[%c0_1, %c0_2] : memref<128x512xbf16, #tpu.memory_space<vmem>>, vector<128x512xbf16>
    %cst = arith.constant dense<0.000000e+00> : vector<64x512xf32>
    %2 = tpu.matmul %0, %1, %cst {dimension_numbers = #tpu.dot_dimension_numbers<[1], [0], [0], [1], [0, 0, 1, 1], [], []>} : vector<64x128xbf16>, vector<128x512xbf16>, vector<64x512xf32> -> vector<64x512xf32>
    %c0_3 = arith.constant 0 : index
    %c0_4 = arith.constant 0 : index
    %3 = vector.load %arg4[%c0_3, %c0_4] : memref<1x512xf32, #tpu.memory_space<vmem>>, vector<1x512xf32>
    %4 = vector.broadcast %3 : vector<1x512xf32> to vector<64x512xf32>
    %5 = arith.addf %2, %4 : vector<64x512xf32>
    %c0_5 = arith.constant 0 : index
    %c0_6 = arith.constant 0 : index
    %6 = vector.load %arg13[%c0_5, %c0_6] : memref<64x512xf32, #tpu.memory_space<vmem>>, vector<64x512xf32>
    tpu.vector_store %arg13[%c0_5, %c0_6], %5 {strides = array<i32>} : memref<64x512xf32, #tpu.memory_space<vmem>>, vector<64x512xf32>,
    %cst_7 = arith.constant 0.000000e+00 : f32
    %7 = vector.broadcast %cst_7 : f32 to vector<8x128xf32>
    %cst_8 = arith.constant 0.000000e+00 : f32
    %8 = vector.broadcast %cst_8 : f32 to vector<8x128xf32>
    %cst_9 = arith.constant 0.000000e+00 : f32
    %9 = vector.broadcast %cst_9 : f32 to vector<8x128xf32>
    %cst_10 = arith.constant 0.000000e+00 : f32
    %10 = vector.broadcast %cst_10 : f32 to vector<8x128xf32>
    %c0_11 = arith.constant 0 : index
    %c0_12 = arith.constant 0 : index
    %11 = vector.load %arg3[%c0_11, %c0_12] : memref<128x512xbf16, #tpu.memory_space<vmem>>, vector<128x512xbf16>
    %c0_13 = arith.constant 0 : index
    %c0_14 = arith.constant 0 : index
    %12 = vector.load %arg5[%c0_13, %c0_14] : memref<256x512xbf16, #tpu.memory_space<vmem>>, vector<256x512xbf16>
    %c0_15 = arith.constant 0 : index
    %c0_16 = arith.constant 0 : index
    %13 = vector.load %arg6[%c0_15, %c0_16] : memref<1x512xf32, #tpu.memory_space<vmem>>, vector<1x512xf32>
    %c0_17 = arith.constant 0 : index
    %c0_18 = arith.constant 0 : index
    %14 = vector.load %arg13[%c0_17, %c0_18] : memref<64x512xf32, #tpu.memory_space<vmem>>, vector<8x512xf32>
    %15 = arith.truncf %7 : vector<8x128xf32> to vector<8x128xbf16>
    %cst_19 = arith.constant dense<0.000000e+00> : vector<8x512xf32>
    %16 = tpu.matmul %15, %11, %cst_19 {dimension_numbers = #tpu.dot_dimension_numbers<[1], [0], [0], [1], [0, 0, 1, 1], [], []>} : vector<8x128xbf16>, vector<128x512xbf16>, vector<8x512xf32> -> vector<8x512xf32>
    %17 = arith.addf %14, %16 : vector<8x512xf32>
    %18 = vector.extract_strided_slice %17 {offsets = [0, 0], sizes = [8, 384], strides = [1, 1]} : vector<8x512xf32> to vector<8x384xf32>
    %19 = arith.negf %18 : vector<8x384xf32>
    %20 = math.exp %19 : vector<8x384xf32>
    %cst_20 = arith.constant 1.000000e+00 : f32
    %21 = vector.broadcast %cst_20 : f32 to vector<8x384xf32>
    %22 = arith.addf %21, %20 : vector<8x384xf32>
    %23 = arith.divf %21, %22 : vector<8x384xf32>
    %24 = vector.extract_strided_slice %17 {offsets = [0, 384], sizes = [8, 128], strides = [1, 1]} : vector<8x512xf32> to vector<8x128xf32>
    %25 = math.tanh %24 : vector<8x128xf32>
    %26 = vector.extract_strided_slice %23 {offsets = [0, 128], sizes = [8, 128], strides = [1, 1]} : vector<8x384xf32> to vector<8x128xf32>
    %27 = arith.mulf %26, %9 : vector<8x128xf32>
    %28 = vector.extract_strided_slice %23 {offsets = [0, 0], sizes = [8, 128], strides = [1, 1]} : vector<8x384xf32> to vector<8x128xf32>
    %29 = arith.mulf %28, %25 : vector<8x128xf32>
    %30 = arith.addf %27, %29 : vector<8x128xf32>
    %31 = vector.extract_strided_slice %23 {offsets = [0, 256], sizes = [8, 128], strides = [1, 1]} : vector<8x384xf32> to vector<8x128xf32>
    %32 = math.tanh %30 : vector<8x128xf32>
    %33 = arith.mulf %31, %32 : vector<8x128xf32>
    %34 = tpu.concatenate %33, %8 in 1 : vector<8x128xf32>, vector<8x128xf32> -> vector<8x256xf32>
    %35 = arith.truncf %34 : vector<8x256xf32> to vector<8x256xbf16>
    %cst_21 = arith.constant dense<0.000000e+00> : vector<8x512xf32>
    %36 = tpu.matmul %35, %12, %cst_21 {dimension_numbers = #tpu.dot_dimension_numbers<[1], [0], [0], [1], [0, 0, 1, 1], [], []>} : vector<8x256xbf16>, vector<256x512xbf16>, vector<8x512xf32> -> vector<8x512xf32>
    %37 = vector.broadcast %13 : vector<1x512xf32> to vector<8x512xf32>
    %38 = arith.addf %36, %37 : vector<8x512xf32>
    %39 = vector.extract_strided_slice %38 {offsets = [0, 0], sizes = [8, 384], strides = [1, 1]} : vector<8x512xf32> to vector<8x384xf32>
    %40 = arith.negf %39 : vector<8x384xf32>
    %41 = math.exp %40 : vector<8x384xf32>
    %cst_22 = arith.constant 1.000000e+00 : f32
    %42 = vector.broadcast %cst_22 : f32 to vector<8x384xf32>
    %43 = arith.addf %42, %41 : vector<8x384xf32>
    %44 = arith.divf %42, %43 : vector<8x384xf32>
    %45 = vector.extract_strided_slice %38 {offsets = [0, 384], sizes = [8, 128], strides = [1, 1]} : vector<8x512xf32> to vector<8x128xf32>
    %46 = math.tanh %45 : vector<8x128xf32>
    %47 = vector.extract_strided_slice %44 {offsets = [0, 128], sizes = [8, 128], strides = [1, 1]} : vector<8x384xf32> to vector<8x128xf32>
    %48 = arith.mulf %47, %10 : vector<8x128xf32>
    %49 = vector.extract_strided_slice %44 {offsets = [0, 0], sizes = [8, 128], strides = [1, 1]} : vector<8x384xf32> to vector<8x128xf32>
    %50 = arith.mulf %49, %46 : vector<8x128xf32>
    %51 = arith.addf %48, %50 : vector<8x128xf32>
    %52 = vector.extract_strided_slice %44 {offsets = [0, 256], sizes = [8, 128], strides = [1, 1]} : vector<8x384xf32> to vector<8x128xf32>
    %53 = math.tanh %51 : vector<8x128xf32>
    %54 = arith.mulf %52, %53 : vector<8x128xf32>
    %c0_23 = arith.constant 0 : index
    %c0_24 = arith.constant 0 : index
    %c0_25 = arith.constant 0 : index
    %55 = vector.load %arg9[%c0_23, %c0_24, %c0_25] : memref<8x8x128xf32, #tpu.memory_space<vmem>>, vector<1x8x128xf32>
    %56 = vector.shape_cast %55 : vector<1x8x128xf32> to vector<8x128xf32>
    %57 = vector.shape_cast %54 : vector<8x128xf32> to vector<1x8x128xf32>
    tpu.vector_store %arg9[%c0_23, %c0_24, %c0_25], %57 {strides = array<i32>} : memref<8x8x128xf32, #tpu.memory_space<vmem>>, vector<1x8x128xf32>,
    %c8 = arith.constant 8 : index
    %c0_26 = arith.constant 0 : index
    %58 = vector.load %arg13[%c8, %c0_26] : memref<64x512xf32, #tpu.memory_space<vmem>>, vector<8x512xf32>
    %59 = arith.truncf %33 : vector<8x128xf32> to vector<8x128xbf16>
    %cst_27 = arith.constant dense<0.000000e+00> : vector<8x512xf32>
    %60 = tpu.matmul %59, %11, %cst_27 {dimension_numbers = #tpu.dot_dimension_numbers<[1], [0], [0], [1], [0, 0, 1, 1], [], []>} : vector<8x128xbf16>, vector<128x512xbf16>, vector<8x512xf32> -> vector<8x512xf32>
    %61 = arith.addf %58, %60 : vector<8x512xf32>
    %62 = vector.extract_strided_slice %61 {offsets = [0, 0], sizes = [8, 384], strides = [1, 1]} : vector<8x512xf32> to vector<8x384xf32>
    %63 = arith.negf %62 : vector<8x384xf32>
    %64 = math.exp %63 : vector<8x384xf32>
    %cst_28 = arith.constant 1.000000e+00 : f32
    %65 = vector.broadcast %cst_28 : f32 to vector<8x384xf32>
    %66 = arith.addf %65, %64 : vector<8x384xf32>
    %67 = arith.divf %65, %66 : vector<8x384xf32>
    %68 = vector.extract_strided_slice %61 {offsets = [0, 384], sizes = [8, 128], strides = [1, 1]} : vector<8x512xf32> to vector<8x128xf32>
    %69 = math.tanh %68 : vector<8x128xf32>
    %70 = vector.extract_strided_slice %67 {offsets = [0, 128], sizes = [8, 128], strides = [1, 1]} : vector<8x384xf32> to vector<8x128xf32>
    %71 = arith.mulf %70, %30 : vector<8x128xf32>
    %72 = vector.extract_strided_slice %67 {offsets = [0, 0], sizes = [8, 128], strides = [1, 1]} : vector<8x384xf32> to vector<8x128xf32>
    %73 = arith.mulf %72, %69 : vector<8x128xf32>
    %74 = arith.addf %71, %73 : vector<8x128xf32>
    %75 = vector.extract_strided_slice %67 {offsets = [0, 256], sizes = [8, 128], strides = [1, 1]} : vector<8x384xf32> to vector<8x128xf32>
    %76 = math.tanh %74 : vector<8x128xf32>
    %77 = arith.mulf %75, %76 : vector<8x128xf32>
    %78 = tpu.concatenate %77, %54 in 1 : vector<8x128xf32>, vector<8x128xf32> -> vector<8x256xf32>
    %79 = arith.truncf %78 : vector<8x256xf32> to vector<8x256xbf16>
    %cst_29 = arith.constant dense<0.000000e+00> : vector<8x512xf32>
    %80 = tpu.matmul %79, %12, %cst_29 {dimension_numbers = #tpu.dot_dimension_numbers<[1], [0], [0], [1], [0, 0, 1, 1], [], []>} : vector<8x256xbf16>, vector<256x512xbf16>, vector<8x512xf32> -> vector<8x512xf32>
    %81 = vector.broadcast %13 : vector<1x512xf32> to vector<8x512xf32>
    %82 = arith.addf %80, %81 : vector<8x512xf32>
    %83 = vector.extract_strided_slice %82 {offsets = [0, 0], sizes = [8, 384], strides = [1, 1]} : vector<8x512xf32> to vector<8x384xf32>
    %84 = arith.negf %83 : vector<8x384xf32>
    %85 = math.exp %84 : vector<8x384xf32>
    %cst_30 = arith.constant 1.000000e+00 : f32
    %86 = vector.broadcast %cst_30 : f32 to vector<8x384xf32>
    %87 = arith.addf %86, %85 : vector<8x384xf32>
    %88 = arith.divf %86, %87 : vector<8x384xf32>
    %89 = vector.extract_strided_slice %82 {offsets = [0, 384], sizes = [8, 128], strides = [1, 1]} : vector<8x512xf32> to vector<8x128xf32>
    %90 = math.tanh %89 : vector<8x128xf32>
    %91 = vector.extract_strided_slice %88 {offsets = [0, 128], sizes = [8, 128], strides = [1, 1]} : vector<8x384xf32> to vector<8x128xf32>
    %92 = arith.mulf %91, %51 : vector<8x128xf32>
    %93 = vector.extract_strided_slice %88 {offsets = [0, 0], sizes = [8, 128], strides = [1, 1]} : vector<8x384xf32> to vector<8x128xf32>
    %94 = arith.mulf %93, %90 : vector<8x128xf32>
    %95 = arith.addf %92, %94 : vector<8x128xf32>
    %96 = vector.extract_strided_slice %88 {offsets = [0, 256], sizes = [8, 128], strides = [1, 1]} : vector<8x384xf32> to vector<8x128xf32>
    %97 = math.tanh %95 : vector<8x128xf32>
    %98 = arith.mulf %96, %97 : vector<8x128xf32>
    %c1 = arith.constant 1 : index
    %c0_31 = arith.constant 0 : index
    %c0_32 = arith.constant 0 : index
    %99 = vector.load %arg9[%c1, %c0_31, %c0_32] : memref<8x8x128xf32, #tpu.memory_space<vmem>>, vector<1x8x128xf32>
    %100 = vector.shape_cast %99 : vector<1x8x128xf32> to vector<8x128xf32>
    %101 = vector.shape_cast %98 : vector<8x128xf32> to vector<1x8x128xf32>
    tpu.vector_store %arg9[%c1, %c0_31, %c0_32], %101 {strides = array<i32>} : memref<8x8x128xf32, #tpu.memory_space<vmem>>, vector<1x8x128xf32>,
    %c16 = arith.constant 16 : index
    %c0_33 = arith.constant 0 : index
    %102 = vector.load %arg13[%c16, %c0_33] : memref<64x512xf32, #tpu.memory_space<vmem>>, vector<8x512xf32>
    %103 = arith.truncf %77 : vector<8x128xf32> to vector<8x128xbf16>
    %cst_34 = arith.constant dense<0.000000e+00> : vector<8x512xf32>
    %104 = tpu.matmul %103, %11, %cst_34 {dimension_numbers = #tpu.dot_dimension_numbers<[1], [0], [0], [1], [0, 0, 1, 1], [], []>} : vector<8x128xbf16>, vector<128x512xbf16>, vector<8x512xf32> -> vector<8x512xf32>
    %105 = arith.addf %102, %104 : vector<8x512xf32>
    %106 = vector.extract_strided_slice %105 {offsets = [0, 0], sizes = [8, 384], strides = [1, 1]} : vector<8x512xf32> to vector<8x384xf32>
    %107 = arith.negf %106 : vector<8x384xf32>
    %108 = math.exp %107 : vector<8x384xf32>
    %cst_35 = arith.constant 1.000000e+00 : f32
    %109 = vector.broadcast %cst_35 : f32 to vector<8x384xf32>
    %110 = arith.addf %109, %108 : vector<8x384xf32>
    %111 = arith.divf %109, %110 : vector<8x384xf32>
    %112 = vector.extract_strided_slice %105 {offsets = [0, 384], sizes = [8, 128], strides = [1, 1]} : vector<8x512xf32> to vector<8x128xf32>
    %113 = math.tanh %112 : vector<8x128xf32>
    %114 = vector.extract_strided_slice %111 {offsets = [0, 128], sizes = [8, 128], strides = [1, 1]} : vector<8x384xf32> to vector<8x128xf32>
    %115 = arith.mulf %114, %74 : vector<8x128xf32>
    %116 = vector.extract_strided_slice %111 {offsets = [0, 0], sizes = [8, 128], strides = [1, 1]} : vector<8x384xf32> to vector<8x128xf32>
    %117 = arith.mulf %116, %113 : vector<8x128xf32>
    %118 = arith.addf %115, %117 : vector<8x128xf32>
    %119 = vector.extract_strided_slice %111 {offsets = [0, 256], sizes = [8, 128], strides = [1, 1]} : vector<8x384xf32> to vector<8x128xf32>
    %120 = math.tanh %118 : vector<8x128xf32>
    %121 = arith.mulf %119, %120 : vector<8x128xf32>
    %122 = tpu.concatenate %121, %98 in 1 : vector<8x128xf32>, vector<8x128xf32> -> vector<8x256xf32>
    %123 = arith.truncf %122 : vector<8x256xf32> to vector<8x256xbf16>
    %cst_36 = arith.constant dense<0.000000e+00> : vector<8x512xf32>
    %124 = tpu.matmul %123, %12, %cst_36 {dimension_numbers = #tpu.dot_dimension_numbers<[1], [0], [0], [1], [0, 0, 1, 1], [], []>} : vector<8x256xbf16>, vector<256x512xbf16>, vector<8x512xf32> -> vector<8x512xf32>
    %125 = vector.broadcast %13 : vector<1x512xf32> to vector<8x512xf32>
    %126 = arith.addf %124, %125 : vector<8x512xf32>
    %127 = vector.extract_strided_slice %126 {offsets = [0, 0], sizes = [8, 384], strides = [1, 1]} : vector<8x512xf32> to vector<8x384xf32>
    %128 = arith.negf %127 : vector<8x384xf32>
    %129 = math.exp %128 : vector<8x384xf32>
    %cst_37 = arith.constant 1.000000e+00 : f32
    %130 = vector.broadcast %cst_37 : f32 to vector<8x384xf32>
    %131 = arith.addf %130, %129 : vector<8x384xf32>
    %132 = arith.divf %130, %131 : vector<8x384xf32>
    %133 = vector.extract_strided_slice %126 {offsets = [0, 384], sizes = [8, 128], strides = [1, 1]} : vector<8x512xf32> to vector<8x128xf32>
    %134 = math.tanh %133 : vector<8x128xf32>
    %135 = vector.extract_strided_slice %132 {offsets = [0, 128], sizes = [8, 128], strides = [1, 1]} : vector<8x384xf32> to vector<8x128xf32>
    %136 = arith.mulf %135, %95 : vector<8x128xf32>
    %137 = vector.extract_strided_slice %132 {offsets = [0, 0], sizes = [8, 128], strides = [1, 1]} : vector<8x384xf32> to vector<8x128xf32>
    %138 = arith.mulf %137, %134 : vector<8x128xf32>
    %139 = arith.addf %136, %138 : vector<8x128xf32>
    %140 = vector.extract_strided_slice %132 {offsets = [0, 256], sizes = [8, 128], strides = [1, 1]} : vector<8x384xf32> to vector<8x128xf32>
    %141 = math.tanh %139 : vector<8x128xf32>
    %142 = arith.mulf %140, %141 : vector<8x128xf32>
    %c2 = arith.constant 2 : index
    %c0_38 = arith.constant 0 : index
    %c0_39 = arith.constant 0 : index
    %143 = vector.load %arg9[%c2, %c0_38, %c0_39] : memref<8x8x128xf32, #tpu.memory_space<vmem>>, vector<1x8x128xf32>
    %144 = vector.shape_cast %143 : vector<1x8x128xf32> to vector<8x128xf32>
    %145 = vector.shape_cast %142 : vector<8x128xf32> to vector<1x8x128xf32>
    tpu.vector_store %arg9[%c2, %c0_38, %c0_39], %145 {strides = array<i32>} : memref<8x8x128xf32, #tpu.memory_space<vmem>>, vector<1x8x128xf32>,
    %c24 = arith.constant 24 : index
    %c0_40 = arith.constant 0 : index
    %146 = vector.load %arg13[%c24, %c0_40] : memref<64x512xf32, #tpu.memory_space<vmem>>, vector<8x512xf32>
    %147 = arith.truncf %121 : vector<8x128xf32> to vector<8x128xbf16>
    %cst_41 = arith.constant dense<0.000000e+00> : vector<8x512xf32>
    %148 = tpu.matmul %147, %11, %cst_41 {dimension_numbers = #tpu.dot_dimension_numbers<[1], [0], [0], [1], [0, 0, 1, 1], [], []>} : vector<8x128xbf16>, vector<128x512xbf16>, vector<8x512xf32> -> vector<8x512xf32>
    %149 = arith.addf %146, %148 : vector<8x512xf32>
    %150 = vector.extract_strided_slice %149 {offsets = [0, 0], sizes = [8, 384], strides = [1, 1]} : vector<8x512xf32> to vector<8x384xf32>
    %151 = arith.negf %150 : vector<8x384xf32>
    %152 = math.exp %151 : vector<8x384xf32>
    %cst_42 = arith.constant 1.000000e+00 : f32
    %153 = vector.broadcast %cst_42 : f32 to vector<8x384xf32>
    %154 = arith.addf %153, %152 : vector<8x384xf32>
    %155 = arith.divf %153, %154 : vector<8x384xf32>
    %156 = vector.extract_strided_slice %149 {offsets = [0, 384], sizes = [8, 128], strides = [1, 1]} : vector<8x512xf32> to vector<8x128xf32>
    %157 = math.tanh %156 : vector<8x128xf32>
    %158 = vector.extract_strided_slice %155 {offsets = [0, 128], sizes = [8, 128], strides = [1, 1]} : vector<8x384xf32> to vector<8x128xf32>
    %159 = arith.mulf %158, %118 : vector<8x128xf32>
    %160 = vector.extract_strided_slice %155 {offsets = [0, 0], sizes = [8, 128], strides = [1, 1]} : vector<8x384xf32> to vector<8x128xf32>
    %161 = arith.mulf %160, %157 : vector<8x128xf32>
    %162 = arith.addf %159, %161 : vector<8x128xf32>
    %163 = vector.extract_strided_slice %155 {offsets = [0, 256], sizes = [8, 128], strides = [1, 1]} : vector<8x384xf32> to vector<8x128xf32>
    %164 = math.tanh %162 : vector<8x128xf32>
    %165 = arith.mulf %163, %164 : vector<8x128xf32>
    %166 = tpu.concatenate %165, %142 in 1 : vector<8x128xf32>, vector<8x128xf32> -> vector<8x256xf32>
    %167 = arith.truncf %166 : vector<8x256xf32> to vector<8x256xbf16>
    %cst_43 = arith.constant dense<0.000000e+00> : vector<8x512xf32>
    %168 = tpu.matmul %167, %12, %cst_43 {dimension_numbers = #tpu.dot_dimension_numbers<[1], [0], [0], [1], [0, 0, 1, 1], [], []>} : vector<8x256xbf16>, vector<256x512xbf16>, vector<8x512xf32> -> vector<8x512xf32>
    %169 = vector.broadcast %13 : vector<1x512xf32> to vector<8x512xf32>
    %170 = arith.addf %168, %169 : vector<8x512xf32>
    %171 = vector.extract_strided_slice %170 {offsets = [0, 0], sizes = [8, 384], strides = [1, 1]} : vector<8x512xf32> to vector<8x384xf32>
    %172 = arith.negf %171 : vector<8x384xf32>
    %173 = math.exp %172 : vector<8x384xf32>
    %cst_44 = arith.constant 1.000000e+00 : f32
    %174 = vector.broadcast %cst_44 : f32 to vector<8x384xf32>
    %175 = arith.addf %174, %173 : vector<8x384xf32>
    %176 = arith.divf %174, %175 : vector<8x384xf32>
    %177 = vector.extract_strided_slice %170 {offsets = [0, 384], sizes = [8, 128], strides = [1, 1]} : vector<8x512xf32> to vector<8x128xf32>
    %178 = math.tanh %177 : vector<8x128xf32>
    %179 = vector.extract_strided_slice %176 {offsets = [0, 128], sizes = [8, 128], strides = [1, 1]} : vector<8x384xf32> to vector<8x128xf32>
    %180 = arith.mulf %179, %139 : vector<8x128xf32>
    %181 = vector.extract_strided_slice %176 {offsets = [0, 0], sizes = [8, 128], strides = [1, 1]} : vector<8x384xf32> to vector<8x128xf32>
    %182 = arith.mulf %181, %178 : vector<8x128xf32>
    %183 = arith.addf %180, %182 : vector<8x128xf32>
    %184 = vector.extract_strided_slice %176 {offsets = [0, 256], sizes = [8, 128], strides = [1, 1]} : vector<8x384xf32> to vector<8x128xf32>
    %185 = math.tanh %183 : vector<8x128xf32>
    %186 = arith.mulf %184, %185 : vector<8x128xf32>
    %c3 = arith.constant 3 : index
    %c0_45 = arith.constant 0 : index
    %c0_46 = arith.constant 0 : index
    %187 = vector.load %arg9[%c3, %c0_45, %c0_46] : memref<8x8x128xf32, #tpu.memory_space<vmem>>, vector<1x8x128xf32>
    %188 = vector.shape_cast %187 : vector<1x8x128xf32> to vector<8x128xf32>
    %189 = vector.shape_cast %186 : vector<8x128xf32> to vector<1x8x128xf32>
    tpu.vector_store %arg9[%c3, %c0_45, %c0_46], %189 {strides = array<i32>} : memref<8x8x128xf32, #tpu.memory_space<vmem>>, vector<1x8x128xf32>,
    %c32 = arith.constant 32 : index
    %c0_47 = arith.constant 0 : index
    %190 = vector.load %arg13[%c32, %c0_47] : memref<64x512xf32, #tpu.memory_space<vmem>>, vector<8x512xf32>
    %191 = arith.truncf %165 : vector<8x128xf32> to vector<8x128xbf16>
    %cst_48 = arith.constant dense<0.000000e+00> : vector<8x512xf32>
    %192 = tpu.matmul %191, %11, %cst_48 {dimension_numbers = #tpu.dot_dimension_numbers<[1], [0], [0], [1], [0, 0, 1, 1], [], []>} : vector<8x128xbf16>, vector<128x512xbf16>, vector<8x512xf32> -> vector<8x512xf32>
    %193 = arith.addf %190, %192 : vector<8x512xf32>
    %194 = vector.extract_strided_slice %193 {offsets = [0, 0], sizes = [8, 384], strides = [1, 1]} : vector<8x512xf32> to vector<8x384xf32>
    %195 = arith.negf %194 : vector<8x384xf32>
    %196 = math.exp %195 : vector<8x384xf32>
    %cst_49 = arith.constant 1.000000e+00 : f32
    %197 = vector.broadcast %cst_49 : f32 to vector<8x384xf32>
    %198 = arith.addf %197, %196 : vector<8x384xf32>
    %199 = arith.divf %197, %198 : vector<8x384xf32>
    %200 = vector.extract_strided_slice %193 {offsets = [0, 384], sizes = [8, 128], strides = [1, 1]} : vector<8x512xf32> to vector<8x128xf32>
    %201 = math.tanh %200 : vector<8x128xf32>
    %202 = vector.extract_strided_slice %199 {offsets = [0, 128], sizes = [8, 128], strides = [1, 1]} : vector<8x384xf32> to vector<8x128xf32>
    %203 = arith.mulf %202, %162 : vector<8x128xf32>
    %204 = vector.extract_strided_slice %199 {offsets = [0, 0], sizes = [8, 128], strides = [1, 1]} : vector<8x384xf32> to vector<8x128xf32>
    %205 = arith.mulf %204, %201 : vector<8x128xf32>
    %206 = arith.addf %203, %205 : vector<8x128xf32>
    %207 = vector.extract_strided_slice %199 {offsets = [0, 256], sizes = [8, 128], strides = [1, 1]} : vector<8x384xf32> to vector<8x128xf32>
    %208 = math.tanh %206 : vector<8x128xf32>
    %209 = arith.mulf %207, %208 : vector<8x128xf32>
    %210 = tpu.concatenate %209, %186 in 1 : vector<8x128xf32>, vector<8x128xf32> -> vector<8x256xf32>
    %211 = arith.truncf %210 : vector<8x256xf32> to vector<8x256xbf16>
    %cst_50 = arith.constant dense<0.000000e+00> : vector<8x512xf32>
    %212 = tpu.matmul %211, %12, %cst_50 {dimension_numbers = #tpu.dot_dimension_numbers<[1], [0], [0], [1], [0, 0, 1, 1], [], []>} : vector<8x256xbf16>, vector<256x512xbf16>, vector<8x512xf32> -> vector<8x512xf32>
    %213 = vector.broadcast %13 : vector<1x512xf32> to vector<8x512xf32>
    %214 = arith.addf %212, %213 : vector<8x512xf32>
    %215 = vector.extract_strided_slice %214 {offsets = [0, 0], sizes = [8, 384], strides = [1, 1]} : vector<8x512xf32> to vector<8x384xf32>
    %216 = arith.negf %215 : vector<8x384xf32>
    %217 = math.exp %216 : vector<8x384xf32>
    %cst_51 = arith.constant 1.000000e+00 : f32
    %218 = vector.broadcast %cst_51 : f32 to vector<8x384xf32>
    %219 = arith.addf %218, %217 : vector<8x384xf32>
    %220 = arith.divf %218, %219 : vector<8x384xf32>
    %221 = vector.extract_strided_slice %214 {offsets = [0, 384], sizes = [8, 128], strides = [1, 1]} : vector<8x512xf32> to vector<8x128xf32>
    %222 = math.tanh %221 : vector<8x128xf32>
    %223 = vector.extract_strided_slice %220 {offsets = [0, 128], sizes = [8, 128], strides = [1, 1]} : vector<8x384xf32> to vector<8x128xf32>
    %224 = arith.mulf %223, %183 : vector<8x128xf32>
    %225 = vector.extract_strided_slice %220 {offsets = [0, 0], sizes = [8, 128], strides = [1, 1]} : vector<8x384xf32> to vector<8x128xf32>
    %226 = arith.mulf %225, %222 : vector<8x128xf32>
    %227 = arith.addf %224, %226 : vector<8x128xf32>
    %228 = vector.extract_strided_slice %220 {offsets = [0, 256], sizes = [8, 128], strides = [1, 1]} : vector<8x384xf32> to vector<8x128xf32>
    %229 = math.tanh %227 : vector<8x128xf32>
    %230 = arith.mulf %228, %229 : vector<8x128xf32>
    %c4 = arith.constant 4 : index
    %c0_52 = arith.constant 0 : index
    %c0_53 = arith.constant 0 : index
    %231 = vector.load %arg9[%c4, %c0_52, %c0_53] : memref<8x8x128xf32, #tpu.memory_space<vmem>>, vector<1x8x128xf32>
    %232 = vector.shape_cast %231 : vector<1x8x128xf32> to vector<8x128xf32>
    %233 = vector.shape_cast %230 : vector<8x128xf32> to vector<1x8x128xf32>
    tpu.vector_store %arg9[%c4, %c0_52, %c0_53], %233 {strides = array<i32>} : memref<8x8x128xf32, #tpu.memory_space<vmem>>, vector<1x8x128xf32>,
    %c40 = arith.constant 40 : index
    %c0_54 = arith.constant 0 : index
    %234 = vector.load %arg13[%c40, %c0_54] : memref<64x512xf32, #tpu.memory_space<vmem>>, vector<8x512xf32>
    %235 = arith.truncf %209 : vector<8x128xf32> to vector<8x128xbf16>
    %cst_55 = arith.constant dense<0.000000e+00> : vector<8x512xf32>
    %236 = tpu.matmul %235, %11, %cst_55 {dimension_numbers = #tpu.dot_dimension_numbers<[1], [0], [0], [1], [0, 0, 1, 1], [], []>} : vector<8x128xbf16>, vector<128x512xbf16>, vector<8x512xf32> -> vector<8x512xf32>
    %237 = arith.addf %234, %236 : vector<8x512xf32>
    %238 = vector.extract_strided_slice %237 {offsets = [0, 0], sizes = [8, 384], strides = [1, 1]} : vector<8x512xf32> to vector<8x384xf32>
    %239 = arith.negf %238 : vector<8x384xf32>
    %240 = math.exp %239 : vector<8x384xf32>
    %cst_56 = arith.constant 1.000000e+00 : f32
    %241 = vector.broadcast %cst_56 : f32 to vector<8x384xf32>
    %242 = arith.addf %241, %240 : vector<8x384xf32>
    %243 = arith.divf %241, %242 : vector<8x384xf32>
    %244 = vector.extract_strided_slice %237 {offsets = [0, 384], sizes = [8, 128], strides = [1, 1]} : vector<8x512xf32> to vector<8x128xf32>
    %245 = math.tanh %244 : vector<8x128xf32>
    %246 = vector.extract_strided_slice %243 {offsets = [0, 128], sizes = [8, 128], strides = [1, 1]} : vector<8x384xf32> to vector<8x128xf32>
    %247 = arith.mulf %246, %206 : vector<8x128xf32>
    %248 = vector.extract_strided_slice %243 {offsets = [0, 0], sizes = [8, 128], strides = [1, 1]} : vector<8x384xf32> to vector<8x128xf32>
    %249 = arith.mulf %248, %245 : vector<8x128xf32>
    %250 = arith.addf %247, %249 : vector<8x128xf32>
    %251 = vector.extract_strided_slice %243 {offsets = [0, 256], sizes = [8, 128], strides = [1, 1]} : vector<8x384xf32> to vector<8x128xf32>
    %252 = math.tanh %250 : vector<8x128xf32>
    %253 = arith.mulf %251, %252 : vector<8x128xf32>
    %254 = tpu.concatenate %253, %230 in 1 : vector<8x128xf32>, vector<8x128xf32> -> vector<8x256xf32>
    %255 = arith.truncf %254 : vector<8x256xf32> to vector<8x256xbf16>
    %cst_57 = arith.constant dense<0.000000e+00> : vector<8x512xf32>
    %256 = tpu.matmul %255, %12, %cst_57 {dimension_numbers = #tpu.dot_dimension_numbers<[1], [0], [0], [1], [0, 0, 1, 1], [], []>} : vector<8x256xbf16>, vector<256x512xbf16>, vector<8x512xf32> -> vector<8x512xf32>
    %257 = vector.broadcast %13 : vector<1x512xf32> to vector<8x512xf32>
    %258 = arith.addf %256, %257 : vector<8x512xf32>
    %259 = vector.extract_strided_slice %258 {offsets = [0, 0], sizes = [8, 384], strides = [1, 1]} : vector<8x512xf32> to vector<8x384xf32>
    %260 = arith.negf %259 : vector<8x384xf32>
    %261 = math.exp %260 : vector<8x384xf32>
    %cst_58 = arith.constant 1.000000e+00 : f32
    %262 = vector.broadcast %cst_58 : f32 to vector<8x384xf32>
    %263 = arith.addf %262, %261 : vector<8x384xf32>
    %264 = arith.divf %262, %263 : vector<8x384xf32>
    %265 = vector.extract_strided_slice %258 {offsets = [0, 384], sizes = [8, 128], strides = [1, 1]} : vector<8x512xf32> to vector<8x128xf32>
    %266 = math.tanh %265 : vector<8x128xf32>
    %267 = vector.extract_strided_slice %264 {offsets = [0, 128], sizes = [8, 128], strides = [1, 1]} : vector<8x384xf32> to vector<8x128xf32>
    %268 = arith.mulf %267, %227 : vector<8x128xf32>
    %269 = vector.extract_strided_slice %264 {offsets = [0, 0], sizes = [8, 128], strides = [1, 1]} : vector<8x384xf32> to vector<8x128xf32>
    %270 = arith.mulf %269, %266 : vector<8x128xf32>
    %271 = arith.addf %268, %270 : vector<8x128xf32>
    %272 = vector.extract_strided_slice %264 {offsets = [0, 256], sizes = [8, 128], strides = [1, 1]} : vector<8x384xf32> to vector<8x128xf32>
    %273 = math.tanh %271 : vector<8x128xf32>
    %274 = arith.mulf %272, %273 : vector<8x128xf32>
    %c5 = arith.constant 5 : index
    %c0_59 = arith.constant 0 : index
    %c0_60 = arith.constant 0 : index
    %275 = vector.load %arg9[%c5, %c0_59, %c0_60] : memref<8x8x128xf32, #tpu.memory_space<vmem>>, vector<1x8x128xf32>
    %276 = vector.shape_cast %275 : vector<1x8x128xf32> to vector<8x128xf32>
    %277 = vector.shape_cast %274 : vector<8x128xf32> to vector<1x8x128xf32>
    tpu.vector_store %arg9[%c5, %c0_59, %c0_60], %277 {strides = array<i32>} : memref<8x8x128xf32, #tpu.memory_space<vmem>>, vector<1x8x128xf32>,
    %c48 = arith.constant 48 : index
    %c0_61 = arith.constant 0 : index
    %278 = vector.load %arg13[%c48, %c0_61] : memref<64x512xf32, #tpu.memory_space<vmem>>, vector<8x512xf32>
    %279 = arith.truncf %253 : vector<8x128xf32> to vector<8x128xbf16>
    %cst_62 = arith.constant dense<0.000000e+00> : vector<8x512xf32>
    %280 = tpu.matmul %279, %11, %cst_62 {dimension_numbers = #tpu.dot_dimension_numbers<[1], [0], [0], [1], [0, 0, 1, 1], [], []>} : vector<8x128xbf16>, vector<128x512xbf16>, vector<8x512xf32> -> vector<8x512xf32>
    %281 = arith.addf %278, %280 : vector<8x512xf32>
    %282 = vector.extract_strided_slice %281 {offsets = [0, 0], sizes = [8, 384], strides = [1, 1]} : vector<8x512xf32> to vector<8x384xf32>
    %283 = arith.negf %282 : vector<8x384xf32>
    %284 = math.exp %283 : vector<8x384xf32>
    %cst_63 = arith.constant 1.000000e+00 : f32
    %285 = vector.broadcast %cst_63 : f32 to vector<8x384xf32>
    %286 = arith.addf %285, %284 : vector<8x384xf32>
    %287 = arith.divf %285, %286 : vector<8x384xf32>
    %288 = vector.extract_strided_slice %281 {offsets = [0, 384], sizes = [8, 128], strides = [1, 1]} : vector<8x512xf32> to vector<8x128xf32>
    %289 = math.tanh %288 : vector<8x128xf32>
    %290 = vector.extract_strided_slice %287 {offsets = [0, 128], sizes = [8, 128], strides = [1, 1]} : vector<8x384xf32> to vector<8x128xf32>
    %291 = arith.mulf %290, %250 : vector<8x128xf32>
    %292 = vector.extract_strided_slice %287 {offsets = [0, 0], sizes = [8, 128], strides = [1, 1]} : vector<8x384xf32> to vector<8x128xf32>
    %293 = arith.mulf %292, %289 : vector<8x128xf32>
    %294 = arith.addf %291, %293 : vector<8x128xf32>
    %295 = vector.extract_strided_slice %287 {offsets = [0, 256], sizes = [8, 128], strides = [1, 1]} : vector<8x384xf32> to vector<8x128xf32>
    %296 = math.tanh %294 : vector<8x128xf32>
    %297 = arith.mulf %295, %296 : vector<8x128xf32>
    %298 = tpu.concatenate %297, %274 in 1 : vector<8x128xf32>, vector<8x128xf32> -> vector<8x256xf32>
    %299 = arith.truncf %298 : vector<8x256xf32> to vector<8x256xbf16>
    %cst_64 = arith.constant dense<0.000000e+00> : vector<8x512xf32>
    %300 = tpu.matmul %299, %12, %cst_64 {dimension_numbers = #tpu.dot_dimension_numbers<[1], [0], [0], [1], [0, 0, 1, 1], [], []>} : vector<8x256xbf16>, vector<256x512xbf16>, vector<8x512xf32> -> vector<8x512xf32>
    %301 = vector.broadcast %13 : vector<1x512xf32> to vector<8x512xf32>
    %302 = arith.addf %300, %301 : vector<8x512xf32>
    %303 = vector.extract_strided_slice %302 {offsets = [0, 0], sizes = [8, 384], strides = [1, 1]} : vector<8x512xf32> to vector<8x384xf32>
    %304 = arith.negf %303 : vector<8x384xf32>
    %305 = math.exp %304 : vector<8x384xf32>
    %cst_65 = arith.constant 1.000000e+00 : f32
    %306 = vector.broadcast %cst_65 : f32 to vector<8x384xf32>
    %307 = arith.addf %306, %305 : vector<8x384xf32>
    %308 = arith.divf %306, %307 : vector<8x384xf32>
    %309 = vector.extract_strided_slice %302 {offsets = [0, 384], sizes = [8, 128], strides = [1, 1]} : vector<8x512xf32> to vector<8x128xf32>
    %310 = math.tanh %309 : vector<8x128xf32>
    %311 = vector.extract_strided_slice %308 {offsets = [0, 128], sizes = [8, 128], strides = [1, 1]} : vector<8x384xf32> to vector<8x128xf32>
    %312 = arith.mulf %311, %271 : vector<8x128xf32>
    %313 = vector.extract_strided_slice %308 {offsets = [0, 0], sizes = [8, 128], strides = [1, 1]} : vector<8x384xf32> to vector<8x128xf32>
    %314 = arith.mulf %313, %310 : vector<8x128xf32>
    %315 = arith.addf %312, %314 : vector<8x128xf32>
    %316 = vector.extract_strided_slice %308 {offsets = [0, 256], sizes = [8, 128], strides = [1, 1]} : vector<8x384xf32> to vector<8x128xf32>
    %317 = math.tanh %315 : vector<8x128xf32>
    %318 = arith.mulf %316, %317 : vector<8x128xf32>
    %c6 = arith.constant 6 : index
    %c0_66 = arith.constant 0 : index
    %c0_67 = arith.constant 0 : index
    %319 = vector.load %arg9[%c6, %c0_66, %c0_67] : memref<8x8x128xf32, #tpu.memory_space<vmem>>, vector<1x8x128xf32>
    %320 = vector.shape_cast %319 : vector<1x8x128xf32> to vector<8x128xf32>
    %321 = vector.shape_cast %318 : vector<8x128xf32> to vector<1x8x128xf32>
    tpu.vector_store %arg9[%c6, %c0_66, %c0_67], %321 {strides = array<i32>} : memref<8x8x128xf32, #tpu.memory_space<vmem>>, vector<1x8x128xf32>,
    %c56 = arith.constant 56 : index
    %c0_68 = arith.constant 0 : index
    %322 = vector.load %arg13[%c56, %c0_68] : memref<64x512xf32, #tpu.memory_space<vmem>>, vector<8x512xf32>
    %323 = arith.truncf %297 : vector<8x128xf32> to vector<8x128xbf16>
    %cst_69 = arith.constant dense<0.000000e+00> : vector<8x512xf32>
    %324 = tpu.matmul %323, %11, %cst_69 {dimension_numbers = #tpu.dot_dimension_numbers<[1], [0], [0], [1], [0, 0, 1, 1], [], []>} : vector<8x128xbf16>, vector<128x512xbf16>, vector<8x512xf32> -> vector<8x512xf32>
    %325 = arith.addf %322, %324 : vector<8x512xf32>
    %326 = vector.extract_strided_slice %325 {offsets = [0, 0], sizes = [8, 384], strides = [1, 1]} : vector<8x512xf32> to vector<8x384xf32>
    %327 = arith.negf %326 : vector<8x384xf32>
    %328 = math.exp %327 : vector<8x384xf32>
    %cst_70 = arith.constant 1.000000e+00 : f32
    %329 = vector.broadcast %cst_70 : f32 to vector<8x384xf32>
    %330 = arith.addf %329, %328 : vector<8x384xf32>
    %331 = arith.divf %329, %330 : vector<8x384xf32>
    %332 = vector.extract_strided_slice %325 {offsets = [0, 384], sizes = [8, 128], strides = [1, 1]} : vector<8x512xf32> to vector<8x128xf32>
    %333 = math.tanh %332 : vector<8x128xf32>
    %334 = vector.extract_strided_slice %331 {offsets = [0, 128], sizes = [8, 128], strides = [1, 1]} : vector<8x384xf32> to vector<8x128xf32>
    %335 = arith.mulf %334, %294 : vector<8x128xf32>
    %336 = vector.extract_strided_slice %331 {offsets = [0, 0], sizes = [8, 128], strides = [1, 1]} : vector<8x384xf32> to vector<8x128xf32>
    %337 = arith.mulf %336, %333 : vector<8x128xf32>
    %338 = arith.addf %335, %337 : vector<8x128xf32>
    %339 = vector.extract_strided_slice %331 {offsets = [0, 256], sizes = [8, 128], strides = [1, 1]} : vector<8x384xf32> to vector<8x128xf32>
    %340 = math.tanh %338 : vector<8x128xf32>
    %341 = arith.mulf %339, %340 : vector<8x128xf32>
    %342 = tpu.concatenate %341, %318 in 1 : vector<8x128xf32>, vector<8x128xf32> -> vector<8x256xf32>
    %343 = arith.truncf %342 : vector<8x256xf32> to vector<8x256xbf16>
    %cst_71 = arith.constant dense<0.000000e+00> : vector<8x512xf32>
    %344 = tpu.matmul %343, %12, %cst_71 {dimension_numbers = #tpu.dot_dimension_numbers<[1], [0], [0], [1], [0, 0, 1, 1], [], []>} : vector<8x256xbf16>, vector<256x512xbf16>, vector<8x512xf32> -> vector<8x512xf32>
    %345 = vector.broadcast %13 : vector<1x512xf32> to vector<8x512xf32>
    %346 = arith.addf %344, %345 : vector<8x512xf32>
    %347 = vector.extract_strided_slice %346 {offsets = [0, 0], sizes = [8, 384], strides = [1, 1]} : vector<8x512xf32> to vector<8x384xf32>
    %348 = arith.negf %347 : vector<8x384xf32>
    %349 = math.exp %348 : vector<8x384xf32>
    %cst_72 = arith.constant 1.000000e+00 : f32
    %350 = vector.broadcast %cst_72 : f32 to vector<8x384xf32>
    %351 = arith.addf %350, %349 : vector<8x384xf32>
    %352 = arith.divf %350, %351 : vector<8x384xf32>
    %353 = vector.extract_strided_slice %346 {offsets = [0, 384], sizes = [8, 128], strides = [1, 1]} : vector<8x512xf32> to vector<8x128xf32>
    %354 = math.tanh %353 : vector<8x128xf32>
    %355 = vector.extract_strided_slice %352 {offsets = [0, 128], sizes = [8, 128], strides = [1, 1]} : vector<8x384xf32> to vector<8x128xf32>
    %356 = arith.mulf %355, %315 : vector<8x128xf32>
    %357 = vector.extract_strided_slice %352 {offsets = [0, 0], sizes = [8, 128], strides = [1, 1]} : vector<8x384xf32> to vector<8x128xf32>
    %358 = arith.mulf %357, %354 : vector<8x128xf32>
    %359 = arith.addf %356, %358 : vector<8x128xf32>
    %360 = vector.extract_strided_slice %352 {offsets = [0, 256], sizes = [8, 128], strides = [1, 1]} : vector<8x384xf32> to vector<8x128xf32>
    %361 = math.tanh %359 : vector<8x128xf32>
    %362 = arith.mulf %360, %361 : vector<8x128xf32>
    %c7 = arith.constant 7 : index
    %c0_73 = arith.constant 0 : index
    %c0_74 = arith.constant 0 : index
    %363 = vector.load %arg9[%c7, %c0_73, %c0_74] : memref<8x8x128xf32, #tpu.memory_space<vmem>>, vector<1x8x128xf32>
    %364 = vector.shape_cast %363 : vector<1x8x128xf32> to vector<8x128xf32>
    %365 = vector.shape_cast %362 : vector<8x128xf32> to vector<1x8x128xf32>
    tpu.vector_store %arg9[%c7, %c0_73, %c0_74], %365 {strides = array<i32>} : memref<8x8x128xf32, #tpu.memory_space<vmem>>, vector<1x8x128xf32>,
    %c0_75 = arith.constant 0 : index
    %c0_76 = arith.constant 0 : index
    %c0_77 = arith.constant 0 : index
    %366 = vector.load %arg10[%c0_75, %c0_76, %c0_77] : memref<2x8x128xf32, #tpu.memory_space<vmem>>, vector<1x8x128xf32>
    %367 = vector.shape_cast %366 : vector<1x8x128xf32> to vector<8x128xf32>
    %368 = vector.shape_cast %341 : vector<8x128xf32> to vector<1x8x128xf32>
    tpu.vector_store %arg10[%c0_75, %c0_76, %c0_77], %368 {strides = array<i32>} : memref<2x8x128xf32, #tpu.memory_space<vmem>>, vector<1x8x128xf32>,
    %c0_78 = arith.constant 0 : index
    %c0_79 = arith.constant 0 : index
    %c0_80 = arith.constant 0 : index
    %369 = vector.load %arg11[%c0_78, %c0_79, %c0_80] : memref<2x8x128xf32, #tpu.memory_space<vmem>>, vector<1x8x128xf32>
    %370 = vector.shape_cast %369 : vector<1x8x128xf32> to vector<8x128xf32>
    %371 = vector.shape_cast %338 : vector<8x128xf32> to vector<1x8x128xf32>
    tpu.vector_store %arg11[%c0_78, %c0_79, %c0_80], %371 {strides = array<i32>} : memref<2x8x128xf32, #tpu.memory_space<vmem>>, vector<1x8x128xf32>,
    %c1_81 = arith.constant 1 : index
    %c0_82 = arith.constant 0 : index
    %c0_83 = arith.constant 0 : index
    %372 = vector.load %arg10[%c1_81, %c0_82, %c0_83] : memref<2x8x128xf32, #tpu.memory_space<vmem>>, vector<1x8x128xf32>
    %373 = vector.shape_cast %372 : vector<1x8x128xf32> to vector<8x128xf32>
    %374 = vector.shape_cast %362 : vector<8x128xf32> to vector<1x8x128xf32>
    tpu.vector_store %arg10[%c1_81, %c0_82, %c0_83], %374 {strides = array<i32>} : memref<2x8x128xf32, #tpu.memory_space<vmem>>, vector<1x8x128xf32>,
    %c1_84 = arith.constant 1 : index
    %c0_85 = arith.constant 0 : index
    %c0_86 = arith.constant 0 : index
    %375 = vector.load %arg11[%c1_84, %c0_85, %c0_86] : memref<2x8x128xf32, #tpu.memory_space<vmem>>, vector<1x8x128xf32>
    %376 = vector.shape_cast %375 : vector<1x8x128xf32> to vector<8x128xf32>
    %377 = vector.shape_cast %359 : vector<8x128xf32> to vector<1x8x128xf32>
    tpu.vector_store %arg11[%c1_84, %c0_85, %c0_86], %377 {strides = array<i32>} : memref<2x8x128xf32, #tpu.memory_space<vmem>>, vector<1x8x128xf32>,
    %c0_87 = arith.constant 0 : index
    %c0_88 = arith.constant 0 : index
    %378 = vector.load %arg7[%c0_87, %c0_88] : memref<128x128xf32, #tpu.memory_space<vmem>>, vector<128x128xf32>
    %cst_89 = arith.constant dense<0.000000e+00> : vector<8x128xf32>
    %379 = tpu.matmul %362, %378, %cst_89 {dimension_numbers = #tpu.dot_dimension_numbers<[1], [0], [0], [1], [0, 0, 1, 1], [], []>} : vector<8x128xf32>, vector<128x128xf32>, vector<8x128xf32> -> vector<8x128xf32>
    %c0_90 = arith.constant 0 : index
    %c0_91 = arith.constant 0 : index
    %380 = vector.load %arg8[%c0_90, %c0_91] : memref<1x128xf32, #tpu.memory_space<vmem>>, vector<1x128xf32>
    %381 = vector.broadcast %380 : vector<1x128xf32> to vector<8x128xf32>
    %382 = arith.addf %379, %381 : vector<8x128xf32>
    %c0_92 = arith.constant 0 : index
    %c0_93 = arith.constant 0 : index
    %383 = vector.load %arg12[%c0_92, %c0_93] : memref<8x128xf32, #tpu.memory_space<vmem>>, vector<8x128xf32>
    tpu.vector_store %arg12[%c0_92, %c0_93], %382 {strides = array<i32>} : memref<8x128xf32, #tpu.memory_space<vmem>>, vector<8x128xf32>,
    return
  }
  func.func @transform_0(%arg0: i32) -> (i32, i32) {
    %c0_i32 = arith.constant 0 : i32
    %c0_i32_0 = arith.constant 0 : i32
    %c0_i32_1 = arith.constant 0 : i32
    return %c0_i32, %c0_i32_0 : i32, i32
  }
  func.func @transform_1(%arg0: i32) -> (i32, i32) {
    %c0_i32 = arith.constant 0 : i32
    %c0_i32_0 = arith.constant 0 : i32
    %c0_i32_1 = arith.constant 0 : i32
    return %c0_i32, %c0_i32_0 : i32, i32
  }
  func.func @transform_2(%arg0: i32) -> (i32, i32) {
    %c0_i32 = arith.constant 0 : i32
    %c0_i32_0 = arith.constant 0 : i32
    %c0_i32_1 = arith.constant 0 : i32
    return %c0_i32, %c0_i32_0 : i32, i32
  }
  func.func @transform_3(%arg0: i32) -> (i32, i32) {
    %c0_i32 = arith.constant 0 : i32
    %c0_i32_0 = arith.constant 0 : i32
    %c0_i32_1 = arith.constant 0 : i32
    return %c0_i32, %c0_i32_0 : i32, i32
  }
  func.func @transform_4(%arg0: i32) -> (i32, i32) {
    %c0_i32 = arith.constant 0 : i32
    %c0_i32_0 = arith.constant 0 : i32
    %c0_i32_1 = arith.constant 0 : i32
    return %c0_i32, %c0_i32_0 : i32, i32
  }
  func.func @transform_5(%arg0: i32) -> (i32, i32) {
    %c0_i32 = arith.constant 0 : i32
    %c0_i32_0 = arith.constant 0 : i32
    %c0_i32_1 = arith.constant 0 : i32
    return %c0_i32, %c0_i32_0 : i32, i32
  }
  func.func @transform_6(%arg0: i32) -> (i32, i32) {
    %c0_i32 = arith.constant 0 : i32
    %c0_i32_0 = arith.constant 0 : i32
    %c0_i32_1 = arith.constant 0 : i32
    return %c0_i32, %c0_i32_0 : i32, i32
  }
  func.func @transform_7(%arg0: i32) -> (i32, i32) {
    %c0_i32 = arith.constant 0 : i32
    %c0_i32_0 = arith.constant 0 : i32
    %c0_i32_1 = arith.constant 0 : i32
    return %c0_i32, %c0_i32_0 : i32, i32
  }
  func.func @transform_8(%arg0: i32) -> (i32, i32, i32) {
    %c0_i32 = arith.constant 0 : i32
    %c0_i32_0 = arith.constant 0 : i32
    %c0_i32_1 = arith.constant 0 : i32
    %c0_i32_2 = arith.constant 0 : i32
    return %c0_i32, %c0_i32_0, %c0_i32_1 : i32, i32, i32
  }
  func.func @transform_9(%arg0: i32) -> (i32, i32, i32) {
    %c0_i32 = arith.constant 0 : i32
    %c0_i32_0 = arith.constant 0 : i32
    %c0_i32_1 = arith.constant 0 : i32
    %c0_i32_2 = arith.constant 0 : i32
    return %c0_i32, %c0_i32_0, %c0_i32_1 : i32, i32, i32
  }
  func.func @transform_10(%arg0: i32) -> (i32, i32, i32) {
    %c0_i32 = arith.constant 0 : i32
    %c0_i32_0 = arith.constant 0 : i32
    %c0_i32_1 = arith.constant 0 : i32
    %c0_i32_2 = arith.constant 0 : i32
    return %c0_i32, %c0_i32_0, %c0_i32_1 : i32, i32, i32
  }
  func.func @transform_11(%arg0: i32) -> (i32, i32) {
    %c0_i32 = arith.constant 0 : i32
    %c0_i32_0 = arith.constant 0 : i32
    %c0_i32_1 = arith.constant 0 : i32
    return %c0_i32, %c0_i32_0 : i32, i32
  }
}

</mosaic_0001>

<llo_original>
// kernel: tpu_custom_call.1
$region0: #{tpu_custom_call.1}
  #allocation0 [shape = 'u32[]', space=smem, size = 0x4, offset = 0x4, fixed_abs, tag = 'smem constant byte address 0x4 - core index']
  #allocation1 [shape = 'u32[144,128]{1,0:T(1,128)}', space=vmem, size = 0x12000, scoped, tag = 'internal scratch']
  #allocation2 [shape = 'f32[64,512]{1,0:T(8,128)}', space=vmem, size = 0x20000, scoped, tag = 'scratch operand']
  %s0 = inlined_call_operand.hbm [shape: bf16[64,128], index: 0, kind: input, shape index: {}]
  %s1 = inlined_call_operand.hbm [shape: bf16[128,512], index: 1, kind: input, shape index: {}]
  %s2 = inlined_call_operand.hbm [shape: bf16[128,512], index: 2, kind: input, shape index: {}]
  %s3 = inlined_call_operand.hbm [shape: f32[1,512], index: 3, kind: input, shape index: {}]
  %s4 = inlined_call_operand.hbm [shape: bf16[256,512], index: 4, kind: input, shape index: {}]
  %s5 = inlined_call_operand.hbm [shape: f32[1,512], index: 5, kind: input, shape index: {}]
  %s6 = inlined_call_operand.hbm [shape: f32[128,128], index: 6, kind: input, shape index: {}]
  %s7 = inlined_call_operand.hbm [shape: f32[1,128], index: 7, kind: input, shape index: {}]
  %s8 = inlined_call_operand.hbm [shape: f32[8,8,128], index: 8, kind: output, shape index: {0}]
  %s9 = inlined_call_operand.hbm [shape: f32[2,8,128], index: 9, kind: output, shape index: {1}]
  %s10 = inlined_call_operand.hbm [shape: f32[2,8,128], index: 10, kind: output, shape index: {2}]
  %s11 = inlined_call_operand.hbm [shape: f32[8,128], index: 11, kind: output, shape index: {3}]
  %12 = xla_tuple %s8, %s9, %s10, %s11
  %s13 = sld [smem:[#allocation0]]
  $region98: #{tpu_custom_call.1} parent=0
    _
  %s15 = ssub.s32 1, %s13
  %s16 = scalar_select 0, %s15, %s13
  $region1: #{tpu_custom_call.1} parent=0
    #allocation3 [shape = 'u8[16384]{0}', space=vmem, size = 0x4000, scoped, tag = 'input window, operand 0, single buffered']
    #allocation4 [shape = 's32[1]{0}', space=sflag, size = 0x4, scoped, tag = 'scoped memory for tpu_custom_call.1']
    #allocation5 [shape = 's32[1]{0}', space=sflag, size = 0x4, scoped, tag = 'scoped memory for tpu_custom_call.1']
    #allocation6 [shape = 'u8[131072]{0}', space=vmem, size = 0x20000, scoped, tag = 'input window, operand 1, single buffered']
    #allocation7 [shape = 's32[1]{0}', space=sflag, size = 0x4, scoped, tag = 'scoped memory for tpu_custom_call.1']
    #allocation8 [shape = 'u8[131072]{0}', space=vmem, size = 0x20000, scoped, tag = 'input window, operand 2, single buffered']
    #allocation9 [shape = 'u8[2048]{0}', space=vmem, size = 0x800, scoped, tag = 'input window, operand 3, single buffered']
    #allocation10 [shape = 's32[1]{0}', space=sflag, size = 0x4, scoped, tag = 'scoped memory for tpu_custom_call.1']
    #allocation11 [shape = 'u8[262144]{0}', space=vmem, size = 0x40000, scoped, tag = 'input window, operand 4, single buffered']
    #allocation12 [shape = 'u8[2048]{0}', space=vmem, size = 0x800, scoped, tag = 'input window, operand 5, single buffered']
    #allocation13 [shape = 's32[1]{0}', space=sflag, size = 0x4, scoped, tag = 'scoped memory for tpu_custom_call.1']
    #allocation14 [shape = 'u8[65536]{0}', space=vmem, size = 0x10000, scoped, tag = 'input window, operand 6, single buffered']
    #allocation15 [shape = 'u8[512]{0}', space=vmem, size = 0x400, scoped, tag = 'input window, operand 7, single buffered']
    #allocation16 [shape = 's32[1]{0}', space=sflag, size = 0x4, scoped, tag = 'scoped memory for tpu_custom_call.1']
    #allocation17 [shape = 'u8[32768]{0}', space=vmem, size = 0x8000, scoped, tag = 'output window, operand 0, single buffered']
    #allocation18 [shape = 'u8[8192]{0}', space=vmem, size = 0x2000, scoped, tag = 'output window, operand 1, single buffered']
    #allocation19 [shape = 's32[1]{0}', space=sflag, size = 0x4, scoped, tag = 'scoped memory for tpu_custom_call.1']
    #allocation20 [shape = 'u8[8192]{0}', space=vmem, size = 0x2000, scoped, tag = 'output window, operand 2, single buffered']
    #allocation21 [shape = 'u8[4096]{0}', space=vmem, size = 0x1000, scoped, tag = 'output window, operand 3, single buffered']
    #allocation22 [shape = 's32[1]{0}', space=sflag, size = 0x4, scoped, tag = 'scoped memory for tpu_custom_call.1']
    %17 = vsyncpa [#allocation4], 0
    %18 = vsyncpa [#allocation7], 0
    %19 = vsyncpa [#allocation10], 0
    %20 = vsyncpa [#allocation13], 0
    %21 = vsyncpa [#allocation16], 0
    %22 = vsyncpa [#allocation5], 0
    %23 = vsyncpa [#allocation19], 0
    %24 = vsyncpa [#allocation22], 0
    // Predicated region
    $region2: #{tpu_custom_call.1} parent=1 // pred_check
      _
    $region3: #{tpu_custom_call.1} parent=1 // pred_check_branch
      %26 = sbr.rel (0) target = $region5
    $region4: #{tpu_custom_call.1} parent=1 // pred_region
      %s28 = ssub.s32 512, 512
      %29 = vsyncadd [#allocation4], %s28
      %s30 = sshll.u32 [#allocation3], 4
      %s31 = int_to_ptr.vmem [resolvable:$true] %s30
      %36 = dma.hbm_to_vmem [thread:$0]  %s0, 512, %s31, [#allocation4], 64, 64, 4
    $region5: #{tpu_custom_call.1} parent=1 // pred_fallthru
      _
    // Predicated region
    $region6: #{tpu_custom_call.1} parent=1 // pred_check
      _
    $region7: #{tpu_custom_call.1} parent=1 // pred_check_branch
      %38 = sbr.rel (0) target = $region9
    $region8: #{tpu_custom_call.1} parent=1 // pred_region
      %s40 = ssub.s32 4096, 4096
      %41 = vsyncadd [#allocation7], %s40
      %s42 = sshll.u32 [#allocation6], 4
      %s43 = int_to_ptr.vmem [resolvable:$true] %s42
      %48 = dma.hbm_to_vmem [thread:$0]  %s1, 4096, %s43, [#allocation7], 256, 256, 16
    $region9: #{tpu_custom_call.1} parent=1 // pred_fallthru
      _
    // Predicated region
    $region10: #{tpu_custom_call.1} parent=1 // pred_check
      _
    $region11: #{tpu_custom_call.1} parent=1 // pred_check_branch
      %50 = sbr.rel (0) target = $region13
    $region12: #{tpu_custom_call.1} parent=1 // pred_region
      %s52 = ssub.s32 4096, 4096
      %53 = vsyncadd [#allocation7], %s52
      %s54 = sshll.u32 [#allocation8], 4
      %s55 = int_to_ptr.vmem [resolvable:$true] %s54
      %60 = dma.hbm_to_vmem [thread:$0]  %s2, 4096, %s55, [#allocation7], 256, 256, 16
    $region13: #{tpu_custom_call.1} parent=1 // pred_fallthru
      _
    // Predicated region
    $region14: #{tpu_custom_call.1} parent=1 // pred_check
      _
    $region15: #{tpu_custom_call.1} parent=1 // pred_check_branch
      %62 = sbr.rel (0) target = $region17
    $region16: #{tpu_custom_call.1} parent=1 // pred_region
      %s64 = ssub.s32 64, 64
      %65 = vsyncadd [#allocation10], %s64
      %s67 = sshll.u32 [#allocation9], 4
      %s68 = int_to_ptr.vmem [resolvable:$true] %s67
      %70 = dma.hbm_to_vmem [thread:$0]  %s3, 64, %s68, [#allocation10]
    $region17: #{tpu_custom_call.1} parent=1 // pred_fallthru
      _
    // Predicated region
    $region18: #{tpu_custom_call.1} parent=1 // pred_check
      _
    $region19: #{tpu_custom_call.1} parent=1 // pred_check_branch
      %72 = sbr.rel (0) target = $region21
    $region20: #{tpu_custom_call.1} parent=1 // pred_region
      %s74 = ssub.s32 8192, 8192
      %75 = vsyncadd [#allocation10], %s74
      %s76 = sshll.u32 [#allocation11], 4
      %s77 = int_to_ptr.vmem [resolvable:$true] %s76
      %82 = dma.hbm_to_vmem [thread:$0]  %s4, 8192, %s77, [#allocation10], 256, 256, 16
    $region21: #{tpu_custom_call.1} parent=1 // pred_fallthru
      _
    // Predicated region
    $region22: #{tpu_custom_call.1} parent=1 // pred_check
      _
    $region23: #{tpu_custom_call.1} parent=1 // pred_check_branch
      %84 = sbr.rel (0) target = $region25
    $region24: #{tpu_custom_call.1} parent=1 // pred_region
      %s86 = ssub.s32 64, 64
      %87 = vsyncadd [#allocation13], %s86
      %s89 = sshll.u32 [#allocation12], 4
      %s90 = int_to_ptr.vmem [resolvable:$true] %s89
      %92 = dma.hbm_to_vmem [thread:$0]  %s5, 64, %s90, [#allocation13]
    $region25: #{tpu_custom_call.1} parent=1 // pred_fallthru
      _
    // Predicated region
    $region26: #{tpu_custom_call.1} parent=1 // pred_check
      _
    $region27: #{tpu_custom_call.1} parent=1 // pred_check_branch
      %94 = sbr.rel (0) target = $region29
    $region28: #{tpu_custom_call.1} parent=1 // pred_region
      %s96 = ssub.s32 2048, 2048
      %97 = vsyncadd [#allocation13], %s96
      %s98 = sshll.u32 [#allocation14], 4
      %s99 = int_to_ptr.vmem [resolvable:$true] %s98
      %104 = dma.hbm_to_vmem [thread:$0]  %s6, 2048, %s99, [#allocation13], 128, 128, 8
    $region29: #{tpu_custom_call.1} parent=1 // pred_fallthru
      _
    // Predicated region
    $region30: #{tpu_custom_call.1} parent=1 // pred_check
      _
    $region31: #{tpu_custom_call.1} parent=1 // pred_check_branch
      %106 = sbr.rel (0) target = $region33
    $region32: #{tpu_custom_call.1} parent=1 // pred_region
      %s108 = ssub.s32 16, 16
      %109 = vsyncadd [#allocation16], %s108
      %s111 = sshll.u32 [#allocation15], 4
      %s112 = int_to_ptr.vmem [resolvable:$true] %s111
      %114 = dma.hbm_to_vmem [thread:$0]  %s7, 16, %s112, [#allocation16]
    $region33: #{tpu_custom_call.1} parent=1 // pred_fallthru
      _
    // Predicated region
    $region34: #{tpu_custom_call.1} parent=1 // pred_check
      _
    $region35: #{tpu_custom_call.1} parent=1 // pred_check_branch
      %116 = sbr.rel (0) target = $region37
    $region36: #{tpu_custom_call.1} parent=1 // pred_region
      %117 = dma.done [#allocation4], 512
    $region37: #{tpu_custom_call.1} parent=1 // pred_fallthru
      _
    // Predicated region
    $region38: #{tpu_custom_call.1} parent=1 // pred_check
      _
    $region39: #{tpu_custom_call.1} parent=1 // pred_check_branch
      %119 = sbr.rel (0) target = $region41
    $region40: #{tpu_custom_call.1} parent=1 // pred_region
      %120 = dma.done [#allocation7], 4096
    $region41: #{tpu_custom_call.1} parent=1 // pred_fallthru
      _
    // Predicated region
    $region42: #{tpu_custom_call.1} parent=1 // pred_check
      _
    $region43: #{tpu_custom_call.1} parent=1 // pred_check_branch
      %122 = sbr.rel (0) target = $region45
    $region44: #{tpu_custom_call.1} parent=1 // pred_region
      %123 = dma.done [#allocation7], 4096
    $region45: #{tpu_custom_call.1} parent=1 // pred_fallthru
      _
    // Predicated region
    $region46: #{tpu_custom_call.1} parent=1 // pred_check
      _
    $region47: #{tpu_custom_call.1} parent=1 // pred_check_branch
      %125 = sbr.rel (0) target = $region49
    $region48: #{tpu_custom_call.1} parent=1 // pred_region
      %126 = dma.done [#allocation10], 64
    $region49: #{tpu_custom_call.1} parent=1 // pred_fallthru
      _
    // Predicated region
    $region50: #{tpu_custom_call.1} parent=1 // pred_check
      _
    $region51: #{tpu_custom_call.1} parent=1 // pred_check_branch
      %128 = sbr.rel (0) target = $region53
    $region52: #{tpu_custom_call.1} parent=1 // pred_region
      %129 = dma.done [#allocation10], 8192
    $region53: #{tpu_custom_call.1} parent=1 // pred_fallthru
      _
    // Predicated region
    $region54: #{tpu_custom_call.1} parent=1 // pred_check
      _
    $region55: #{tpu_custom_call.1} parent=1 // pred_check_branch
      %131 = sbr.rel (0) target = $region57
    $region56: #{tpu_custom_call.1} parent=1 // pred_region
      %132 = dma.done [#allocation13], 64
    $region57: #{tpu_custom_call.1} parent=1 // pred_fallthru
      _
    // Predicated region
    $region58: #{tpu_custom_call.1} parent=1 // pred_check
      _
    $region59: #{tpu_custom_call.1} parent=1 // pred_check_branch
      %134 = sbr.rel (0) target = $region61
    $region60: #{tpu_custom_call.1} parent=1 // pred_region
      %135 = dma.done [#allocation13], 2048
    $region61: #{tpu_custom_call.1} parent=1 // pred_fallthru
      _
    // Predicated region
    $region62: #{tpu_custom_call.1} parent=1 // pred_check
      _
    $region63: #{tpu_custom_call.1} parent=1 // pred_check_branch
      %137 = sbr.rel (0) target = $region65
    $region64: #{tpu_custom_call.1} parent=1 // pred_region
      %138 = dma.done [#allocation16], 16
    $region65: #{tpu_custom_call.1} parent=1 // pred_fallthru
      _
    %v140 = vld [vmem:[#allocation3] sm:$0xf]
    %v141 = vld [vmem:[#allocation3 + $0x4] sm:$0xf]
    %v142 = vld [vmem:[#allocation3 + $0x8] sm:$0xf]
    %v143 = vld [vmem:[#allocation3 + $0xc] sm:$0xf]
    %v144 = vld [vmem:[#allocation3 + $0x10] sm:$0xf]
    %v145 = vld [vmem:[#allocation3 + $0x14] sm:$0xf]
    %v146 = vld [vmem:[#allocation3 + $0x18] sm:$0xf]
    %v147 = vld [vmem:[#allocation3 + $0x1c] sm:$0xf]
    %v148 = vld [vmem:[#allocation6] sm:$0xff]
    %v149 = vld [vmem:[#allocation6 + $0x8] sm:$0xff]
    %v150 = vld [vmem:[#allocation6 + $0x10] sm:$0xff]
    %v151 = vld [vmem:[#allocation6 + $0x18] sm:$0xff]
    %v152 = vld [vmem:[#allocation6 + $0x20] sm:$0xff]
    %v153 = vld [vmem:[#allocation6 + $0x28] sm:$0xff]
    %v154 = vld [vmem:[#allocation6 + $0x30] sm:$0xff]
    %v155 = vld [vmem:[#allocation6 + $0x38] sm:$0xff]
    %v156 = vld [vmem:[#allocation6 + $0x40] sm:$0xff]
    %v157 = vld [vmem:[#allocation6 + $0x48] sm:$0xff]
    %v158 = vld [vmem:[#allocation6 + $0x50] sm:$0xff]
    %v159 = vld [vmem:[#allocation6 + $0x58] sm:$0xff]
    %v160 = vld [vmem:[#allocation6 + $0x60] sm:$0xff]
    %v161 = vld [vmem:[#allocation6 + $0x68] sm:$0xff]
    %v162 = vld [vmem:[#allocation6 + $0x70] sm:$0xff]
    %v163 = vld [vmem:[#allocation6 + $0x78] sm:$0xff]
    %v164 = vld [vmem:[#allocation6 + $0x80] sm:$0xff]
    %v165 = vld [vmem:[#allocation6 + $0x88] sm:$0xff]
    %v166 = vld [vmem:[#allocation6 + $0x90] sm:$0xff]
    %v167 = vld [vmem:[#allocation6 + $0x98] sm:$0xff]
    %v168 = vld [vmem:[#allocation6 + $0xa0] sm:$0xff]
    %v169 = vld [vmem:[#allocation6 + $0xa8] sm:$0xff]
    %v170 = vld [vmem:[#allocation6 + $0xb0] sm:$0xff]
    %v171 = vld [vmem:[#allocation6 + $0xb8] sm:$0xff]
    %v172 = vld [vmem:[#allocation6 + $0xc0] sm:$0xff]
    %v173 = vld [vmem:[#allocation6 + $0xc8] sm:$0xff]
    %v174 = vld [vmem:[#allocation6 + $0xd0] sm:$0xff]
    %v175 = vld [vmem:[#allocation6 + $0xd8] sm:$0xff]
    %v176 = vld [vmem:[#allocation6 + $0xe0] sm:$0xff]
    %v177 = vld [vmem:[#allocation6 + $0xe8] sm:$0xff]
    %v178 = vld [vmem:[#allocation6 + $0xf0] sm:$0xff]
    %v179 = vld [vmem:[#allocation6 + $0xf8] sm:$0xff]
    %v180 = vld [vmem:[#allocation9] sm:$0xf]
    %v182 = vlaneseq
    %v183 = vshrl.u32 %v182, 7
    %v184 = vsub.s32 0, %v183
    %v185 = vrot.slane %v180, %v184
    %v186 = vlaneseq
    %v187 = vshrl.u32 %v186, 7
    %v188 = vsub.s32 1, %v187
    %v189 = vrot.slane %v180, %v188
    %v190 = vlaneseq
    %v191 = vshrl.u32 %v190, 7
    %v192 = vsub.s32 2, %v191
    %v193 = vrot.slane %v180, %v192
    %v194 = vlaneseq
    %v195 = vshrl.u32 %v194, 7
    %v196 = vsub.s32 3, %v195
    %v197 = vrot.slane %v180, %v196
    %v210 = vunpack.c.l.b16 %v140
    %v211 = vunpack.c.l.b16 %v141
    %v212 = vunpack.c.l.b16 %v142
    %v213 = vunpack.c.l.b16 %v143
    %v214 = vunpack.c.l.b16 %v144
    %v215 = vunpack.c.l.b16 %v145
    %v216 = vunpack.c.l.b16 %v146
    %v217 = vunpack.c.l.b16 %v147
    %v218 = vpack.c.b16 %v211, %v210
    %v219 = vpack.c.b16 %v213, %v212
    %v220 = vpack.c.b16 %v215, %v214
    %v221 = vpack.c.b16 %v217, %v216
    %v258 = vunpack.c.l.b16 %v148
    %v259 = vunpack.c.h.b16 %v148
    %v260 = vunpack.c.l.b16 %v149
    %v261 = vunpack.c.h.b16 %v149
    %v262 = vunpack.c.l.b16 %v150
    %v263 = vunpack.c.h.b16 %v150
    %v264 = vunpack.c.l.b16 %v151
    %v265 = vunpack.c.h.b16 %v151
    %v266 = vunpack.c.l.b16 %v152
    %v267 = vunpack.c.h.b16 %v152
    %v268 = vunpack.c.l.b16 %v153
    %v269 = vunpack.c.h.b16 %v153
    %v270 = vunpack.c.l.b16 %v154
    %v271 = vunpack.c.h.b16 %v154
    %v272 = vunpack.c.l.b16 %v155
    %v273 = vunpack.c.h.b16 %v155
    %v274 = vunpack.c.l.b16 %v156
    %v275 = vunpack.c.h.b16 %v156
    %v276 = vunpack.c.l.b16 %v157
    %v277 = vunpack.c.h.b16 %v157
    %v278 = vunpack.c.l.b16 %v158
    %v279 = vunpack.c.h.b16 %v158
    %v280 = vunpack.c.l.b16 %v159
    %v281 = vunpack.c.h.b16 %v159
    %v282 = vunpack.c.l.b16 %v160
    %v283 = vunpack.c.h.b16 %v160
    %v284 = vunpack.c.l.b16 %v161
    %v285 = vunpack.c.h.b16 %v161
    %v286 = vunpack.c.l.b16 %v162
    %v287 = vunpack.c.h.b16 %v162
    %v288 = vunpack.c.l.b16 %v163
    %v289 = vunpack.c.h.b16 %v163
    %v290 = vunpack.c.l.b16 %v164
    %v291 = vunpack.c.h.b16 %v164
    %v292 = vunpack.c.l.b16 %v165
    %v293 = vunpack.c.h.b16 %v165
    %v294 = vunpack.c.l.b16 %v166
    %v295 = vunpack.c.h.b16 %v166
    %v296 = vunpack.c.l.b16 %v167
    %v297 = vunpack.c.h.b16 %v167
    %v298 = vunpack.c.l.b16 %v168
    %v299 = vunpack.c.h.b16 %v168
    %v300 = vunpack.c.l.b16 %v169
    %v301 = vunpack.c.h.b16 %v169
    %v302 = vunpack.c.l.b16 %v170
    %v303 = vunpack.c.h.b16 %v170
    %v304 = vunpack.c.l.b16 %v171
    %v305 = vunpack.c.h.b16 %v171
    %v306 = vunpack.c.l.b16 %v172
    %v307 = vunpack.c.h.b16 %v172
    %v308 = vunpack.c.l.b16 %v173
    %v309 = vunpack.c.h.b16 %v173
    %v310 = vunpack.c.l.b16 %v174
    %v311 = vunpack.c.h.b16 %v174
    %v312 = vunpack.c.l.b16 %v175
    %v313 = vunpack.c.h.b16 %v175
    %v314 = vunpack.c.l.b16 %v176
    %v315 = vunpack.c.h.b16 %v176
    %v316 = vunpack.c.l.b16 %v177
    %v317 = vunpack.c.h.b16 %v177
    %v318 = vunpack.c.l.b16 %v178
    %v319 = vunpack.c.h.b16 %v178
    %v320 = vunpack.c.l.b16 %v179
    %v321 = vunpack.c.h.b16 %v179
    %v322 = vpack.c.b16 %v262, %v258
    %v323 = vpack.c.b16 %v263, %v259
    %v324 = vpack.c.b16 %v264, %v260
    %v325 = vpack.c.b16 %v265, %v261
    %v326 = vpack.c.b16 %v270, %v266
    %v327 = vpack.c.b16 %v271, %v267
    %v328 = vpack.c.b16 %v272, %v268
    %v329 = vpack.c.b16 %v273, %v269
    %v330 = vpack.c.b16 %v278, %v274
    %v331 = vpack.c.b16 %v279, %v275
    %v332 = vpack.c.b16 %v280, %v276
    %v333 = vpack.c.b16 %v281, %v277
    %v334 = vpack.c.b16 %v286, %v282
    %v335 = vpack.c.b16 %v287, %v283
    %v336 = vpack.c.b16 %v288, %v284
    %v337 = vpack.c.b16 %v289, %v285
    %v338 = vpack.c.b16 %v294, %v290
    %v339 = vpack.c.b16 %v295, %v291
    %v340 = vpack.c.b16 %v296, %v292
    %v341 = vpack.c.b16 %v297, %v293
    %v342 = vpack.c.b16 %v302, %v298
    %v343 = vpack.c.b16 %v303, %v299
    %v344 = vpack.c.b16 %v304, %v300
    %v345 = vpack.c.b16 %v305, %v301
    %v346 = vpack.c.b16 %v310, %v306
    %v347 = vpack.c.b16 %v311, %v307
    %v348 = vpack.c.b16 %v312, %v308
    %v349 = vpack.c.b16 %v313, %v309
    %v350 = vpack.c.b16 %v318, %v314
    %v351 = vpack.c.b16 %v319, %v315
    %v352 = vpack.c.b16 %v320, %v316
    %v353 = vpack.c.b16 %v321, %v317
    %386 = vmatprep.subr.bf16.mxu0 %v323
    %387 = vmatpush1.bf16.msra.mxu0 %v322
    %388 = vmatprep.subr.bf16.mxu0 %v327
    %389 = vmatpush1.bf16.msra.mxu0 %v326
    %390 = vmatprep.subr.bf16.mxu0 %v331
    %391 = vmatpush1.bf16.msra.mxu0 %v330
    %392 = vmatprep.subr.bf16.mxu0 %v335
    %393 = vmatpush1.bf16.msra.mxu0 %v334
    %394 = vmatprep.subr.bf16.mxu0 %v339
    %395 = vmatpush1.bf16.msra.mxu0 %v338
    %396 = vmatprep.subr.bf16.mxu0 %v343
    %397 = vmatpush1.bf16.msra.mxu0 %v342
    %398 = vmatprep.subr.bf16.mxu0 %v347
    %399 = vmatpush1.bf16.msra.mxu0 %v346
    %400 = vmatprep.subr.bf16.mxu0 %v351
    %401 = vmatpush1.bf16.msra.mxu0 %v350
    %402 = vmatprep.subr.bf16.mxu0 0
    %403 = vmatpush1.bf16.msra.mxu0 0
    %404 = vmatprep.subr.bf16.mxu0 0
    %405 = vmatpush1.bf16.msra.mxu0 0
    %406 = vmatprep.subr.bf16.mxu0 0
    %407 = vmatpush1.bf16.msra.mxu0 0
    %408 = vmatprep.subr.bf16.mxu0 0
    %409 = vmatpush1.bf16.msra.mxu0 0
    %410 = vmatprep.subr.bf16.mxu0 0
    %411 = vmatpush1.bf16.msra.mxu0 0
    %412 = vmatprep.subr.bf16.mxu0 0
    %413 = vmatpush1.bf16.msra.mxu0 0
    %414 = vmatprep.subr.bf16.mxu0 0
    %415 = vmatpush1.bf16.msra.mxu0 0
    %416 = vmatprep.subr.bf16.mxu0 0
    %417 = vmatpush1.bf16.msra.mxu0 0
    %418 = vmatprep.mubr.bf16.mxu0 0
    %419 = vmatmul.mubr.bf16.gmra.mrb[0].mxu0 %v218
    %v420 = vpop.f32.mrb[0].mxu0
    %v421 = vadd.f32 %v185, %v420
    %v422 = vpop.f32.mrb[0].mxu0
    %v423 = vadd.f32 %v189, %v422
    %v424 = vpop.f32.mrb[0].mxu0
    %v425 = vadd.f32 %v185, %v424
    %v426 = vpop.f32.mrb[0].mxu0
    %v427 = vadd.f32 %v189, %v426
    %428 = vmatprep.mubr.bf16.mxu0 0
    %429 = vmatmul.mubr.bf16.gmra.mrb[0].mxu0 %v219
    %v430 = vpop.f32.mrb[0].mxu0
    %v431 = vadd.f32 %v185, %v430
    %v432 = vpop.f32.mrb[0].mxu0
    %v433 = vadd.f32 %v189, %v432
    %v434 = vpop.f32.mrb[0].mxu0
    %v435 = vadd.f32 %v185, %v434
    %v436 = vpop.f32.mrb[0].mxu0
    %v437 = vadd.f32 %v189, %v436
    %438 = vmatprep.mubr.bf16.mxu0 0
    %439 = vmatmul.mubr.bf16.gmra.mrb[0].mxu0 %v220
    %v440 = vpop.f32.mrb[0].mxu0
    %v441 = vadd.f32 %v185, %v440
    %v442 = vpop.f32.mrb[0].mxu0
    %v443 = vadd.f32 %v189, %v442
    %v444 = vpop.f32.mrb[0].mxu0
    %v445 = vadd.f32 %v185, %v444
    %v446 = vpop.f32.mrb[0].mxu0
    %v447 = vadd.f32 %v189, %v446
    %448 = vmatprep.mubr.bf16.mxu0 0
    %449 = vmatmul.mubr.bf16.gmra.mrb[0].mxu0 %v221
    %v450 = vpop.f32.mrb[0].mxu0
    %v451 = vadd.f32 %v185, %v450
    %v452 = vpop.f32.mrb[0].mxu0
    %v453 = vadd.f32 %v189, %v452
    %v454 = vpop.f32.mrb[0].mxu0
    %v455 = vadd.f32 %v185, %v454
    %v456 = vpop.f32.mrb[0].mxu0
    %v457 = vadd.f32 %v189, %v456
    %458 = vdwg.mxu0
    %459 = vmatprep.subr.bf16.mxu0 %v325
    %460 = vmatpush1.bf16.msra.mxu0 %v324
    %461 = vmatprep.subr.bf16.mxu0 %v329
    %462 = vmatpush1.bf16.msra.mxu0 %v328
    %463 = vmatprep.subr.bf16.mxu0 %v333
    %464 = vmatpush1.bf16.msra.mxu0 %v332
    %465 = vmatprep.subr.bf16.mxu0 %v337
    %466 = vmatpush1.bf16.msra.mxu0 %v336
    %467 = vmatprep.subr.bf16.mxu0 %v341
    %468 = vmatpush1.bf16.msra.mxu0 %v340
    %469 = vmatprep.subr.bf16.mxu0 %v345
    %470 = vmatpush1.bf16.msra.mxu0 %v344
    %471 = vmatprep.subr.bf16.mxu0 %v349
    %472 = vmatpush1.bf16.msra.mxu0 %v348
    %473 = vmatprep.subr.bf16.mxu0 %v353
    %474 = vmatpush1.bf16.msra.mxu0 %v352
    %475 = vmatprep.subr.bf16.mxu0 0
    %476 = vmatpush1.bf16.msra.mxu0 0
    %477 = vmatprep.subr.bf16.mxu0 0
    %478 = vmatpush1.bf16.msra.mxu0 0
    %479 = vmatprep.subr.bf16.mxu0 0
    %480 = vmatpush1.bf16.msra.mxu0 0
    %481 = vmatprep.subr.bf16.mxu0 0
    %482 = vmatpush1.bf16.msra.mxu0 0
    %483 = vmatprep.subr.bf16.mxu0 0
    %484 = vmatpush1.bf16.msra.mxu0 0
    %485 = vmatprep.subr.bf16.mxu0 0
    %486 = vmatpush1.bf16.msra.mxu0 0
    %487 = vmatprep.subr.bf16.mxu0 0
    %488 = vmatpush1.bf16.msra.mxu0 0
    %489 = vmatprep.subr.bf16.mxu0 0
    %490 = vmatpush1.bf16.msra.mxu0 0
    %491 = vmatprep.mubr.bf16.mxu0 0
    %492 = vmatmul.mubr.bf16.gmra.mrb[0].mxu0 %v218
    %v493 = vpop.f32.mrb[0].mxu0
    %v494 = vadd.f32 %v193, %v493
    %v495 = vpop.f32.mrb[0].mxu0
    %v496 = vadd.f32 %v197, %v495
    %v497 = vpop.f32.mrb[0].mxu0
    %v498 = vadd.f32 %v193, %v497
    %v499 = vpop.f32.mrb[0].mxu0
    %v500 = vadd.f32 %v197, %v499
    %501 = vmatprep.mubr.bf16.mxu0 0
    %502 = vmatmul.mubr.bf16.gmra.mrb[0].mxu0 %v219
    %v503 = vpop.f32.mrb[0].mxu0
    %v504 = vadd.f32 %v193, %v503
    %v505 = vpop.f32.mrb[0].mxu0
    %v506 = vadd.f32 %v197, %v505
    %v507 = vpop.f32.mrb[0].mxu0
    %v508 = vadd.f32 %v193, %v507
    %v509 = vpop.f32.mrb[0].mxu0
    %v510 = vadd.f32 %v197, %v509
    %511 = vmatprep.mubr.bf16.mxu0 0
    %512 = vmatmul.mubr.bf16.gmra.mrb[0].mxu0 %v220
    %v513 = vpop.f32.mrb[0].mxu0
    %v514 = vadd.f32 %v193, %v513
    %v515 = vpop.f32.mrb[0].mxu0
    %v516 = vadd.f32 %v197, %v515
    %v517 = vpop.f32.mrb[0].mxu0
    %v518 = vadd.f32 %v193, %v517
    %v519 = vpop.f32.mrb[0].mxu0
    %v520 = vadd.f32 %v197, %v519
    %521 = vmatprep.mubr.bf16.mxu0 0
    %522 = vmatmul.mubr.bf16.gmra.mrb[0].mxu0 %v221
    %v523 = vpop.f32.mrb[0].mxu0
    %v524 = vadd.f32 %v193, %v523
    %v525 = vpop.f32.mrb[0].mxu0
    %v526 = vadd.f32 %v197, %v525
    %v527 = vpop.f32.mrb[0].mxu0
    %v528 = vadd.f32 %v193, %v527
    %v529 = vpop.f32.mrb[0].mxu0
    %v530 = vadd.f32 %v197, %v529
    %531 = vdwg.mxu0
    %532 = vst [vmem:[#allocation2] sm:$0xff] %v421
    %533 = vst [vmem:[#allocation2 + $0x8] sm:$0xff] %v423
    %534 = vst [vmem:[#allocation2 + $0x10] sm:$0xff] %v494
    %535 = vst [vmem:[#allocation2 + $0x18] sm:$0xff] %v496
    %536 = vst [vmem:[#allocation2 + $0x20] sm:$0xff] %v425
    %537 = vst [vmem:[#allocation2 + $0x28] sm:$0xff] %v427
    %538 = vst [vmem:[#allocation2 + $0x30] sm:$0xff] %v498
    %539 = vst [vmem:[#allocation2 + $0x38] sm:$0xff] %v500
    %540 = vst [vmem:[#allocation2 + $0x40] sm:$0xff] %v431
    %541 = vst [vmem:[#allocation2 + $0x48] sm:$0xff] %v433
    %542 = vst [vmem:[#allocation2 + $0x50] sm:$0xff] %v504
    %543 = vst [vmem:[#allocation2 + $0x58] sm:$0xff] %v506
    %544 = vst [vmem:[#allocation2 + $0x60] sm:$0xff] %v435
    %545 = vst [vmem:[#allocation2 + $0x68] sm:$0xff] %v437
    %546 = vst [vmem:[#allocation2 + $0x70] sm:$0xff] %v508
    %547 = vst [vmem:[#allocation2 + $0x78] sm:$0xff] %v510
    %548 = vst [vmem:[#allocation2 + $0x80] sm:$0xff] %v441
    %549 = vst [vmem:[#allocation2 + $0x88] sm:$0xff] %v443
    %550 = vst [vmem:[#allocation2 + $0x90] sm:$0xff] %v514
    %551 = vst [vmem:[#allocation2 + $0x98] sm:$0xff] %v516
    %552 = vst [vmem:[#allocation2 + $0xa0] sm:$0xff] %v445
    %553 = vst [vmem:[#allocation2 + $0xa8] sm:$0xff] %v447
    %554 = vst [vmem:[#allocation2 + $0xb0] sm:$0xff] %v518
    %555 = vst [vmem:[#allocation2 + $0xb8] sm:$0xff] %v520
    %556 = vst [vmem:[#allocation2 + $0xc0] sm:$0xff] %v451
    %557 = vst [vmem:[#allocation2 + $0xc8] sm:$0xff] %v453
    %558 = vst [vmem:[#allocation2 + $0xd0] sm:$0xff] %v524
    %559 = vst [vmem:[#allocation2 + $0xd8] sm:$0xff] %v526
    %560 = vst [vmem:[#allocation2 + $0xe0] sm:$0xff] %v455
    %561 = vst [vmem:[#allocation2 + $0xe8] sm:$0xff] %v457
    %562 = vst [vmem:[#allocation2 + $0xf0] sm:$0xff] %v528
    %563 = vst [vmem:[#allocation2 + $0xf8] sm:$0xff] %v530
    %v564 = vld [vmem:[#allocation8] sm:$0xff]
    %v565 = vld [vmem:[#allocation8 + $0x8] sm:$0xff]
    %v566 = vld [vmem:[#allocation8 + $0x10] sm:$0xff]
    %v567 = vld [vmem:[#allocation8 + $0x18] sm:$0xff]
    %v568 = vld [vmem:[#allocation8 + $0x20] sm:$0xff]
    %v569 = vld [vmem:[#allocation8 + $0x28] sm:$0xff]
    %v570 = vld [vmem:[#allocation8 + $0x30] sm:$0xff]
    %v571 = vld [vmem:[#allocation8 + $0x38] sm:$0xff]
    %v572 = vld [vmem:[#allocation8 + $0x40] sm:$0xff]
    %v573 = vld [vmem:[#allocation8 + $0x48] sm:$0xff]
    %v574 = vld [vmem:[#allocation8 + $0x50] sm:$0xff]
    %v575 = vld [vmem:[#allocation8 + $0x58] sm:$0xff]
    %v576 = vld [vmem:[#allocation8 + $0x60] sm:$0xff]
    %v577 = vld [vmem:[#allocation8 + $0x68] sm:$0xff]
    %v578 = vld [vmem:[#allocation8 + $0x70] sm:$0xff]
    %v579 = vld [vmem:[#allocation8 + $0x78] sm:$0xff]
    %v580 = vld [vmem:[#allocation8 + $0x80] sm:$0xff]
    %v581 = vld [vmem:[#allocation8 + $0x88] sm:$0xff]
    %v582 = vld [vmem:[#allocation8 + $0x90] sm:$0xff]
    %v583 = vld [vmem:[#allocation8 + $0x98] sm:$0xff]
    %v584 = vld [vmem:[#allocation8 + $0xa0] sm:$0xff]
    %v585 = vld [vmem:[#allocation8 + $0xa8] sm:$0xff]
    %v586 = vld [vmem:[#allocation8 + $0xb0] sm:$0xff]
    %v587 = vld [vmem:[#allocation8 + $0xb8] sm:$0xff]
    %v588 = vld [vmem:[#allocation8 + $0xc0] sm:$0xff]
    %v589 = vld [vmem:[#allocation8 + $0xc8] sm:$0xff]
    %v590 = vld [vmem:[#allocation8 + $0xd0] sm:$0xff]
    %v591 = vld [vmem:[#allocation8 + $0xd8] sm:$0xff]
    %v592 = vld [vmem:[#allocation8 + $0xe0] sm:$0xff]
    %v593 = vld [vmem:[#allocation8 + $0xe8] sm:$0xff]
    %v594 = vld [vmem:[#allocation8 + $0xf0] sm:$0xff]
    %v595 = vld [vmem:[#allocation8 + $0xf8] sm:$0xff]
    %v596 = vld [vmem:[#allocation11] sm:$0xff]
    %v597 = vld [vmem:[#allocation11 + $0x8] sm:$0xff]
    %v598 = vld [vmem:[#allocation11 + $0x10] sm:$0xff]
    %v599 = vld [vmem:[#allocation11 + $0x18] sm:$0xff]
    %v600 = vld [vmem:[#allocation11 + $0x20] sm:$0xff]
    %v601 = vld [vmem:[#allocation11 + $0x28] sm:$0xff]
    %v602 = vld [vmem:[#allocation11 + $0x30] sm:$0xff]
    %v603 = vld [vmem:[#allocation11 + $0x38] sm:$0xff]
    %v604 = vld [vmem:[#allocation11 + $0x40] sm:$0xff]
    %v605 = vld [vmem:[#allocation11 + $0x48] sm:$0xff]
    %v606 = vld [vmem:[#allocation11 + $0x50] sm:$0xff]
    %v607 = vld [vmem:[#allocation11 + $0x58] sm:$0xff]
    %v608 = vld [vmem:[#allocation11 + $0x60] sm:$0xff]
    %v609 = vld [vmem:[#allocation11 + $0x68] sm:$0xff]
    %v610 = vld [vmem:[#allocation11 + $0x70] sm:$0xff]
    %v611 = vld [vmem:[#allocation11 + $0x78] sm:$0xff]
    %v612 = vld [vmem:[#allocation11 + $0x80] sm:$0xff]
    %v613 = vld [vmem:[#allocation11 + $0x88] sm:$0xff]
    %v614 = vld [vmem:[#allocation11 + $0x90] sm:$0xff]
    %v615 = vld [vmem:[#allocation11 + $0x98] sm:$0xff]
    %v616 = vld [vmem:[#allocation11 + $0xa0] sm:$0xff]
    %v617 = vld [vmem:[#allocation11 + $0xa8] sm:$0xff]
    %v618 = vld [vmem:[#allocation11 + $0xb0] sm:$0xff]
    %v619 = vld [vmem:[#allocation11 + $0xb8] sm:$0xff]
    %v620 = vld [vmem:[#allocation11 + $0xc0] sm:$0xff]
    %v621 = vld [vmem:[#allocation11 + $0xc8] sm:$0xff]
    %v622 = vld [vmem:[#allocation11 + $0xd0] sm:$0xff]
    %v623 = vld [vmem:[#allocation11 + $0xd8] sm:$0xff]
    %v624 = vld [vmem:[#allocation11 + $0xe0] sm:$0xff]
    %v625 = vld [vmem:[#allocation11 + $0xe8] sm:$0xff]
    %v626 = vld [vmem:[#allocation11 + $0xf0] sm:$0xff]
    %v627 = vld [vmem:[#allocation11 + $0xf8] sm:$0xff]
    %v628 = vld [vmem:[#allocation11 + $0x100] sm:$0xff]
    %v629 = vld [vmem:[#allocation11 + $0x108] sm:$0xff]
    %v630 = vld [vmem:[#allocation11 + $0x110] sm:$0xff]
    %v631 = vld [vmem:[#allocation11 + $0x118] sm:$0xff]
    %v632 = vld [vmem:[#allocation11 + $0x120] sm:$0xff]
    %v633 = vld [vmem:[#allocation11 + $0x128] sm:$0xff]
    %v634 = vld [vmem:[#allocation11 + $0x130] sm:$0xff]
    %v635 = vld [vmem:[#allocation11 + $0x138] sm:$0xff]
    %v636 = vld [vmem:[#allocation11 + $0x140] sm:$0xff]
    %v637 = vld [vmem:[#allocation11 + $0x148] sm:$0xff]
    %v638 = vld [vmem:[#allocation11 + $0x150] sm:$0xff]
    %v639 = vld [vmem:[#allocation11 + $0x158] sm:$0xff]
    %v640 = vld [vmem:[#allocation11 + $0x160] sm:$0xff]
    %v641 = vld [vmem:[#allocation11 + $0x168] sm:$0xff]
    %v642 = vld [vmem:[#allocation11 + $0x170] sm:$0xff]
    %v643 = vld [vmem:[#allocation11 + $0x178] sm:$0xff]
    %v644 = vld [vmem:[#allocation11 + $0x180] sm:$0xff]
    %v645 = vld [vmem:[#allocation11 + $0x188] sm:$0xff]
    %v646 = vld [vmem:[#allocation11 + $0x190] sm:$0xff]
    %v647 = vld [vmem:[#allocation11 + $0x198] sm:$0xff]
    %v648 = vld [vmem:[#allocation11 + $0x1a0] sm:$0xff]
    %v649 = vld [vmem:[#allocation11 + $0x1a8] sm:$0xff]
    %v650 = vld [vmem:[#allocation11 + $0x1b0] sm:$0xff]
    %v651 = vld [vmem:[#allocation11 + $0x1b8] sm:$0xff]
    %v652 = vld [vmem:[#allocation11 + $0x1c0] sm:$0xff]
    %v653 = vld [vmem:[#allocation11 + $0x1c8] sm:$0xff]
    %v654 = vld [vmem:[#allocation11 + $0x1d0] sm:$0xff]
    %v655 = vld [vmem:[#allocation11 + $0x1d8] sm:$0xff]
    %v656 = vld [vmem:[#allocation11 + $0x1e0] sm:$0xff]
    %v657 = vld [vmem:[#allocation11 + $0x1e8] sm:$0xff]
    %v658 = vld [vmem:[#allocation11 + $0x1f0] sm:$0xff]
    %v659 = vld [vmem:[#allocation11 + $0x1f8] sm:$0xff]
    %v660 = vld [vmem:[#allocation12] sm:$0xf]
    %v661 = vld [vmem:[#allocation2] sm:$0xff]
    %v662 = vld [vmem:[#allocation2 + $0x8] sm:$0xff]
    %v663 = vld [vmem:[#allocation2 + $0x10] sm:$0xff]
    %v664 = vld [vmem:[#allocation2 + $0x18] sm:$0xff]
    %v697 = vunpack.c.l.b16 %v564
    %v698 = vunpack.c.h.b16 %v564
    %v699 = vunpack.c.l.b16 %v565
    %v700 = vunpack.c.h.b16 %v565
    %v701 = vunpack.c.l.b16 %v566
    %v702 = vunpack.c.h.b16 %v566
    %v703 = vunpack.c.l.b16 %v567
    %v704 = vunpack.c.h.b16 %v567
    %v705 = vunpack.c.l.b16 %v568
    %v706 = vunpack.c.h.b16 %v568
    %v707 = vunpack.c.l.b16 %v569
    %v708 = vunpack.c.h.b16 %v569
    %v709 = vunpack.c.l.b16 %v570
    %v710 = vunpack.c.h.b16 %v570
    %v711 = vunpack.c.l.b16 %v571
    %v712 = vunpack.c.h.b16 %v571
    %v713 = vunpack.c.l.b16 %v572
    %v714 = vunpack.c.h.b16 %v572
    %v715 = vunpack.c.l.b16 %v573
    %v716 = vunpack.c.h.b16 %v573
    %v717 = vunpack.c.l.b16 %v574
    %v718 = vunpack.c.h.b16 %v574
    %v719 = vunpack.c.l.b16 %v575
    %v720 = vunpack.c.h.b16 %v575
    %v721 = vunpack.c.l.b16 %v576
    %v722 = vunpack.c.h.b16 %v576
    %v723 = vunpack.c.l.b16 %v577
    %v724 = vunpack.c.h.b16 %v577
    %v725 = vunpack.c.l.b16 %v578
    %v726 = vunpack.c.h.b16 %v578
    %v727 = vunpack.c.l.b16 %v579
    %v728 = vunpack.c.h.b16 %v579
    %v729 = vunpack.c.l.b16 %v580
    %v730 = vunpack.c.h.b16 %v580
    %v731 = vunpack.c.l.b16 %v581
    %v732 = vunpack.c.h.b16 %v581
    %v733 = vunpack.c.l.b16 %v582
    %v734 = vunpack.c.h.b16 %v582
    %v735 = vunpack.c.l.b16 %v583
    %v736 = vunpack.c.h.b16 %v583
    %v737 = vunpack.c.l.b16 %v584
    %v738 = vunpack.c.h.b16 %v584
    %v739 = vunpack.c.l.b16 %v585
    %v740 = vunpack.c.h.b16 %v585
    %v741 = vunpack.c.l.b16 %v586
    %v742 = vunpack.c.h.b16 %v586
    %v743 = vunpack.c.l.b16 %v587
    %v744 = vunpack.c.h.b16 %v587
    %v745 = vunpack.c.l.b16 %v588
    %v746 = vunpack.c.h.b16 %v588
    %v747 = vunpack.c.l.b16 %v589
    %v748 = vunpack.c.h.b16 %v589
    %v749 = vunpack.c.l.b16 %v590
    %v750 = vunpack.c.h.b16 %v590
    %v751 = vunpack.c.l.b16 %v591
    %v752 = vunpack.c.h.b16 %v591
    %v753 = vunpack.c.l.b16 %v592
    %v754 = vunpack.c.h.b16 %v592
    %v755 = vunpack.c.l.b16 %v593
    %v756 = vunpack.c.h.b16 %v593
    %v757 = vunpack.c.l.b16 %v594
    %v758 = vunpack.c.h.b16 %v594
    %v759 = vunpack.c.l.b16 %v595
    %v760 = vunpack.c.h.b16 %v595
    %v761 = vpack.c.b16 %v701, %v697
    %v762 = vpack.c.b16 %v702, %v698
    %v763 = vpack.c.b16 %v703, %v699
    %v764 = vpack.c.b16 %v704, %v700
    %v765 = vpack.c.b16 %v709, %v705
    %v766 = vpack.c.b16 %v710, %v706
    %v767 = vpack.c.b16 %v711, %v707
    %v768 = vpack.c.b16 %v712, %v708
    %v769 = vpack.c.b16 %v717, %v713
    %v770 = vpack.c.b16 %v718, %v714
    %v771 = vpack.c.b16 %v719, %v715
    %v772 = vpack.c.b16 %v720, %v716
    %v773 = vpack.c.b16 %v725, %v721
    %v774 = vpack.c.b16 %v726, %v722
    %v775 = vpack.c.b16 %v727, %v723
    %v776 = vpack.c.b16 %v728, %v724
    %v777 = vpack.c.b16 %v733, %v729
    %v778 = vpack.c.b16 %v734, %v730
    %v779 = vpack.c.b16 %v735, %v731
    %v780 = vpack.c.b16 %v736, %v732
    %v781 = vpack.c.b16 %v741, %v737
    %v782 = vpack.c.b16 %v742, %v738
    %v783 = vpack.c.b16 %v743, %v739
    %v784 = vpack.c.b16 %v744, %v740
    %v785 = vpack.c.b16 %v749, %v745
    %v786 = vpack.c.b16 %v750, %v746
    %v787 = vpack.c.b16 %v751, %v747
    %v788 = vpack.c.b16 %v752, %v748
    %v789 = vpack.c.b16 %v757, %v753
    %v790 = vpack.c.b16 %v758, %v754
    %v791 = vpack.c.b16 %v759, %v755
    %v792 = vpack.c.b16 %v760, %v756
    %825 = vmatprep.subr.bf16.mxu0 %v762
    %826 = vmatpush1.bf16.msra.mxu0 %v761
    %827 = vmatprep.subr.bf16.mxu0 %v766
    %828 = vmatpush1.bf16.msra.mxu0 %v765
    %829 = vmatprep.subr.bf16.mxu0 %v770
    %830 = vmatpush1.bf16.msra.mxu0 %v769
    %831 = vmatprep.subr.bf16.mxu0 %v774
    %832 = vmatpush1.bf16.msra.mxu0 %v773
    %833 = vmatprep.subr.bf16.mxu0 %v778
    %834 = vmatpush1.bf16.msra.mxu0 %v777
    %835 = vmatprep.subr.bf16.mxu0 %v782
    %836 = vmatpush1.bf16.msra.mxu0 %v781
    %837 = vmatprep.subr.bf16.mxu0 %v786
    %838 = vmatpush1.bf16.msra.mxu0 %v785
    %839 = vmatprep.subr.bf16.mxu0 %v790
    %840 = vmatpush1.bf16.msra.mxu0 %v789
    %841 = vmatprep.subr.bf16.mxu0 0
    %842 = vmatpush1.bf16.msra.mxu0 0
    %843 = vmatprep.subr.bf16.mxu0 0
    %844 = vmatpush1.bf16.msra.mxu0 0
    %845 = vmatprep.subr.bf16.mxu0 0
    %846 = vmatpush1.bf16.msra.mxu0 0
    %847 = vmatprep.subr.bf16.mxu0 0
    %848 = vmatpush1.bf16.msra.mxu0 0
    %849 = vmatprep.subr.bf16.mxu0 0
    %850 = vmatpush1.bf16.msra.mxu0 0
    %851 = vmatprep.subr.bf16.mxu0 0
    %852 = vmatpush1.bf16.msra.mxu0 0
    %853 = vmatprep.subr.bf16.mxu0 0
    %854 = vmatpush1.bf16.msra.mxu0 0
    %855 = vmatprep.subr.bf16.mxu0 0
    %856 = vmatpush1.bf16.msra.mxu0 0
    %857 = vmatprep.mubr.bf16.mxu0 0
    %858 = vmatmul.mubr.bf16.gmra.mrb[0].mxu0 0
    %v859 = vpop.f32.mrb[0].mxu0
    %v860 = vadd.f32 0.0, %v859
    %v861 = vpop.f32.mrb[0].mxu0
    %v862 = vadd.f32 0.0, %v861
    %v863 = vpop.f32.mrb[0].mxu0
    %v864 = vpop.f32.mrb[0].mxu0
    %865 = vdwg.mxu0
    %866 = vmatprep.subr.bf16.mxu0 %v764
    %867 = vmatpush1.bf16.msra.mxu0 %v763
    %868 = vmatprep.subr.bf16.mxu0 %v768
    %869 = vmatpush1.bf16.msra.mxu0 %v767
    %870 = vmatprep.subr.bf16.mxu0 %v772
    %871 = vmatpush1.bf16.msra.mxu0 %v771
    %872 = vmatprep.subr.bf16.mxu0 %v776
    %873 = vmatpush1.bf16.msra.mxu0 %v775
    %874 = vmatprep.subr.bf16.mxu0 %v780
    %875 = vmatpush1.bf16.msra.mxu0 %v779
    %876 = vmatprep.subr.bf16.mxu0 %v784
    %877 = vmatpush1.bf16.msra.mxu0 %v783
    %878 = vmatprep.subr.bf16.mxu0 %v788
    %879 = vmatpush1.bf16.msra.mxu0 %v787
    %880 = vmatprep.subr.bf16.mxu0 %v792
    %881 = vmatpush1.bf16.msra.mxu0 %v791
    %882 = vmatprep.subr.bf16.mxu0 0
    %883 = vmatpush1.bf16.msra.mxu0 0
    %884 = vmatprep.subr.bf16.mxu0 0
    %885 = vmatpush1.bf16.msra.mxu0 0
    %886 = vmatprep.subr.bf16.mxu0 0
    %887 = vmatpush1.bf16.msra.mxu0 0
    %888 = vmatprep.subr.bf16.mxu0 0
    %889 = vmatpush1.bf16.msra.mxu0 0
    %890 = vmatprep.subr.bf16.mxu0 0
    %891 = vmatpush1.bf16.msra.mxu0 0
    %892 = vmatprep.subr.bf16.mxu0 0
    %893 = vmatpush1.bf16.msra.mxu0 0
    %894 = vmatprep.subr.bf16.mxu0 0
    %895 = vmatpush1.bf16.msra.mxu0 0
    %896 = vmatprep.subr.bf16.mxu0 0
    %897 = vmatpush1.bf16.msra.mxu0 0
    %898 = vmatprep.mubr.bf16.mxu0 0
    %899 = vmatmul.mubr.bf16.gmra.mrb[0].mxu0 0
    %v900 = vpop.f32.mrb[0].mxu0
    %v901 = vadd.f32 0.0, %v900
    %v902 = vpop.f32.mrb[0].mxu0
    %v903 = vadd.f32 0.0, %v902
    %v904 = vpop.f32.mrb[0].mxu0
    %v905 = vpop.f32.mrb[0].mxu0
    %906 = vdwg.mxu0
    %v907 = vadd.f32 %v661, %v860
    %v908 = vadd.f32 %v662, %v862
    %v909 = vadd.f32 %v663, %v901
    %v910 = vadd.f32 %v664, %v903
    %v911 = vxor.u32 %v907, 2147483648
    %v912 = vxor.u32 %v908, 2147483648
    %v913 = vxor.u32 %v909, 2147483648
    %v914 = vmul.f32 %v911, 1.442695
    %v915 = vpow.pop %v914
    %v916 = vmul.f32 %v912, 1.442695
    %v917 = vpow.pop %v916
    %v918 = vmul.f32 %v913, 1.442695
    %v919 = vpow.pop %v918
    %v920 = vadd.f32 %v915, 1.0
    %v921 = vadd.f32 %v917, 1.0
    %v922 = vadd.f32 %v919, 1.0
    %v923 = vrcp.pop %v920
    %v924 = vmul.f32 1.0, %v923
    %v925 = vrcp.pop %v921
    %v926 = vmul.f32 1.0, %v925
    %v927 = vrcp.pop %v922
    %v928 = vmul.f32 1.0, %v927
    %v929 = vtanh.pop %v910
    %v930 = vmul.f32 %v926, 0.0
    %v931 = vmul.f32 %v924, %v929
    %v932 = vadd.f32 %v930, %v931
    %v933 = vtanh.pop %v932
    %v934 = vmul.f32 %v928, %v933
    %v935 = vpack.c.bf16 %v934, %v934
    %v936 = vpack.c.bf16 0.0, 0.0
    %v938 = vlaneseq
    %v939 = vshrl.u32 %v938, 7
    %v940 = vsub.s32 0, %v939
    %v941 = vrot.slane %v660, %v940
    %v942 = vlaneseq
    %v943 = vshrl.u32 %v942, 7
    %v944 = vsub.s32 1, %v943
    %v945 = vrot.slane %v660, %v944
    %v946 = vlaneseq
    %v947 = vshrl.u32 %v946, 7
    %v948 = vsub.s32 2, %v947
    %v949 = vrot.slane %v660, %v948
    %v950 = vlaneseq
    %v951 = vshrl.u32 %v950, 7
    %v952 = vsub.s32 3, %v951
    %v953 = vrot.slane %v660, %v952
    %v1022 = vunpack.c.l.b16 %v596
    %v1023 = vunpack.c.h.b16 %v596
    %v1024 = vunpack.c.l.b16 %v597
    %v1025 = vunpack.c.h.b16 %v597
    %v1026 = vunpack.c.l.b16 %v598
    %v1027 = vunpack.c.h.b16 %v598
    %v1028 = vunpack.c.l.b16 %v599
    %v1029 = vunpack.c.h.b16 %v599
    %v1030 = vunpack.c.l.b16 %v600
    %v1031 = vunpack.c.h.b16 %v600
    %v1032 = vunpack.c.l.b16 %v601
    %v1033 = vunpack.c.h.b16 %v601
    %v1034 = vunpack.c.l.b16 %v602
    %v1035 = vunpack.c.h.b16 %v602
    %v1036 = vunpack.c.l.b16 %v603
    %v1037 = vunpack.c.h.b16 %v603
    %v1038 = vunpack.c.l.b16 %v604
    %v1039 = vunpack.c.h.b16 %v604
    %v1040 = vunpack.c.l.b16 %v605
    %v1041 = vunpack.c.h.b16 %v605
    %v1042 = vunpack.c.l.b16 %v606
    %v1043 = vunpack.c.h.b16 %v606
    %v1044 = vunpack.c.l.b16 %v607
    %v1045 = vunpack.c.h.b16 %v607
    %v1046 = vunpack.c.l.b16 %v608
    %v1047 = vunpack.c.h.b16 %v608
    %v1048 = vunpack.c.l.b16 %v609
    %v1049 = vunpack.c.h.b16 %v609
    %v1050 = vunpack.c.l.b16 %v610
    %v1051 = vunpack.c.h.b16 %v610
    %v1052 = vunpack.c.l.b16 %v611
    %v1053 = vunpack.c.h.b16 %v611
    %v1054 = vunpack.c.l.b16 %v612
    %v1055 = vunpack.c.h.b16 %v612
    %v1056 = vunpack.c.l.b16 %v613
    %v1057 = vunpack.c.h.b16 %v613
    %v1058 = vunpack.c.l.b16 %v614
    %v1059 = vunpack.c.h.b16 %v614
    %v1060 = vunpack.c.l.b16 %v615
    %v1061 = vunpack.c.h.b16 %v615
    %v1062 = vunpack.c.l.b16 %v616
    %v1063 = vunpack.c.h.b16 %v616
    %v1064 = vunpack.c.l.b16 %v617
    %v1065 = vunpack.c.h.b16 %v617
    %v1066 = vunpack.c.l.b16 %v618
    %v1067 = vunpack.c.h.b16 %v618
    %v1068 = vunpack.c.l.b16 %v619
    %v1069 = vunpack.c.h.b16 %v619
    %v1070 = vunpack.c.l.b16 %v620
    %v1071 = vunpack.c.h.b16 %v620
    %v1072 = vunpack.c.l.b16 %v621
    %v1073 = vunpack.c.h.b16 %v621
    %v1074 = vunpack.c.l.b16 %v622
    %v1075 = vunpack.c.h.b16 %v622
    %v1076 = vunpack.c.l.b16 %v623
    %v1077 = vunpack.c.h.b16 %v623
    %v1078 = vunpack.c.l.b16 %v624
    %v1079 = vunpack.c.h.b16 %v624
    %v1080 = vunpack.c.l.b16 %v625
    %v1081 = vunpack.c.h.b16 %v625
    %v1082 = vunpack.c.l.b16 %v626
    %v1083 = vunpack.c.h.b16 %v626
    %v1084 = vunpack.c.l.b16 %v627
    %v1085 = vunpack.c.h.b16 %v627
    %v1086 = vunpack.c.l.b16 %v628
    %v1087 = vunpack.c.h.b16 %v628
    %v1088 = vunpack.c.l.b16 %v629
    %v1089 = vunpack.c.h.b16 %v629
    %v1090 = vunpack.c.l.b16 %v630
    %v1091 = vunpack.c.h.b16 %v630
    %v1092 = vunpack.c.l.b16 %v631
    %v1093 = vunpack.c.h.b16 %v631
    %v1094 = vunpack.c.l.b16 %v632
    %v1095 = vunpack.c.h.b16 %v632
    %v1096 = vunpack.c.l.b16 %v633
    %v1097 = vunpack.c.h.b16 %v633
    %v1098 = vunpack.c.l.b16 %v634
    %v1099 = vunpack.c.h.b16 %v634
    %v1100 = vunpack.c.l.b16 %v635
    %v1101 = vunpack.c.h.b16 %v635
    %v1102 = vunpack.c.l.b16 %v636
    %v1103 = vunpack.c.h.b16 %v636
    %v1104 = vunpack.c.l.b16 %v637
    %v1105 = vunpack.c.h.b16 %v637
    %v1106 = vunpack.c.l.b16 %v638
    %v1107 = vunpack.c.h.b16 %v638
    %v1108 = vunpack.c.l.b16 %v639
    %v1109 = vunpack.c.h.b16 %v639
    %v1110 = vunpack.c.l.b16 %v640
    %v1111 = vunpack.c.h.b16 %v640
    %v1112 = vunpack.c.l.b16 %v641
    %v1113 = vunpack.c.h.b16 %v641
    %v1114 = vunpack.c.l.b16 %v642
    %v1115 = vunpack.c.h.b16 %v642
    %v1116 = vunpack.c.l.b16 %v643
    %v1117 = vunpack.c.h.b16 %v643
    %v1118 = vunpack.c.l.b16 %v644
    %v1119 = vunpack.c.h.b16 %v644
    %v1120 = vunpack.c.l.b16 %v645
    %v1121 = vunpack.c.h.b16 %v645
    %v1122 = vunpack.c.l.b16 %v646
    %v1123 = vunpack.c.h.b16 %v646
    %v1124 = vunpack.c.l.b16 %v647
    %v1125 = vunpack.c.h.b16 %v647
    %v1126 = vunpack.c.l.b16 %v648
    %v1127 = vunpack.c.h.b16 %v648
    %v1128 = vunpack.c.l.b16 %v649
    %v1129 = vunpack.c.h.b16 %v649
    %v1130 = vunpack.c.l.b16 %v650
    %v1131 = vunpack.c.h.b16 %v650
    %v1132 = vunpack.c.l.b16 %v651
    %v1133 = vunpack.c.h.b16 %v651
    %v1134 = vunpack.c.l.b16 %v652
    %v1135 = vunpack.c.h.b16 %v652
    %v1136 = vunpack.c.l.b16 %v653
    %v1137 = vunpack.c.h.b16 %v653
    %v1138 = vunpack.c.l.b16 %v654
    %v1139 = vunpack.c.h.b16 %v654
    %v1140 = vunpack.c.l.b16 %v655
    %v1141 = vunpack.c.h.b16 %v655
    %v1142 = vunpack.c.l.b16 %v656
    %v1143 = vunpack.c.h.b16 %v656
    %v1144 = vunpack.c.l.b16 %v657
    %v1145 = vunpack.c.h.b16 %v657
    %v1146 = vunpack.c.l.b16 %v658
    %v1147 = vunpack.c.h.b16 %v658
    %v1148 = vunpack.c.l.b16 %v659
    %v1149 = vunpack.c.h.b16 %v659
    %v1150 = vpack.c.b16 %v1026, %v1022
    %v1151 = vpack.c.b16 %v1027, %v1023
    %v1152 = vpack.c.b16 %v1028, %v1024
    %v1153 = vpack.c.b16 %v1029, %v1025
    %v1154 = vpack.c.b16 %v1034, %v1030
    %v1155 = vpack.c.b16 %v1035, %v1031
    %v1156 = vpack.c.b16 %v1036, %v1032
    %v1157 = vpack.c.b16 %v1037, %v1033
    %v1158 = vpack.c.b16 %v1042, %v1038
    %v1159 = vpack.c.b16 %v1043, %v1039
    %v1160 = vpack.c.b16 %v1044, %v1040
    %v1161 = vpack.c.b16 %v1045, %v1041
    %v1162 = vpack.c.b16 %v1050, %v1046
    %v1163 = vpack.c.b16 %v1051, %v1047
    %v1164 = vpack.c.b16 %v1052, %v1048
    %v1165 = vpack.c.b16 %v1053, %v1049
    %v1166 = vpack.c.b16 %v1058, %v1054
    %v1167 = vpack.c.b16 %v1059, %v1055
    %v1168 = vpack.c.b16 %v1060, %v1056
    %v1169 = vpack.c.b16 %v1061, %v1057
    %v1170 = vpack.c.b16 %v1066, %v1062
    %v1171 = vpack.c.b16 %v1067, %v1063
    %v1172 = vpack.c.b16 %v1068, %v1064
    %v1173 = vpack.c.b16 %v1069, %v1065
    %v1174 = vpack.c.b16 %v1074, %v1070
    %v1175 = vpack.c.b16 %v1075, %v1071
    %v1176 = vpack.c.b16 %v1076, %v1072
    %v1177 = vpack.c.b16 %v1077, %v1073
    %v1178 = vpack.c.b16 %v1082, %v1078
    %v1179 = vpack.c.b16 %v1083, %v1079
    %v1180 = vpack.c.b16 %v1084, %v1080
    %v1181 = vpack.c.b16 %v1085, %v1081
    %v1182 = vpack.c.b16 %v1090, %v1086
    %v1183 = vpack.c.b16 %v1091, %v1087
    %v1184 = vpack.c.b16 %v1092, %v1088
    %v1185 = vpack.c.b16 %v1093, %v1089
    %v1186 = vpack.c.b16 %v1098, %v1094
    %v1187 = vpack.c.b16 %v1099, %v1095
    %v1188 = vpack.c.b16 %v1100, %v1096
    %v1189 = vpack.c.b16 %v1101, %v1097
    %v1190 = vpack.c.b16 %v1106, %v1102
    %v1191 = vpack.c.b16 %v1107, %v1103
    %v1192 = vpack.c.b16 %v1108, %v1104
    %v1193 = vpack.c.b16 %v1109, %v1105
    %v1194 = vpack.c.b16 %v1114, %v1110
    %v1195 = vpack.c.b16 %v1115, %v1111
    %v1196 = vpack.c.b16 %v1116, %v1112
    %v1197 = vpack.c.b16 %v1117, %v1113
    %v1198 = vpack.c.b16 %v1122, %v1118
    %v1199 = vpack.c.b16 %v1123, %v1119
    %v1200 = vpack.c.b16 %v1124, %v1120
    %v1201 = vpack.c.b16 %v1125, %v1121
    %v1202 = vpack.c.b16 %v1130, %v1126
    %v1203 = vpack.c.b16 %v1131, %v1127
    %v1204 = vpack.c.b16 %v1132, %v1128
    %v1205 = vpack.c.b16 %v1133, %v1129
    %v1206 = vpack.c.b16 %v1138, %v1134
    %v1207 = vpack.c.b16 %v1139, %v1135
    %v1208 = vpack.c.b16 %v1140, %v1136
    %v1209 = vpack.c.b16 %v1141, %v1137
    %v1210 = vpack.c.b16 %v1146, %v1142
    %v1211 = vpack.c.b16 %v1147, %v1143
    %v1212 = vpack.c.b16 %v1148, %v1144
    %v1213 = vpack.c.b16 %v1149, %v1145
    %1278 = vmatprep.subr.bf16.mxu0 %v1151
    %1279 = vmatpush1.bf16.msra.mxu0 %v1150
    %1280 = vmatprep.subr.bf16.mxu0 %v1155
    %1281 = vmatpush1.bf16.msra.mxu0 %v1154
    %1282 = vmatprep.subr.bf16.mxu0 %v1159
    %1283 = vmatpush1.bf16.msra.mxu0 %v1158
    %1284 = vmatprep.subr.bf16.mxu0 %v1163
    %1285 = vmatpush1.bf16.msra.mxu0 %v1162
    %1286 = vmatprep.subr.bf16.mxu0 %v1167
    %1287 = vmatpush1.bf16.msra.mxu0 %v1166
    %1288 = vmatprep.subr.bf16.mxu0 %v1171
    %1289 = vmatpush1.bf16.msra.mxu0 %v1170
    %1290 = vmatprep.subr.bf16.mxu0 %v1175
    %1291 = vmatpush1.bf16.msra.mxu0 %v1174
    %1292 = vmatprep.subr.bf16.mxu0 %v1179
    %1293 = vmatpush1.bf16.msra.mxu0 %v1178
    %1294 = vmatprep.subr.bf16.mxu0 %v1183
    %1295 = vmatpush1.bf16.msra.mxu0 %v1182
    %1296 = vmatprep.subr.bf16.mxu0 %v1187
    %1297 = vmatpush1.bf16.msra.mxu0 %v1186
    %1298 = vmatprep.subr.bf16.mxu0 %v1191
    %1299 = vmatpush1.bf16.msra.mxu0 %v1190
    %1300 = vmatprep.subr.bf16.mxu0 %v1195
    %1301 = vmatpush1.bf16.msra.mxu0 %v1194
    %1302 = vmatprep.subr.bf16.mxu0 %v1199
    %1303 = vmatpush1.bf16.msra.mxu0 %v1198
    %1304 = vmatprep.subr.bf16.mxu0 %v1203
    %1305 = vmatpush1.bf16.msra.mxu0 %v1202
    %1306 = vmatprep.subr.bf16.mxu0 %v1207
    %1307 = vmatpush1.bf16.msra.mxu0 %v1206
    %1308 = vmatprep.subr.bf16.mxu0 %v1211
    %1309 = vmatpush1.bf16.msra.mxu0 %v1210
    %1310 = vmatprep.mubr.bf16.mxu0 %v936
    %1311 = vmatmul.mubr.bf16.gmra.mrb[0].mxu0 %v935
    %v1312 = vpop.f32.mrb[0].mxu0
    %v1313 = vadd.f32 %v941, %v1312
    %v1314 = vpop.f32.mrb[0].mxu0
    %v1315 = vadd.f32 %v945, %v1314
    %v1316 = vpop.f32.mrb[0].mxu0
    %v1317 = vpop.f32.mrb[0].mxu0
    %1318 = vdwg.mxu0
    %1319 = vmatprep.subr.bf16.mxu0 %v1153
    %1320 = vmatpush1.bf16.msra.mxu0 %v1152
    %1321 = vmatprep.subr.bf16.mxu0 %v1157
    %1322 = vmatpush1.bf16.msra.mxu0 %v1156
    %1323 = vmatprep.subr.bf16.mxu0 %v1161
    %1324 = vmatpush1.bf16.msra.mxu0 %v1160
    %1325 = vmatprep.subr.bf16.mxu0 %v1165
    %1326 = vmatpush1.bf16.msra.mxu0 %v1164
    %1327 = vmatprep.subr.bf16.mxu0 %v1169
    %1328 = vmatpush1.bf16.msra.mxu0 %v1168
    %1329 = vmatprep.subr.bf16.mxu0 %v1173
    %1330 = vmatpush1.bf16.msra.mxu0 %v1172
    %1331 = vmatprep.subr.bf16.mxu0 %v1177
    %1332 = vmatpush1.bf16.msra.mxu0 %v1176
    %1333 = vmatprep.subr.bf16.mxu0 %v1181
    %1334 = vmatpush1.bf16.msra.mxu0 %v1180
    %1335 = vmatprep.subr.bf16.mxu0 %v1185
    %1336 = vmatpush1.bf16.msra.mxu0 %v1184
    %1337 = vmatprep.subr.bf16.mxu0 %v1189
    %1338 = vmatpush1.bf16.msra.mxu0 %v1188
    %1339 = vmatprep.subr.bf16.mxu0 %v1193
    %1340 = vmatpush1.bf16.msra.mxu0 %v1192
    %1341 = vmatprep.subr.bf16.mxu0 %v1197
    %1342 = vmatpush1.bf16.msra.mxu0 %v1196
    %1343 = vmatprep.subr.bf16.mxu0 %v1201
    %1344 = vmatpush1.bf16.msra.mxu0 %v1200
    %1345 = vmatprep.subr.bf16.mxu0 %v1205
    %1346 = vmatpush1.bf16.msra.mxu0 %v1204
    %1347 = vmatprep.subr.bf16.mxu0 %v1209
    %1348 = vmatpush1.bf16.msra.mxu0 %v1208
    %1349 = vmatprep.subr.bf16.mxu0 %v1213
    %1350 = vmatpush1.bf16.msra.mxu0 %v1212
    %1351 = vmatprep.mubr.bf16.mxu0 %v936
    %1352 = vmatmul.mubr.bf16.gmra.mrb[0].mxu0 %v935
    %v1353 = vpop.f32.mrb[0].mxu0
    %v1354 = vadd.f32 %v949, %v1353
    %v1355 = vpop.f32.mrb[0].mxu0
    %v1356 = vadd.f32 %v953, %v1355
    %v1357 = vpop.f32.mrb[0].mxu0
    %v1358 = vpop.f32.mrb[0].mxu0
    %1359 = vdwg.mxu0
    %v1360 = vxor.u32 %v1313, 2147483648
    %v1361 = vxor.u32 %v1315, 2147483648
    %v1362 = vxor.u32 %v1354, 2147483648
    %v1363 = vmul.f32 %v1360, 1.442695
    %v1364 = vpow.pop %v1363
    %v1365 = vmul.f32 %v1361, 1.442695
    %v1366 = vpow.pop %v1365
    %v1367 = vmul.f32 %v1362, 1.442695
    %v1368 = vpow.pop %v1367
    %v1369 = vadd.f32 %v1364, 1.0
    %v1370 = vadd.f32 %v1366, 1.0
    %v1371 = vadd.f32 %v1368, 1.0
    %v1372 = vrcp.pop %v1369
    %v1373 = vmul.f32 1.0, %v1372
    %v1374 = vrcp.pop %v1370
    %v1375 = vmul.f32 1.0, %v1374
    %v1376 = vrcp.pop %v1371
    %v1377 = vmul.f32 1.0, %v1376
    %v1378 = vtanh.pop %v1356
    %v1379 = vmul.f32 %v1375, 0.0
    %v1380 = vmul.f32 %v1373, %v1378
    %v1381 = vadd.f32 %v1379, %v1380
    %v1382 = vtanh.pop %v1381
    %v1383 = vmul.f32 %v1377, %v1382
    %1384 = vst [vmem:[#allocation17] sm:$0xff] %v1383
    %v1385 = vld [vmem:[#allocation2 + $0x20] sm:$0xff]
    %v1386 = vld [vmem:[#allocation2 + $0x28] sm:$0xff]
    %v1387 = vld [vmem:[#allocation2 + $0x30] sm:$0xff]
    %v1388 = vld [vmem:[#allocation2 + $0x38] sm:$0xff]
    %1389 = vmatprep.subr.bf16.mxu0 %v762
    %1390 = vmatpush1.bf16.msra.mxu0 %v761
    %1391 = vmatprep.subr.bf16.mxu0 %v766
    %1392 = vmatpush1.bf16.msra.mxu0 %v765
    %1393 = vmatprep.subr.bf16.mxu0 %v770
    %1394 = vmatpush1.bf16.msra.mxu0 %v769
    %1395 = vmatprep.subr.bf16.mxu0 %v774
    %1396 = vmatpush1.bf16.msra.mxu0 %v773
    %1397 = vmatprep.subr.bf16.mxu0 %v778
    %1398 = vmatpush1.bf16.msra.mxu0 %v777
    %1399 = vmatprep.subr.bf16.mxu0 %v782
    %1400 = vmatpush1.bf16.msra.mxu0 %v781
    %1401 = vmatprep.subr.bf16.mxu0 %v786
    %1402 = vmatpush1.bf16.msra.mxu0 %v785
    %1403 = vmatprep.subr.bf16.mxu0 %v790
    %1404 = vmatpush1.bf16.msra.mxu0 %v789
    %1405 = vmatprep.subr.bf16.mxu0 0
    %1406 = vmatpush1.bf16.msra.mxu0 0
    %1407 = vmatprep.subr.bf16.mxu0 0
    %1408 = vmatpush1.bf16.msra.mxu0 0
    %1409 = vmatprep.subr.bf16.mxu0 0
    %1410 = vmatpush1.bf16.msra.mxu0 0
    %1411 = vmatprep.subr.bf16.mxu0 0
    %1412 = vmatpush1.bf16.msra.mxu0 0
    %1413 = vmatprep.subr.bf16.mxu0 0
    %1414 = vmatpush1.bf16.msra.mxu0 0
    %1415 = vmatprep.subr.bf16.mxu0 0
    %1416 = vmatpush1.bf16.msra.mxu0 0
    %1417 = vmatprep.subr.bf16.mxu0 0
    %1418 = vmatpush1.bf16.msra.mxu0 0
    %1419 = vmatprep.subr.bf16.mxu0 0
    %1420 = vmatpush1.bf16.msra.mxu0 0
    %1421 = vmatprep.mubr.bf16.mxu0 0
    %1422 = vmatmul.mubr.bf16.gmra.mrb[0].mxu0 %v935
    %v1423 = vpop.f32.mrb[0].mxu0
    %v1424 = vadd.f32 0.0, %v1423
    %v1425 = vpop.f32.mrb[0].mxu0
    %v1426 = vadd.f32 0.0, %v1425
    %v1427 = vpop.f32.mrb[0].mxu0
    %v1428 = vpop.f32.mrb[0].mxu0
    %1429 = vdwg.mxu0
    %1430 = vmatprep.subr.bf16.mxu0 %v764
    %1431 = vmatpush1.bf16.msra.mxu0 %v763
    %1432 = vmatprep.subr.bf16.mxu0 %v768
    %1433 = vmatpush1.bf16.msra.mxu0 %v767
    %1434 = vmatprep.subr.bf16.mxu0 %v772
    %1435 = vmatpush1.bf16.msra.mxu0 %v771
    %1436 = vmatprep.subr.bf16.mxu0 %v776
    %1437 = vmatpush1.bf16.msra.mxu0 %v775
    %1438 = vmatprep.subr.bf16.mxu0 %v780
    %1439 = vmatpush1.bf16.msra.mxu0 %v779
    %1440 = vmatprep.subr.bf16.mxu0 %v784
    %1441 = vmatpush1.bf16.msra.mxu0 %v783
    %1442 = vmatprep.subr.bf16.mxu0 %v788
    %1443 = vmatpush1.bf16.msra.mxu0 %v787
    %1444 = vmatprep.subr.bf16.mxu0 %v792
    %1445 = vmatpush1.bf16.msra.mxu0 %v791
    %1446 = vmatprep.subr.bf16.mxu0 0
    %1447 = vmatpush1.bf16.msra.mxu0 0
    %1448 = vmatprep.subr.bf16.mxu0 0
    %1449 = vmatpush1.bf16.msra.mxu0 0
    %1450 = vmatprep.subr.bf16.mxu0 0
    %1451 = vmatpush1.bf16.msra.mxu0 0
    %1452 = vmatprep.subr.bf16.mxu0 0
    %1453 = vmatpush1.bf16.msra.mxu0 0
    %1454 = vmatprep.subr.bf16.mxu0 0
    %1455 = vmatpush1.bf16.msra.mxu0 0
    %1456 = vmatprep.subr.bf16.mxu0 0
    %1457 = vmatpush1.bf16.msra.mxu0 0
    %1458 = vmatprep.subr.bf16.mxu0 0
    %1459 = vmatpush1.bf16.msra.mxu0 0
    %1460 = vmatprep.subr.bf16.mxu0 0
    %1461 = vmatpush1.bf16.msra.mxu0 0
    %1462 = vmatprep.mubr.bf16.mxu0 0
    %1463 = vmatmul.mubr.bf16.gmra.mrb[0].mxu0 %v935
    %v1464 = vpop.f32.mrb[0].mxu0
    %v1465 = vadd.f32 0.0, %v1464
    %v1466 = vpop.f32.mrb[0].mxu0
    %v1467 = vadd.f32 0.0, %v1466
    %v1468 = vpop.f32.mrb[0].mxu0
    %v1469 = vpop.f32.mrb[0].mxu0
    %1470 = vdwg.mxu0
    %v1471 = vadd.f32 %v1385, %v1424
    %v1472 = vadd.f32 %v1386, %v1426
    %v1473 = vadd.f32 %v1387, %v1465
    %v1474 = vadd.f32 %v1388, %v1467
    %v1475 = vxor.u32 %v1471, 2147483648
    %v1476 = vxor.u32 %v1472, 2147483648
    %v1477 = vxor.u32 %v1473, 2147483648
    %v1478 = vmul.f32 %v1475, 1.442695
    %v1479 = vpow.pop %v1478
    %v1480 = vmul.f32 %v1476, 1.442695
    %v1481 = vpow.pop %v1480
    %v1482 = vmul.f32 %v1477, 1.442695
    %v1483 = vpow.pop %v1482
    %v1484 = vadd.f32 %v1479, 1.0
    %v1485 = vadd.f32 %v1481, 1.0
    %v1486 = vadd.f32 %v1483, 1.0
    %v1487 = vrcp.pop %v1484
    %v1488 = vmul.f32 1.0, %v1487
    %v1489 = vrcp.pop %v1485
    %v1490 = vmul.f32 1.0, %v1489
    %v1491 = vrcp.pop %v1486
    %v1492 = vmul.f32 1.0, %v1491
    %v1493 = vtanh.pop %v1474
    %v1494 = vmul.f32 %v1490, %v932
    %v1495 = vmul.f32 %v1488, %v1493
    %v1496 = vadd.f32 %v1494, %v1495
    %v1497 = vtanh.pop %v1496
    %v1498 = vmul.f32 %v1492, %v1497
    %v1499 = vpack.c.bf16 %v1498, %v1498
    %v1500 = vpack.c.bf16 %v1383, %v1383
    %1501 = vmatprep.subr.bf16.mxu0 %v1151
    %1502 = vmatpush1.bf16.msra.mxu0 %v1150
    %1503 = vmatprep.subr.bf16.mxu0 %v1155
    %1504 = vmatpush1.bf16.msra.mxu0 %v1154
    %1505 = vmatprep.subr.bf16.mxu0 %v1159
    %1506 = vmatpush1.bf16.msra.mxu0 %v1158
    %1507 = vmatprep.subr.bf16.mxu0 %v1163
    %1508 = vmatpush1.bf16.msra.mxu0 %v1162
    %1509 = vmatprep.subr.bf16.mxu0 %v1167
    %1510 = vmatpush1.bf16.msra.mxu0 %v1166
    %1511 = vmatprep.subr.bf16.mxu0 %v1171
    %1512 = vmatpush1.bf16.msra.mxu0 %v1170
    %1513 = vmatprep.subr.bf16.mxu0 %v1175
    %1514 = vmatpush1.bf16.msra.mxu0 %v1174
    %1515 = vmatprep.subr.bf16.mxu0 %v1179
    %1516 = vmatpush1.bf16.msra.mxu0 %v1178
    %1517 = vmatprep.subr.bf16.mxu0 %v1183
    %1518 = vmatpush1.bf16.msra.mxu0 %v1182
    %1519 = vmatprep.subr.bf16.mxu0 %v1187
    %1520 = vmatpush1.bf16.msra.mxu0 %v1186
    %1521 = vmatprep.subr.bf16.mxu0 %v1191
    %1522 = vmatpush1.bf16.msra.mxu0 %v1190
    %1523 = vmatprep.subr.bf16.mxu0 %v1195
    %1524 = vmatpush1.bf16.msra.mxu0 %v1194
    %1525 = vmatprep.subr.bf16.mxu0 %v1199
    %1526 = vmatpush1.bf16.msra.mxu0 %v1198
    %1527 = vmatprep.subr.bf16.mxu0 %v1203
    %1528 = vmatpush1.bf16.msra.mxu0 %v1202
    %1529 = vmatprep.subr.bf16.mxu0 %v1207
    %1530 = vmatpush1.bf16.msra.mxu0 %v1206
    %1531 = vmatprep.subr.bf16.mxu0 %v1211
    %1532 = vmatpush1.bf16.msra.mxu0 %v1210
    %1533 = vmatprep.mubr.bf16.mxu0 %v1500
    %1534 = vmatmul.mubr.bf16.gmra.mrb[0].mxu0 %v1499
    %v1535 = vpop.f32.mrb[0].mxu0
    %v1536 = vadd.f32 %v941, %v1535
    %v1537 = vpop.f32.mrb[0].mxu0
    %v1538 = vadd.f32 %v945, %v1537
    %v1539 = vpop.f32.mrb[0].mxu0
    %v1540 = vpop.f32.mrb[0].mxu0
    %1541 = vdwg.mxu0
    %1542 = vmatprep.subr.bf16.mxu0 %v1153
    %1543 = vmatpush1.bf16.msra.mxu0 %v1152
    %1544 = vmatprep.subr.bf16.mxu0 %v1157
    %1545 = vmatpush1.bf16.msra.mxu0 %v1156
    %1546 = vmatprep.subr.bf16.mxu0 %v1161
    %1547 = vmatpush1.bf16.msra.mxu0 %v1160
    %1548 = vmatprep.subr.bf16.mxu0 %v1165
    %1549 = vmatpush1.bf16.msra.mxu0 %v1164
    %1550 = vmatprep.subr.bf16.mxu0 %v1169
    %1551 = vmatpush1.bf16.msra.mxu0 %v1168
    %1552 = vmatprep.subr.bf16.mxu0 %v1173
    %1553 = vmatpush1.bf16.msra.mxu0 %v1172
    %1554 = vmatprep.subr.bf16.mxu0 %v1177
    %1555 = vmatpush1.bf16.msra.mxu0 %v1176
    %1556 = vmatprep.subr.bf16.mxu0 %v1181
    %1557 = vmatpush1.bf16.msra.mxu0 %v1180
    %1558 = vmatprep.subr.bf16.mxu0 %v1185
    %1559 = vmatpush1.bf16.msra.mxu0 %v1184
    %1560 = vmatprep.subr.bf16.mxu0 %v1189
    %1561 = vmatpush1.bf16.msra.mxu0 %v1188
    %1562 = vmatprep.subr.bf16.mxu0 %v1193
    %1563 = vmatpush1.bf16.msra.mxu0 %v1192
    %1564 = vmatprep.subr.bf16.mxu0 %v1197
    %1565 = vmatpush1.bf16.msra.mxu0 %v1196
    %1566 = vmatprep.subr.bf16.mxu0 %v1201
    %1567 = vmatpush1.bf16.msra.mxu0 %v1200
    %1568 = vmatprep.subr.bf16.mxu0 %v1205
    %1569 = vmatpush1.bf16.msra.mxu0 %v1204
    %1570 = vmatprep.subr.bf16.mxu0 %v1209
    %1571 = vmatpush1.bf16.msra.mxu0 %v1208
    %1572 = vmatprep.subr.bf16.mxu0 %v1213
    %1573 = vmatpush1.bf16.msra.mxu0 %v1212
    %1574 = vmatprep.mubr.bf16.mxu0 %v1500
    %1575 = vmatmul.mubr.bf16.gmra.mrb[0].mxu0 %v1499
    %v1576 = vpop.f32.mrb[0].mxu0
    %v1577 = vadd.f32 %v949, %v1576
    %v1578 = vpop.f32.mrb[0].mxu0
    %v1579 = vadd.f32 %v953, %v1578
    %v1580 = vpop.f32.mrb[0].mxu0
    %v1581 = vpop.f32.mrb[0].mxu0
    %1582 = vdwg.mxu0
    %v1583 = vxor.u32 %v1536, 2147483648
    %v1584 = vxor.u32 %v1538, 2147483648
    %v1585 = vxor.u32 %v1577, 2147483648
    %v1586 = vmul.f32 %v1583, 1.442695
    %v1587 = vpow.pop %v1586
    %v1588 = vmul.f32 %v1584, 1.442695
    %v1589 = vpow.pop %v1588
    %v1590 = vmul.f32 %v1585, 1.442695
    %v1591 = vpow.pop %v1590
    %v1592 = vadd.f32 %v1587, 1.0
    %v1593 = vadd.f32 %v1589, 1.0
    %v1594 = vadd.f32 %v1591, 1.0
    %v1595 = vrcp.pop %v1592
    %v1596 = vmul.f32 1.0, %v1595
    %v1597 = vrcp.pop %v1593
    %v1598 = vmul.f32 1.0, %v1597
    %v1599 = vrcp.pop %v1594
    %v1600 = vmul.f32 1.0, %v1599
    %v1601 = vtanh.pop %v1579
    %v1602 = vmul.f32 %v1598, %v1381
    %v1603 = vmul.f32 %v1596, %v1601
    %v1604 = vadd.f32 %v1602, %v1603
    %v1605 = vtanh.pop %v1604
    %v1606 = vmul.f32 %v1600, %v1605
    %s1607 = scalar_lea.vmem [#allocation17], 8
    %1608 = vst [vmem:[%s1607] sm:$0xff] %v1606
    %v1609 = vld [vmem:[#allocation2 + $0x40] sm:$0xff]
    %v1610 = vld [vmem:[#allocation2 + $0x48] sm:$0xff]
    %v1611 = vld [vmem:[#allocation2 + $0x50] sm:$0xff]
    %v1612 = vld [vmem:[#allocation2 + $0x58] sm:$0xff]
    %1613 = vmatprep.subr.bf16.mxu0 %v762
    %1614 = vmatpush1.bf16.msra.mxu0 %v761
    %1615 = vmatprep.subr.bf16.mxu0 %v766
    %1616 = vmatpush1.bf16.msra.mxu0 %v765
    %1617 = vmatprep.subr.bf16.mxu0 %v770
    %1618 = vmatpush1.bf16.msra.mxu0 %v769
    %1619 = vmatprep.subr.bf16.mxu0 %v774
    %1620 = vmatpush1.bf16.msra.mxu0 %v773
    %1621 = vmatprep.subr.bf16.mxu0 %v778
    %1622 = vmatpush1.bf16.msra.mxu0 %v777
    %1623 = vmatprep.subr.bf16.mxu0 %v782
    %1624 = vmatpush1.bf16.msra.mxu0 %v781
    %1625 = vmatprep.subr.bf16.mxu0 %v786
    %1626 = vmatpush1.bf16.msra.mxu0 %v785
    %1627 = vmatprep.subr.bf16.mxu0 %v790
    %1628 = vmatpush1.bf16.msra.mxu0 %v789
    %1629 = vmatprep.subr.bf16.mxu0 0
    %1630 = vmatpush1.bf16.msra.mxu0 0
    %1631 = vmatprep.subr.bf16.mxu0 0
    %1632 = vmatpush1.bf16.msra.mxu0 0
    %1633 = vmatprep.subr.bf16.mxu0 0
    %1634 = vmatpush1.bf16.msra.mxu0 0
    %1635 = vmatprep.subr.bf16.mxu0 0
    %1636 = vmatpush1.bf16.msra.mxu0 0
    %1637 = vmatprep.subr.bf16.mxu0 0
    %1638 = vmatpush1.bf16.msra.mxu0 0
    %1639 = vmatprep.subr.bf16.mxu0 0
    %1640 = vmatpush1.bf16.msra.mxu0 0
    %1641 = vmatprep.subr.bf16.mxu0 0
    %1642 = vmatpush1.bf16.msra.mxu0 0
    %1643 = vmatprep.subr.bf16.mxu0 0
    %1644 = vmatpush1.bf16.msra.mxu0 0
    %1645 = vmatprep.mubr.bf16.mxu0 0
    %1646 = vmatmul.mubr.bf16.gmra.mrb[0].mxu0 %v1499
    %v1647 = vpop.f32.mrb[0].mxu0
    %v1648 = vadd.f32 0.0, %v1647
    %v1649 = vpop.f32.mrb[0].mxu0
    %v1650 = vadd.f32 0.0, %v1649
    %v1651 = vpop.f32.mrb[0].mxu0
    %v1652 = vpop.f32.mrb[0].mxu0
    %1653 = vdwg.mxu0
    %1654 = vmatprep.subr.bf16.mxu0 %v764
    %1655 = vmatpush1.bf16.msra.mxu0 %v763
    %1656 = vmatprep.subr.bf16.mxu0 %v768
    %1657 = vmatpush1.bf16.msra.mxu0 %v767
    %1658 = vmatprep.subr.bf16.mxu0 %v772
    %1659 = vmatpush1.bf16.msra.mxu0 %v771
    %1660 = vmatprep.subr.bf16.mxu0 %v776
    %1661 = vmatpush1.bf16.msra.mxu0 %v775
    %1662 = vmatprep.subr.bf16.mxu0 %v780
    %1663 = vmatpush1.bf16.msra.mxu0 %v779
    %1664 = vmatprep.subr.bf16.mxu0 %v784
    %1665 = vmatpush1.bf16.msra.mxu0 %v783
    %1666 = vmatprep.subr.bf16.mxu0 %v788
    %1667 = vmatpush1.bf16.msra.mxu0 %v787
    %1668 = vmatprep.subr.bf16.mxu0 %v792
    %1669 = vmatpush1.bf16.msra.mxu0 %v791
    %1670 = vmatprep.subr.bf16.mxu0 0
    %1671 = vmatpush1.bf16.msra.mxu0 0
    %1672 = vmatprep.subr.bf16.mxu0 0
    %1673 = vmatpush1.bf16.msra.mxu0 0
    %1674 = vmatprep.subr.bf16.mxu0 0
    %1675 = vmatpush1.bf16.msra.mxu0 0
    %1676 = vmatprep.subr.bf16.mxu0 0
    %1677 = vmatpush1.bf16.msra.mxu0 0
    %1678 = vmatprep.subr.bf16.mxu0 0
    %1679 = vmatpush1.bf16.msra.mxu0 0
    %1680 = vmatprep.subr.bf16.mxu0 0
    %1681 = vmatpush1.bf16.msra.mxu0 0
    %1682 = vmatprep.subr.bf16.mxu0 0
    %1683 = vmatpush1.bf16.msra.mxu0 0
    %1684 = vmatprep.subr.bf16.mxu0 0
    %1685 = vmatpush1.bf16.msra.mxu0 0
    %1686 = vmatprep.mubr.bf16.mxu0 0
    %1687 = vmatmul.mubr.bf16.gmra.mrb[0].mxu0 %v1499
    %v1688 = vpop.f32.mrb[0].mxu0
    %v1689 = vadd.f32 0.0, %v1688
    %v1690 = vpop.f32.mrb[0].mxu0
    %v1691 = vadd.f32 0.0, %v1690
    %v1692 = vpop.f32.mrb[0].mxu0
    %v1693 = vpop.f32.mrb[0].mxu0
    %1694 = vdwg.mxu0
    %v1695 = vadd.f32 %v1609, %v1648
    %v1696 = vadd.f32 %v1610, %v1650
    %v1697 = vadd.f32 %v1611, %v1689
    %v1698 = vadd.f32 %v1612, %v1691
    %v1699 = vxor.u32 %v1695, 2147483648
    %v1700 = vxor.u32 %v1696, 2147483648
    %v1701 = vxor.u32 %v1697, 2147483648
    %v1702 = vmul.f32 %v1699, 1.442695
    %v1703 = vpow.pop %v1702
    %v1704 = vmul.f32 %v1700, 1.442695
    %v1705 = vpow.pop %v1704
    %v1706 = vmul.f32 %v1701, 1.442695
    %v1707 = vpow.pop %v1706
    %v1708 = vadd.f32 %v1703, 1.0
    %v1709 = vadd.f32 %v1705, 1.0
    %v1710 = vadd.f32 %v1707, 1.0
    %v1711 = vrcp.pop %v1708
    %v1712 = vmul.f32 1.0, %v1711
    %v1713 = vrcp.pop %v1709
    %v1714 = vmul.f32 1.0, %v1713
    %v1715 = vrcp.pop %v1710
    %v1716 = vmul.f32 1.0, %v1715
    %v1717 = vtanh.pop %v1698
    %v1718 = vmul.f32 %v1714, %v1496
    %v1719 = vmul.f32 %v1712, %v1717
    %v1720 = vadd.f32 %v1718, %v1719
    %v1721 = vtanh.pop %v1720
    %v1722 = vmul.f32 %v1716, %v1721
    %v1723 = vpack.c.bf16 %v1722, %v1722
    %v1724 = vpack.c.bf16 %v1606, %v1606
    %1725 = vmatprep.subr.bf16.mxu0 %v1151
    %1726 = vmatpush1.bf16.msra.mxu0 %v1150
    %1727 = vmatprep.subr.bf16.mxu0 %v1155
    %1728 = vmatpush1.bf16.msra.mxu0 %v1154
    %1729 = vmatprep.subr.bf16.mxu0 %v1159
    %1730 = vmatpush1.bf16.msra.mxu0 %v1158
    %1731 = vmatprep.subr.bf16.mxu0 %v1163
    %1732 = vmatpush1.bf16.msra.mxu0 %v1162
    %1733 = vmatprep.subr.bf16.mxu0 %v1167
    %1734 = vmatpush1.bf16.msra.mxu0 %v1166
    %1735 = vmatprep.subr.bf16.mxu0 %v1171
    %1736 = vmatpush1.bf16.msra.mxu0 %v1170
    %1737 = vmatprep.subr.bf16.mxu0 %v1175
    %1738 = vmatpush1.bf16.msra.mxu0 %v1174
    %1739 = vmatprep.subr.bf16.mxu0 %v1179
    %1740 = vmatpush1.bf16.msra.mxu0 %v1178
    %1741 = vmatprep.subr.bf16.mxu0 %v1183
    %1742 = vmatpush1.bf16.msra.mxu0 %v1182
    %1743 = vmatprep.subr.bf16.mxu0 %v1187
    %1744 = vmatpush1.bf16.msra.mxu0 %v1186
    %1745 = vmatprep.subr.bf16.mxu0 %v1191
    %1746 = vmatpush1.bf16.msra.mxu0 %v1190
    %1747 = vmatprep.subr.bf16.mxu0 %v1195
    %1748 = vmatpush1.bf16.msra.mxu0 %v1194
    %1749 = vmatprep.subr.bf16.mxu0 %v1199
    %1750 = vmatpush1.bf16.msra.mxu0 %v1198
    %1751 = vmatprep.subr.bf16.mxu0 %v1203
    %1752 = vmatpush1.bf16.msra.mxu0 %v1202
    %1753 = vmatprep.subr.bf16.mxu0 %v1207
    %1754 = vmatpush1.bf16.msra.mxu0 %v1206
    %1755 = vmatprep.subr.bf16.mxu0 %v1211
    %1756 = vmatpush1.bf16.msra.mxu0 %v1210
    %1757 = vmatprep.mubr.bf16.mxu0 %v1724
    %1758 = vmatmul.mubr.bf16.gmra.mrb[0].mxu0 %v1723
    %v1759 = vpop.f32.mrb[0].mxu0
    %v1760 = vadd.f32 %v941, %v1759
    %v1761 = vpop.f32.mrb[0].mxu0
    %v1762 = vadd.f32 %v945, %v1761
    %v1763 = vpop.f32.mrb[0].mxu0
    %v1764 = vpop.f32.mrb[0].mxu0
    %1765 = vdwg.mxu0
    %1766 = vmatprep.subr.bf16.mxu0 %v1153
    %1767 = vmatpush1.bf16.msra.mxu0 %v1152
    %1768 = vmatprep.subr.bf16.mxu0 %v1157
    %1769 = vmatpush1.bf16.msra.mxu0 %v1156
    %1770 = vmatprep.subr.bf16.mxu0 %v1161
    %1771 = vmatpush1.bf16.msra.mxu0 %v1160
    %1772 = vmatprep.subr.bf16.mxu0 %v1165
    %1773 = vmatpush1.bf16.msra.mxu0 %v1164
    %1774 = vmatprep.subr.bf16.mxu0 %v1169
    %1775 = vmatpush1.bf16.msra.mxu0 %v1168
    %1776 = vmatprep.subr.bf16.mxu0 %v1173
    %1777 = vmatpush1.bf16.msra.mxu0 %v1172
    %1778 = vmatprep.subr.bf16.mxu0 %v1177
    %1779 = vmatpush1.bf16.msra.mxu0 %v1176
    %1780 = vmatprep.subr.bf16.mxu0 %v1181
    %1781 = vmatpush1.bf16.msra.mxu0 %v1180
    %1782 = vmatprep.subr.bf16.mxu0 %v1185
    %1783 = vmatpush1.bf16.msra.mxu0 %v1184
    %1784 = vmatprep.subr.bf16.mxu0 %v1189
    %1785 = vmatpush1.bf16.msra.mxu0 %v1188
    %1786 = vmatprep.subr.bf16.mxu0 %v1193
    %1787 = vmatpush1.bf16.msra.mxu0 %v1192
    %1788 = vmatprep.subr.bf16.mxu0 %v1197
    %1789 = vmatpush1.bf16.msra.mxu0 %v1196
    %1790 = vmatprep.subr.bf16.mxu0 %v1201
    %1791 = vmatpush1.bf16.msra.mxu0 %v1200
    %1792 = vmatprep.subr.bf16.mxu0 %v1205
    %1793 = vmatpush1.bf16.msra.mxu0 %v1204
    %1794 = vmatprep.subr.bf16.mxu0 %v1209
    %1795 = vmatpush1.bf16.msra.mxu0 %v1208
    %1796 = vmatprep.subr.bf16.mxu0 %v1213
    %1797 = vmatpush1.bf16.msra.mxu0 %v1212
    %1798 = vmatprep.mubr.bf16.mxu0 %v1724
    %1799 = vmatmul.mubr.bf16.gmra.mrb[0].mxu0 %v1723
    %v1800 = vpop.f32.mrb[0].mxu0
    %v1801 = vadd.f32 %v949, %v1800
    %v1802 = vpop.f32.mrb[0].mxu0
    %v1803 = vadd.f32 %v953, %v1802
    %v1804 = vpop.f32.mrb[0].mxu0
    %v1805 = vpop.f32.mrb[0].mxu0
    %1806 = vdwg.mxu0
    %v1807 = vxor.u32 %v1760, 2147483648
    %v1808 = vxor.u32 %v1762, 2147483648
    %v1809 = vxor.u32 %v1801, 2147483648
    %v1810 = vmul.f32 %v1807, 1.442695
    %v1811 = vpow.pop %v1810
    %v1812 = vmul.f32 %v1808, 1.442695
    %v1813 = vpow.pop %v1812
    %v1814 = vmul.f32 %v1809, 1.442695
    %v1815 = vpow.pop %v1814
    %v1816 = vadd.f32 %v1811, 1.0
    %v1817 = vadd.f32 %v1813, 1.0
    %v1818 = vadd.f32 %v1815, 1.0
    %v1819 = vrcp.pop %v1816
    %v1820 = vmul.f32 1.0, %v1819
    %v1821 = vrcp.pop %v1817
    %v1822 = vmul.f32 1.0, %v1821
    %v1823 = vrcp.pop %v1818
    %v1824 = vmul.f32 1.0, %v1823
    %v1825 = vtanh.pop %v1803
    %v1826 = vmul.f32 %v1822, %v1604
    %v1827 = vmul.f32 %v1820, %v1825
    %v1828 = vadd.f32 %v1826, %v1827
    %v1829 = vtanh.pop %v1828
    %v1830 = vmul.f32 %v1824, %v1829
    %s1831 = scalar_lea.vmem [#allocation17], 16
    %1832 = vst [vmem:[%s1831] sm:$0xff] %v1830
    %v1833 = vld [vmem:[#allocation2 + $0x60] sm:$0xff]
    %v1834 = vld [vmem:[#allocation2 + $0x68] sm:$0xff]
    %v1835 = vld [vmem:[#allocation2 + $0x70] sm:$0xff]
    %v1836 = vld [vmem:[#allocation2 + $0x78] sm:$0xff]
    %1837 = vmatprep.subr.bf16.mxu0 %v762
    %1838 = vmatpush1.bf16.msra.mxu0 %v761
    %1839 = vmatprep.subr.bf16.mxu0 %v766
    %1840 = vmatpush1.bf16.msra.mxu0 %v765
    %1841 = vmatprep.subr.bf16.mxu0 %v770
    %1842 = vmatpush1.bf16.msra.mxu0 %v769
    %1843 = vmatprep.subr.bf16.mxu0 %v774
    %1844 = vmatpush1.bf16.msra.mxu0 %v773
    %1845 = vmatprep.subr.bf16.mxu0 %v778
    %1846 = vmatpush1.bf16.msra.mxu0 %v777
    %1847 = vmatprep.subr.bf16.mxu0 %v782
    %1848 = vmatpush1.bf16.msra.mxu0 %v781
    %1849 = vmatprep.subr.bf16.mxu0 %v786
    %1850 = vmatpush1.bf16.msra.mxu0 %v785
    %1851 = vmatprep.subr.bf16.mxu0 %v790
    %1852 = vmatpush1.bf16.msra.mxu0 %v789
    %1853 = vmatprep.subr.bf16.mxu0 0
    %1854 = vmatpush1.bf16.msra.mxu0 0
    %1855 = vmatprep.subr.bf16.mxu0 0
    %1856 = vmatpush1.bf16.msra.mxu0 0
    %1857 = vmatprep.subr.bf16.mxu0 0
    %1858 = vmatpush1.bf16.msra.mxu0 0
    %1859 = vmatprep.subr.bf16.mxu0 0
    %1860 = vmatpush1.bf16.msra.mxu0 0
    %1861 = vmatprep.subr.bf16.mxu0 0
    %1862 = vmatpush1.bf16.msra.mxu0 0
    %1863 = vmatprep.subr.bf16.mxu0 0
    %1864 = vmatpush1.bf16.msra.mxu0 0
    %1865 = vmatprep.subr.bf16.mxu0 0
    %1866 = vmatpush1.bf16.msra.mxu0 0
    %1867 = vmatprep.subr.bf16.mxu0 0
    %1868 = vmatpush1.bf16.msra.mxu0 0
    %1869 = vmatprep.mubr.bf16.mxu0 0
    %1870 = vmatmul.mubr.bf16.gmra.mrb[0].mxu0 %v1723
    %v1871 = vpop.f32.mrb[0].mxu0
    %v1872 = vadd.f32 0.0, %v1871
    %v1873 = vpop.f32.mrb[0].mxu0
    %v1874 = vadd.f32 0.0, %v1873
    %v1875 = vpop.f32.mrb[0].mxu0
    %v1876 = vpop.f32.mrb[0].mxu0
    %1877 = vdwg.mxu0
    %1878 = vmatprep.subr.bf16.mxu0 %v764
    %1879 = vmatpush1.bf16.msra.mxu0 %v763
    %1880 = vmatprep.subr.bf16.mxu0 %v768
    %1881 = vmatpush1.bf16.msra.mxu0 %v767
    %1882 = vmatprep.subr.bf16.mxu0 %v772
    %1883 = vmatpush1.bf16.msra.mxu0 %v771
    %1884 = vmatprep.subr.bf16.mxu0 %v776
    %1885 = vmatpush1.bf16.msra.mxu0 %v775
    %1886 = vmatprep.subr.bf16.mxu0 %v780
    %1887 = vmatpush1.bf16.msra.mxu0 %v779
    %1888 = vmatprep.subr.bf16.mxu0 %v784
    %1889 = vmatpush1.bf16.msra.mxu0 %v783
    %1890 = vmatprep.subr.bf16.mxu0 %v788
    %1891 = vmatpush1.bf16.msra.mxu0 %v787
    %1892 = vmatprep.subr.bf16.mxu0 %v792
    %1893 = vmatpush1.bf16.msra.mxu0 %v791
    %1894 = vmatprep.subr.bf16.mxu0 0
    %1895 = vmatpush1.bf16.msra.mxu0 0
    %1896 = vmatprep.subr.bf16.mxu0 0
    %1897 = vmatpush1.bf16.msra.mxu0 0
    %1898 = vmatprep.subr.bf16.mxu0 0
    %1899 = vmatpush1.bf16.msra.mxu0 0
    %1900 = vmatprep.subr.bf16.mxu0 0
    %1901 = vmatpush1.bf16.msra.mxu0 0
    %1902 = vmatprep.subr.bf16.mxu0 0
    %1903 = vmatpush1.bf16.msra.mxu0 0
    %1904 = vmatprep.subr.bf16.mxu0 0
    %1905 = vmatpush1.bf16.msra.mxu0 0
    %1906 = vmatprep.subr.bf16.mxu0 0
    %1907 = vmatpush1.bf16.msra.mxu0 0
    %1908 = vmatprep.subr.bf16.mxu0 0
    %1909 = vmatpush1.bf16.msra.mxu0 0
    %1910 = vmatprep.mubr.bf16.mxu0 0
    %1911 = vmatmul.mubr.bf16.gmra.mrb[0].mxu0 %v1723
    %v1912 = vpop.f32.mrb[0].mxu0
    %v1913 = vadd.f32 0.0, %v1912
    %v1914 = vpop.f32.mrb[0].mxu0
    %v1915 = vadd.f32 0.0, %v1914
    %v1916 = vpop.f32.mrb[0].mxu0
    %v1917 = vpop.f32.mrb[0].mxu0
    %1918 = vdwg.mxu0
    %v1919 = vadd.f32 %v1833, %v1872
    %v1920 = vadd.f32 %v1834, %v1874
    %v1921 = vadd.f32 %v1835, %v1913
    %v1922 = vadd.f32 %v1836, %v1915
    %v1923 = vxor.u32 %v1919, 2147483648
    %v1924 = vxor.u32 %v1920, 2147483648
    %v1925 = vxor.u32 %v1921, 2147483648
    %v1926 = vmul.f32 %v1923, 1.442695
    %v1927 = vpow.pop %v1926
    %v1928 = vmul.f32 %v1924, 1.442695
    %v1929 = vpow.pop %v1928
    %v1930 = vmul.f32 %v1925, 1.442695
    %v1931 = vpow.pop %v1930
    %v1932 = vadd.f32 %v1927, 1.0
    %v1933 = vadd.f32 %v1929, 1.0
    %v1934 = vadd.f32 %v1931, 1.0
    %v1935 = vrcp.pop %v1932
    %v1936 = vmul.f32 1.0, %v1935
    %v1937 = vrcp.pop %v1933
    %v1938 = vmul.f32 1.0, %v1937
    %v1939 = vrcp.pop %v1934
    %v1940 = vmul.f32 1.0, %v1939
    %v1941 = vtanh.pop %v1922
    %v1942 = vmul.f32 %v1938, %v1720
    %v1943 = vmul.f32 %v1936, %v1941
    %v1944 = vadd.f32 %v1942, %v1943
    %v1945 = vtanh.pop %v1944
    %v1946 = vmul.f32 %v1940, %v1945
    %v1947 = vpack.c.bf16 %v1946, %v1946
    %v1948 = vpack.c.bf16 %v1830, %v1830
    %1949 = vmatprep.subr.bf16.mxu0 %v1151
    %1950 = vmatpush1.bf16.msra.mxu0 %v1150
    %1951 = vmatprep.subr.bf16.mxu0 %v1155
    %1952 = vmatpush1.bf16.msra.mxu0 %v1154
    %1953 = vmatprep.subr.bf16.mxu0 %v1159
    %1954 = vmatpush1.bf16.msra.mxu0 %v1158
    %1955 = vmatprep.subr.bf16.mxu0 %v1163
    %1956 = vmatpush1.bf16.msra.mxu0 %v1162
    %1957 = vmatprep.subr.bf16.mxu0 %v1167
    %1958 = vmatpush1.bf16.msra.mxu0 %v1166
    %1959 = vmatprep.subr.bf16.mxu0 %v1171
    %1960 = vmatpush1.bf16.msra.mxu0 %v1170
    %1961 = vmatprep.subr.bf16.mxu0 %v1175
    %1962 = vmatpush1.bf16.msra.mxu0 %v1174
    %1963 = vmatprep.subr.bf16.mxu0 %v1179
    %1964 = vmatpush1.bf16.msra.mxu0 %v1178
    %1965 = vmatprep.subr.bf16.mxu0 %v1183
    %1966 = vmatpush1.bf16.msra.mxu0 %v1182
    %1967 = vmatprep.subr.bf16.mxu0 %v1187
    %1968 = vmatpush1.bf16.msra.mxu0 %v1186
    %1969 = vmatprep.subr.bf16.mxu0 %v1191
    %1970 = vmatpush1.bf16.msra.mxu0 %v1190
    %1971 = vmatprep.subr.bf16.mxu0 %v1195
    %1972 = vmatpush1.bf16.msra.mxu0 %v1194
    %1973 = vmatprep.subr.bf16.mxu0 %v1199
    %1974 = vmatpush1.bf16.msra.mxu0 %v1198
    %1975 = vmatprep.subr.bf16.mxu0 %v1203
    %1976 = vmatpush1.bf16.msra.mxu0 %v1202
    %1977 = vmatprep.subr.bf16.mxu0 %v1207
    %1978 = vmatpush1.bf16.msra.mxu0 %v1206
    %1979 = vmatprep.subr.bf16.mxu0 %v1211
    %1980 = vmatpush1.bf16.msra.mxu0 %v1210
    %1981 = vmatprep.mubr.bf16.mxu0 %v1948
    %1982 = vmatmul.mubr.bf16.gmra.mrb[0].mxu0 %v1947
    %v1983 = vpop.f32.mrb[0].mxu0
    %v1984 = vadd.f32 %v941, %v1983
    %v1985 = vpop.f32.mrb[0].mxu0
    %v1986 = vadd.f32 %v945, %v1985
    %v1987 = vpop.f32.mrb[0].mxu0
    %v1988 = vpop.f32.mrb[0].mxu0
    %1989 = vdwg.mxu0
    %1990 = vmatprep.subr.bf16.mxu0 %v1153
    %1991 = vmatpush1.bf16.msra.mxu0 %v1152
    %1992 = vmatprep.subr.bf16.mxu0 %v1157
    %1993 = vmatpush1.bf16.msra.mxu0 %v1156
    %1994 = vmatprep.subr.bf16.mxu0 %v1161
    %1995 = vmatpush1.bf16.msra.mxu0 %v1160
    %1996 = vmatprep.subr.bf16.mxu0 %v1165
    %1997 = vmatpush1.bf16.msra.mxu0 %v1164
    %1998 = vmatprep.subr.bf16.mxu0 %v1169
    %1999 = vmatpush1.bf16.msra.mxu0 %v1168
    %2000 = vmatprep.subr.bf16.mxu0 %v1173
    %2001 = vmatpush1.bf16.msra.mxu0 %v1172
    %2002 = vmatprep.subr.bf16.mxu0 %v1177
    %2003 = vmatpush1.bf16.msra.mxu0 %v1176
    %2004 = vmatprep.subr.bf16.mxu0 %v1181
    %2005 = vmatpush1.bf16.msra.mxu0 %v1180
    %2006 = vmatprep.subr.bf16.mxu0 %v1185
    %2007 = vmatpush1.bf16.msra.mxu0 %v1184
    %2008 = vmatprep.subr.bf16.mxu0 %v1189
    %2009 = vmatpush1.bf16.msra.mxu0 %v1188
    %2010 = vmatprep.subr.bf16.mxu0 %v1193
    %2011 = vmatpush1.bf16.msra.mxu0 %v1192
    %2012 = vmatprep.subr.bf16.mxu0 %v1197
    %2013 = vmatpush1.bf16.msra.mxu0 %v1196
    %2014 = vmatprep.subr.bf16.mxu0 %v1201
    %2015 = vmatpush1.bf16.msra.mxu0 %v1200
    %2016 = vmatprep.subr.bf16.mxu0 %v1205
    %2017 = vmatpush1.bf16.msra.mxu0 %v1204
    %2018 = vmatprep.subr.bf16.mxu0 %v1209
    %2019 = vmatpush1.bf16.msra.mxu0 %v1208
    %2020 = vmatprep.subr.bf16.mxu0 %v1213
    %2021 = vmatpush1.bf16.msra.mxu0 %v1212
    %2022 = vmatprep.mubr.bf16.mxu0 %v1948
    %2023 = vmatmul.mubr.bf16.gmra.mrb[0].mxu0 %v1947
    %v2024 = vpop.f32.mrb[0].mxu0
    %v2025 = vadd.f32 %v949, %v2024
    %v2026 = vpop.f32.mrb[0].mxu0
    %v2027 = vadd.f32 %v953, %v2026
    %v2028 = vpop.f32.mrb[0].mxu0
    %v2029 = vpop.f32.mrb[0].mxu0
    %2030 = vdwg.mxu0
    %v2031 = vxor.u32 %v1984, 2147483648
    %v2032 = vxor.u32 %v1986, 2147483648
    %v2033 = vxor.u32 %v2025, 2147483648
    %v2034 = vmul.f32 %v2031, 1.442695
    %v2035 = vpow.pop %v2034
    %v2036 = vmul.f32 %v2032, 1.442695
    %v2037 = vpow.pop %v2036
    %v2038 = vmul.f32 %v2033, 1.442695
    %v2039 = vpow.pop %v2038
    %v2040 = vadd.f32 %v2035, 1.0
    %v2041 = vadd.f32 %v2037, 1.0
    %v2042 = vadd.f32 %v2039, 1.0
    %v2043 = vrcp.pop %v2040
    %v2044 = vmul.f32 1.0, %v2043
    %v2045 = vrcp.pop %v2041
    %v2046 = vmul.f32 1.0, %v2045
    %v2047 = vrcp.pop %v2042
    %v2048 = vmul.f32 1.0, %v2047
    %v2049 = vtanh.pop %v2027
    %v2050 = vmul.f32 %v2046, %v1828
    %v2051 = vmul.f32 %v2044, %v2049
    %v2052 = vadd.f32 %v2050, %v2051
    %v2053 = vtanh.pop %v2052
    %v2054 = vmul.f32 %v2048, %v2053
    %s2055 = scalar_lea.vmem [#allocation17], 24
    %2056 = vst [vmem:[%s2055] sm:$0xff] %v2054
    %v2057 = vld [vmem:[#allocation2 + $0x80] sm:$0xff]
    %v2058 = vld [vmem:[#allocation2 + $0x88] sm:$0xff]
    %v2059 = vld [vmem:[#allocation2 + $0x90] sm:$0xff]
    %v2060 = vld [vmem:[#allocation2 + $0x98] sm:$0xff]
    %2061 = vmatprep.subr.bf16.mxu0 %v762
    %2062 = vmatpush1.bf16.msra.mxu0 %v761
    %2063 = vmatprep.subr.bf16.mxu0 %v766
    %2064 = vmatpush1.bf16.msra.mxu0 %v765
    %2065 = vmatprep.subr.bf16.mxu0 %v770
    %2066 = vmatpush1.bf16.msra.mxu0 %v769
    %2067 = vmatprep.subr.bf16.mxu0 %v774
    %2068 = vmatpush1.bf16.msra.mxu0 %v773
    %2069 = vmatprep.subr.bf16.mxu0 %v778
    %2070 = vmatpush1.bf16.msra.mxu0 %v777
    %2071 = vmatprep.subr.bf16.mxu0 %v782
    %2072 = vmatpush1.bf16.msra.mxu0 %v781
    %2073 = vmatprep.subr.bf16.mxu0 %v786
    %2074 = vmatpush1.bf16.msra.mxu0 %v785
    %2075 = vmatprep.subr.bf16.mxu0 %v790
    %2076 = vmatpush1.bf16.msra.mxu0 %v789
    %2077 = vmatprep.subr.bf16.mxu0 0
    %2078 = vmatpush1.bf16.msra.mxu0 0
    %2079 = vmatprep.subr.bf16.mxu0 0
    %2080 = vmatpush1.bf16.msra.mxu0 0
    %2081 = vmatprep.subr.bf16.mxu0 0
    %2082 = vmatpush1.bf16.msra.mxu0 0
    %2083 = vmatprep.subr.bf16.mxu0 0
    %2084 = vmatpush1.bf16.msra.mxu0 0
    %2085 = vmatprep.subr.bf16.mxu0 0
    %2086 = vmatpush1.bf16.msra.mxu0 0
    %2087 = vmatprep.subr.bf16.mxu0 0
    %2088 = vmatpush1.bf16.msra.mxu0 0
    %2089 = vmatprep.subr.bf16.mxu0 0
    %2090 = vmatpush1.bf16.msra.mxu0 0
    %2091 = vmatprep.subr.bf16.mxu0 0
    %2092 = vmatpush1.bf16.msra.mxu0 0
    %2093 = vmatprep.mubr.bf16.mxu0 0
    %2094 = vmatmul.mubr.bf16.gmra.mrb[0].mxu0 %v1947
    %v2095 = vpop.f32.mrb[0].mxu0
    %v2096 = vadd.f32 0.0, %v2095
    %v2097 = vpop.f32.mrb[0].mxu0
    %v2098 = vadd.f32 0.0, %v2097
    %v2099 = vpop.f32.mrb[0].mxu0
    %v2100 = vpop.f32.mrb[0].mxu0
    %2101 = vdwg.mxu0
    %2102 = vmatprep.subr.bf16.mxu0 %v764
    %2103 = vmatpush1.bf16.msra.mxu0 %v763
    %2104 = vmatprep.subr.bf16.mxu0 %v768
    %2105 = vmatpush1.bf16.msra.mxu0 %v767
    %2106 = vmatprep.subr.bf16.mxu0 %v772
    %2107 = vmatpush1.bf16.msra.mxu0 %v771
    %2108 = vmatprep.subr.bf16.mxu0 %v776
    %2109 = vmatpush1.bf16.msra.mxu0 %v775
    %2110 = vmatprep.subr.bf16.mxu0 %v780
    %2111 = vmatpush1.bf16.msra.mxu0 %v779
    %2112 = vmatprep.subr.bf16.mxu0 %v784
    %2113 = vmatpush1.bf16.msra.mxu0 %v783
    %2114 = vmatprep.subr.bf16.mxu0 %v788
    %2115 = vmatpush1.bf16.msra.mxu0 %v787
    %2116 = vmatprep.subr.bf16.mxu0 %v792
    %2117 = vmatpush1.bf16.msra.mxu0 %v791
    %2118 = vmatprep.subr.bf16.mxu0 0
    %2119 = vmatpush1.bf16.msra.mxu0 0
    %2120 = vmatprep.subr.bf16.mxu0 0
    %2121 = vmatpush1.bf16.msra.mxu0 0
    %2122 = vmatprep.subr.bf16.mxu0 0
    %2123 = vmatpush1.bf16.msra.mxu0 0
    %2124 = vmatprep.subr.bf16.mxu0 0
    %2125 = vmatpush1.bf16.msra.mxu0 0
    %2126 = vmatprep.subr.bf16.mxu0 0
    %2127 = vmatpush1.bf16.msra.mxu0 0
    %2128 = vmatprep.subr.bf16.mxu0 0
    %2129 = vmatpush1.bf16.msra.mxu0 0
    %2130 = vmatprep.subr.bf16.mxu0 0
    %2131 = vmatpush1.bf16.msra.mxu0 0
    %2132 = vmatprep.subr.bf16.mxu0 0
    %2133 = vmatpush1.bf16.msra.mxu0 0
    %2134 = vmatprep.mubr.bf16.mxu0 0
    %2135 = vmatmul.mubr.bf16.gmra.mrb[0].mxu0 %v1947
    %v2136 = vpop.f32.mrb[0].mxu0
    %v2137 = vadd.f32 0.0, %v2136
    %v2138 = vpop.f32.mrb[0].mxu0
    %v2139 = vadd.f32 0.0, %v2138
    %v2140 = vpop.f32.mrb[0].mxu0
    %v2141 = vpop.f32.mrb[0].mxu0
    %2142 = vdwg.mxu0
    %v2143 = vadd.f32 %v2057, %v2096
    %v2144 = vadd.f32 %v2058, %v2098
    %v2145 = vadd.f32 %v2059, %v2137
    %v2146 = vadd.f32 %v2060, %v2139
    %v2147 = vxor.u32 %v2143, 2147483648
    %v2148 = vxor.u32 %v2144, 2147483648
    %v2149 = vxor.u32 %v2145, 2147483648
    %v2150 = vmul.f32 %v2147, 1.442695
    %v2151 = vpow.pop %v2150
    %v2152 = vmul.f32 %v2148, 1.442695
    %v2153 = vpow.pop %v2152
    %v2154 = vmul.f32 %v2149, 1.442695
    %v2155 = vpow.pop %v2154
    %v2156 = vadd.f32 %v2151, 1.0
    %v2157 = vadd.f32 %v2153, 1.0
    %v2158 = vadd.f32 %v2155, 1.0
    %v2159 = vrcp.pop %v2156
    %v2160 = vmul.f32 1.0, %v2159
    %v2161 = vrcp.pop %v2157
    %v2162 = vmul.f32 1.0, %v2161
    %v2163 = vrcp.pop %v2158
    %v2164 = vmul.f32 1.0, %v2163
    %v2165 = vtanh.pop %v2146
    %v2166 = vmul.f32 %v2162, %v1944
    %v2167 = vmul.f32 %v2160, %v2165
    %v2168 = vadd.f32 %v2166, %v2167
    %v2169 = vtanh.pop %v2168
    %v2170 = vmul.f32 %v2164, %v2169
    %v2171 = vpack.c.bf16 %v2170, %v2170
    %v2172 = vpack.c.bf16 %v2054, %v2054
    %2173 = vmatprep.subr.bf16.mxu0 %v1151
    %2174 = vmatpush1.bf16.msra.mxu0 %v1150
    %2175 = vmatprep.subr.bf16.mxu0 %v1155
    %2176 = vmatpush1.bf16.msra.mxu0 %v1154
    %2177 = vmatprep.subr.bf16.mxu0 %v1159
    %2178 = vmatpush1.bf16.msra.mxu0 %v1158
    %2179 = vmatprep.subr.bf16.mxu0 %v1163
    %2180 = vmatpush1.bf16.msra.mxu0 %v1162
    %2181 = vmatprep.subr.bf16.mxu0 %v1167
    %2182 = vmatpush1.bf16.msra.mxu0 %v1166
    %2183 = vmatprep.subr.bf16.mxu0 %v1171
    %2184 = vmatpush1.bf16.msra.mxu0 %v1170
    %2185 = vmatprep.subr.bf16.mxu0 %v1175
    %2186 = vmatpush1.bf16.msra.mxu0 %v1174
    %2187 = vmatprep.subr.bf16.mxu0 %v1179
    %2188 = vmatpush1.bf16.msra.mxu0 %v1178
    %2189 = vmatprep.subr.bf16.mxu0 %v1183
    %2190 = vmatpush1.bf16.msra.mxu0 %v1182
    %2191 = vmatprep.subr.bf16.mxu0 %v1187
    %2192 = vmatpush1.bf16.msra.mxu0 %v1186
    %2193 = vmatprep.subr.bf16.mxu0 %v1191
    %2194 = vmatpush1.bf16.msra.mxu0 %v1190
    %2195 = vmatprep.subr.bf16.mxu0 %v1195
    %2196 = vmatpush1.bf16.msra.mxu0 %v1194
    %2197 = vmatprep.subr.bf16.mxu0 %v1199
    %2198 = vmatpush1.bf16.msra.mxu0 %v1198
    %2199 = vmatprep.subr.bf16.mxu0 %v1203
    %2200 = vmatpush1.bf16.msra.mxu0 %v1202
    %2201 = vmatprep.subr.bf16.mxu0 %v1207
    %2202 = vmatpush1.bf16.msra.mxu0 %v1206
    %2203 = vmatprep.subr.bf16.mxu0 %v1211
    %2204 = vmatpush1.bf16.msra.mxu0 %v1210
    %2205 = vmatprep.mubr.bf16.mxu0 %v2172
    %2206 = vmatmul.mubr.bf16.gmra.mrb[0].mxu0 %v2171
    %v2207 = vpop.f32.mrb[0].mxu0
    %v2208 = vadd.f32 %v941, %v2207
    %v2209 = vpop.f32.mrb[0].mxu0
    %v2210 = vadd.f32 %v945, %v2209
    %v2211 = vpop.f32.mrb[0].mxu0
    %v2212 = vpop.f32.mrb[0].mxu0
    %2213 = vdwg.mxu0
    %2214 = vmatprep.subr.bf16.mxu0 %v1153
    %2215 = vmatpush1.bf16.msra.mxu0 %v1152
    %2216 = vmatprep.subr.bf16.mxu0 %v1157
    %2217 = vmatpush1.bf16.msra.mxu0 %v1156
    %2218 = vmatprep.subr.bf16.mxu0 %v1161
    %2219 = vmatpush1.bf16.msra.mxu0 %v1160
    %2220 = vmatprep.subr.bf16.mxu0 %v1165
    %2221 = vmatpush1.bf16.msra.mxu0 %v1164
    %2222 = vmatprep.subr.bf16.mxu0 %v1169
    %2223 = vmatpush1.bf16.msra.mxu0 %v1168
    %2224 = vmatprep.subr.bf16.mxu0 %v1173
    %2225 = vmatpush1.bf16.msra.mxu0 %v1172
    %2226 = vmatprep.subr.bf16.mxu0 %v1177
    %2227 = vmatpush1.bf16.msra.mxu0 %v1176
    %2228 = vmatprep.subr.bf16.mxu0 %v1181
    %2229 = vmatpush1.bf16.msra.mxu0 %v1180
    %2230 = vmatprep.subr.bf16.mxu0 %v1185
    %2231 = vmatpush1.bf16.msra.mxu0 %v1184
    %2232 = vmatprep.subr.bf16.mxu0 %v1189
    %2233 = vmatpush1.bf16.msra.mxu0 %v1188
    %2234 = vmatprep.subr.bf16.mxu0 %v1193
    %2235 = vmatpush1.bf16.msra.mxu0 %v1192
    %2236 = vmatprep.subr.bf16.mxu0 %v1197
    %2237 = vmatpush1.bf16.msra.mxu0 %v1196
    %2238 = vmatprep.subr.bf16.mxu0 %v1201
    %2239 = vmatpush1.bf16.msra.mxu0 %v1200
    %2240 = vmatprep.subr.bf16.mxu0 %v1205
    %2241 = vmatpush1.bf16.msra.mxu0 %v1204
    %2242 = vmatprep.subr.bf16.mxu0 %v1209
    %2243 = vmatpush1.bf16.msra.mxu0 %v1208
    %2244 = vmatprep.subr.bf16.mxu0 %v1213
    %2245 = vmatpush1.bf16.msra.mxu0 %v1212
    %2246 = vmatprep.mubr.bf16.mxu0 %v2172
    %2247 = vmatmul.mubr.bf16.gmra.mrb[0].mxu0 %v2171
    %v2248 = vpop.f32.mrb[0].mxu0
    %v2249 = vadd.f32 %v949, %v2248
    %v2250 = vpop.f32.mrb[0].mxu0
    %v2251 = vadd.f32 %v953, %v2250
    %v2252 = vpop.f32.mrb[0].mxu0
    %v2253 = vpop.f32.mrb[0].mxu0
    %2254 = vdwg.mxu0
    %v2255 = vxor.u32 %v2208, 2147483648
    %v2256 = vxor.u32 %v2210, 2147483648
    %v2257 = vxor.u32 %v2249, 2147483648
    %v2258 = vmul.f32 %v2255, 1.442695
    %v2259 = vpow.pop %v2258
    %v2260 = vmul.f32 %v2256, 1.442695
    %v2261 = vpow.pop %v2260
    %v2262 = vmul.f32 %v2257, 1.442695
    %v2263 = vpow.pop %v2262
    %v2264 = vadd.f32 %v2259, 1.0
    %v2265 = vadd.f32 %v2261, 1.0
    %v2266 = vadd.f32 %v2263, 1.0
    %v2267 = vrcp.pop %v2264
    %v2268 = vmul.f32 1.0, %v2267
    %v2269 = vrcp.pop %v2265
    %v2270 = vmul.f32 1.0, %v2269
    %v2271 = vrcp.pop %v2266
    %v2272 = vmul.f32 1.0, %v2271
    %v2273 = vtanh.pop %v2251
    %v2274 = vmul.f32 %v2270, %v2052
    %v2275 = vmul.f32 %v2268, %v2273
    %v2276 = vadd.f32 %v2274, %v2275
    %v2277 = vtanh.pop %v2276
    %v2278 = vmul.f32 %v2272, %v2277
    %s2279 = scalar_lea.vmem [#allocation17], 32
    %2280 = vst [vmem:[%s2279] sm:$0xff] %v2278
    %v2281 = vld [vmem:[#allocation2 + $0xa0] sm:$0xff]
    %v2282 = vld [vmem:[#allocation2 + $0xa8] sm:$0xff]
    %v2283 = vld [vmem:[#allocation2 + $0xb0] sm:$0xff]
    %v2284 = vld [vmem:[#allocation2 + $0xb8] sm:$0xff]
    %2285 = vmatprep.subr.bf16.mxu0 %v762
    %2286 = vmatpush1.bf16.msra.mxu0 %v761
    %2287 = vmatprep.subr.bf16.mxu0 %v766
    %2288 = vmatpush1.bf16.msra.mxu0 %v765
    %2289 = vmatprep.subr.bf16.mxu0 %v770
    %2290 = vmatpush1.bf16.msra.mxu0 %v769
    %2291 = vmatprep.subr.bf16.mxu0 %v774
    %2292 = vmatpush1.bf16.msra.mxu0 %v773
    %2293 = vmatprep.subr.bf16.mxu0 %v778
    %2294 = vmatpush1.bf16.msra.mxu0 %v777
    %2295 = vmatprep.subr.bf16.mxu0 %v782
    %2296 = vmatpush1.bf16.msra.mxu0 %v781
    %2297 = vmatprep.subr.bf16.mxu0 %v786
    %2298 = vmatpush1.bf16.msra.mxu0 %v785
    %2299 = vmatprep.subr.bf16.mxu0 %v790
    %2300 = vmatpush1.bf16.msra.mxu0 %v789
    %2301 = vmatprep.subr.bf16.mxu0 0
    %2302 = vmatpush1.bf16.msra.mxu0 0
    %2303 = vmatprep.subr.bf16.mxu0 0
    %2304 = vmatpush1.bf16.msra.mxu0 0
    %2305 = vmatprep.subr.bf16.mxu0 0
    %2306 = vmatpush1.bf16.msra.mxu0 0
    %2307 = vmatprep.subr.bf16.mxu0 0
    %2308 = vmatpush1.bf16.msra.mxu0 0
    %2309 = vmatprep.subr.bf16.mxu0 0
    %2310 = vmatpush1.bf16.msra.mxu0 0
    %2311 = vmatprep.subr.bf16.mxu0 0
    %2312 = vmatpush1.bf16.msra.mxu0 0
    %2313 = vmatprep.subr.bf16.mxu0 0
    %2314 = vmatpush1.bf16.msra.mxu0 0
    %2315 = vmatprep.subr.bf16.mxu0 0
    %2316 = vmatpush1.bf16.msra.mxu0 0
    %2317 = vmatprep.mubr.bf16.mxu0 0
    %2318 = vmatmul.mubr.bf16.gmra.mrb[0].mxu0 %v2171
    %v2319 = vpop.f32.mrb[0].mxu0
    %v2320 = vadd.f32 0.0, %v2319
    %v2321 = vpop.f32.mrb[0].mxu0
    %v2322 = vadd.f32 0.0, %v2321
    %v2323 = vpop.f32.mrb[0].mxu0
    %v2324 = vpop.f32.mrb[0].mxu0
    %2325 = vdwg.mxu0
    %2326 = vmatprep.subr.bf16.mxu0 %v764
    %2327 = vmatpush1.bf16.msra.mxu0 %v763
    %2328 = vmatprep.subr.bf16.mxu0 %v768
    %2329 = vmatpush1.bf16.msra.mxu0 %v767
    %2330 = vmatprep.subr.bf16.mxu0 %v772
    %2331 = vmatpush1.bf16.msra.mxu0 %v771
    %2332 = vmatprep.subr.bf16.mxu0 %v776
    %2333 = vmatpush1.bf16.msra.mxu0 %v775
    %2334 = vmatprep.subr.bf16.mxu0 %v780
    %2335 = vmatpush1.bf16.msra.mxu0 %v779
    %2336 = vmatprep.subr.bf16.mxu0 %v784
    %2337 = vmatpush1.bf16.msra.mxu0 %v783
    %2338 = vmatprep.subr.bf16.mxu0 %v788
    %2339 = vmatpush1.bf16.msra.mxu0 %v787
    %2340 = vmatprep.subr.bf16.mxu0 %v792
    %2341 = vmatpush1.bf16.msra.mxu0 %v791
    %2342 = vmatprep.subr.bf16.mxu0 0
    %2343 = vmatpush1.bf16.msra.mxu0 0
    %2344 = vmatprep.subr.bf16.mxu0 0
    %2345 = vmatpush1.bf16.msra.mxu0 0
    %2346 = vmatprep.subr.bf16.mxu0 0
    %2347 = vmatpush1.bf16.msra.mxu0 0
    %2348 = vmatprep.subr.bf16.mxu0 0
    %2349 = vmatpush1.bf16.msra.mxu0 0
    %2350 = vmatprep.subr.bf16.mxu0 0
    %2351 = vmatpush1.bf16.msra.mxu0 0
    %2352 = vmatprep.subr.bf16.mxu0 0
    %2353 = vmatpush1.bf16.msra.mxu0 0
    %2354 = vmatprep.subr.bf16.mxu0 0
    %2355 = vmatpush1.bf16.msra.mxu0 0
    %2356 = vmatprep.subr.bf16.mxu0 0
    %2357 = vmatpush1.bf16.msra.mxu0 0
    %2358 = vmatprep.mubr.bf16.mxu0 0
    %2359 = vmatmul.mubr.bf16.gmra.mrb[0].mxu0 %v2171
    %v2360 = vpop.f32.mrb[0].mxu0
    %v2361 = vadd.f32 0.0, %v2360
    %v2362 = vpop.f32.mrb[0].mxu0
    %v2363 = vadd.f32 0.0, %v2362
    %v2364 = vpop.f32.mrb[0].mxu0
    %v2365 = vpop.f32.mrb[0].mxu0
    %2366 = vdwg.mxu0
    %v2367 = vadd.f32 %v2281, %v2320
    %v2368 = vadd.f32 %v2282, %v2322
    %v2369 = vadd.f32 %v2283, %v2361
    %v2370 = vadd.f32 %v2284, %v2363
    %v2371 = vxor.u32 %v2367, 2147483648
    %v2372 = vxor.u32 %v2368, 2147483648
    %v2373 = vxor.u32 %v2369, 2147483648
    %v2374 = vmul.f32 %v2371, 1.442695
    %v2375 = vpow.pop %v2374
    %v2376 = vmul.f32 %v2372, 1.442695
    %v2377 = vpow.pop %v2376
    %v2378 = vmul.f32 %v2373, 1.442695
    %v2379 = vpow.pop %v2378
    %v2380 = vadd.f32 %v2375, 1.0
    %v2381 = vadd.f32 %v2377, 1.0
    %v2382 = vadd.f32 %v2379, 1.0
    %v2383 = vrcp.pop %v2380
    %v2384 = vmul.f32 1.0, %v2383
    %v2385 = vrcp.pop %v2381
    %v2386 = vmul.f32 1.0, %v2385
    %v2387 = vrcp.pop %v2382
    %v2388 = vmul.f32 1.0, %v2387
    %v2389 = vtanh.pop %v2370
    %v2390 = vmul.f32 %v2386, %v2168
    %v2391 = vmul.f32 %v2384, %v2389
    %v2392 = vadd.f32 %v2390, %v2391
    %v2393 = vtanh.pop %v2392
    %v2394 = vmul.f32 %v2388, %v2393
    %v2395 = vpack.c.bf16 %v2394, %v2394
    %v2396 = vpack.c.bf16 %v2278, %v2278
    %2397 = vmatprep.subr.bf16.mxu0 %v1151
    %2398 = vmatpush1.bf16.msra.mxu0 %v1150
    %2399 = vmatprep.subr.bf16.mxu0 %v1155
    %2400 = vmatpush1.bf16.msra.mxu0 %v1154
    %2401 = vmatprep.subr.bf16.mxu0 %v1159
    %2402 = vmatpush1.bf16.msra.mxu0 %v1158
    %2403 = vmatprep.subr.bf16.mxu0 %v1163
    %2404 = vmatpush1.bf16.msra.mxu0 %v1162
    %2405 = vmatprep.subr.bf16.mxu0 %v1167
    %2406 = vmatpush1.bf16.msra.mxu0 %v1166
    %2407 = vmatprep.subr.bf16.mxu0 %v1171
    %2408 = vmatpush1.bf16.msra.mxu0 %v1170
    %2409 = vmatprep.subr.bf16.mxu0 %v1175
    %2410 = vmatpush1.bf16.msra.mxu0 %v1174
    %2411 = vmatprep.subr.bf16.mxu0 %v1179
    %2412 = vmatpush1.bf16.msra.mxu0 %v1178
    %2413 = vmatprep.subr.bf16.mxu0 %v1183
    %2414 = vmatpush1.bf16.msra.mxu0 %v1182
    %2415 = vmatprep.subr.bf16.mxu0 %v1187
    %2416 = vmatpush1.bf16.msra.mxu0 %v1186
    %2417 = vmatprep.subr.bf16.mxu0 %v1191
    %2418 = vmatpush1.bf16.msra.mxu0 %v1190
    %2419 = vmatprep.subr.bf16.mxu0 %v1195
    %2420 = vmatpush1.bf16.msra.mxu0 %v1194
    %2421 = vmatprep.subr.bf16.mxu0 %v1199
    %2422 = vmatpush1.bf16.msra.mxu0 %v1198
    %2423 = vmatprep.subr.bf16.mxu0 %v1203
    %2424 = vmatpush1.bf16.msra.mxu0 %v1202
    %2425 = vmatprep.subr.bf16.mxu0 %v1207
    %2426 = vmatpush1.bf16.msra.mxu0 %v1206
    %2427 = vmatprep.subr.bf16.mxu0 %v1211
    %2428 = vmatpush1.bf16.msra.mxu0 %v1210
    %2429 = vmatprep.mubr.bf16.mxu0 %v2396
    %2430 = vmatmul.mubr.bf16.gmra.mrb[0].mxu0 %v2395
    %v2431 = vpop.f32.mrb[0].mxu0
    %v2432 = vadd.f32 %v941, %v2431
    %v2433 = vpop.f32.mrb[0].mxu0
    %v2434 = vadd.f32 %v945, %v2433
    %v2435 = vpop.f32.mrb[0].mxu0
    %v2436 = vpop.f32.mrb[0].mxu0
    %2437 = vdwg.mxu0
    %2438 = vmatprep.subr.bf16.mxu0 %v1153
    %2439 = vmatpush1.bf16.msra.mxu0 %v1152
    %2440 = vmatprep.subr.bf16.mxu0 %v1157
    %2441 = vmatpush1.bf16.msra.mxu0 %v1156
    %2442 = vmatprep.subr.bf16.mxu0 %v1161
    %2443 = vmatpush1.bf16.msra.mxu0 %v1160
    %2444 = vmatprep.subr.bf16.mxu0 %v1165
    %2445 = vmatpush1.bf16.msra.mxu0 %v1164
    %2446 = vmatprep.subr.bf16.mxu0 %v1169
    %2447 = vmatpush1.bf16.msra.mxu0 %v1168
    %2448 = vmatprep.subr.bf16.mxu0 %v1173
    %2449 = vmatpush1.bf16.msra.mxu0 %v1172
    %2450 = vmatprep.subr.bf16.mxu0 %v1177
    %2451 = vmatpush1.bf16.msra.mxu0 %v1176
    %2452 = vmatprep.subr.bf16.mxu0 %v1181
    %2453 = vmatpush1.bf16.msra.mxu0 %v1180
    %2454 = vmatprep.subr.bf16.mxu0 %v1185
    %2455 = vmatpush1.bf16.msra.mxu0 %v1184
    %2456 = vmatprep.subr.bf16.mxu0 %v1189
    %2457 = vmatpush1.bf16.msra.mxu0 %v1188
    %2458 = vmatprep.subr.bf16.mxu0 %v1193
    %2459 = vmatpush1.bf16.msra.mxu0 %v1192
    %2460 = vmatprep.subr.bf16.mxu0 %v1197
    %2461 = vmatpush1.bf16.msra.mxu0 %v1196
    %2462 = vmatprep.subr.bf16.mxu0 %v1201
    %2463 = vmatpush1.bf16.msra.mxu0 %v1200
    %2464 = vmatprep.subr.bf16.mxu0 %v1205
    %2465 = vmatpush1.bf16.msra.mxu0 %v1204
    %2466 = vmatprep.subr.bf16.mxu0 %v1209
    %2467 = vmatpush1.bf16.msra.mxu0 %v1208
    %2468 = vmatprep.subr.bf16.mxu0 %v1213
    %2469 = vmatpush1.bf16.msra.mxu0 %v1212
    %2470 = vmatprep.mubr.bf16.mxu0 %v2396
    %2471 = vmatmul.mubr.bf16.gmra.mrb[0].mxu0 %v2395
    %v2472 = vpop.f32.mrb[0].mxu0
    %v2473 = vadd.f32 %v949, %v2472
    %v2474 = vpop.f32.mrb[0].mxu0
    %v2475 = vadd.f32 %v953, %v2474
    %v2476 = vpop.f32.mrb[0].mxu0
    %v2477 = vpop.f32.mrb[0].mxu0
    %2478 = vdwg.mxu0
    %v2479 = vxor.u32 %v2432, 2147483648
    %v2480 = vxor.u32 %v2434, 2147483648
    %v2481 = vxor.u32 %v2473, 2147483648
    %v2482 = vmul.f32 %v2479, 1.442695
    %v2483 = vpow.pop %v2482
    %v2484 = vmul.f32 %v2480, 1.442695
    %v2485 = vpow.pop %v2484
    %v2486 = vmul.f32 %v2481, 1.442695
    %v2487 = vpow.pop %v2486
    %v2488 = vadd.f32 %v2483, 1.0
    %v2489 = vadd.f32 %v2485, 1.0
    %v2490 = vadd.f32 %v2487, 1.0
    %v2491 = vrcp.pop %v2488
    %v2492 = vmul.f32 1.0, %v2491
    %v2493 = vrcp.pop %v2489
    %v2494 = vmul.f32 1.0, %v2493
    %v2495 = vrcp.pop %v2490
    %v2496 = vmul.f32 1.0, %v2495
    %v2497 = vtanh.pop %v2475
    %v2498 = vmul.f32 %v2494, %v2276
    %v2499 = vmul.f32 %v2492, %v2497
    %v2500 = vadd.f32 %v2498, %v2499
    %v2501 = vtanh.pop %v2500
    %v2502 = vmul.f32 %v2496, %v2501
    %s2503 = scalar_lea.vmem [#allocation17], 40
    %2504 = vst [vmem:[%s2503] sm:$0xff] %v2502
    %v2505 = vld [vmem:[#allocation2 + $0xc0] sm:$0xff]
    %v2506 = vld [vmem:[#allocation2 + $0xc8] sm:$0xff]
    %v2507 = vld [vmem:[#allocation2 + $0xd0] sm:$0xff]
    %v2508 = vld [vmem:[#allocation2 + $0xd8] sm:$0xff]
    %2509 = vmatprep.subr.bf16.mxu0 %v762
    %2510 = vmatpush1.bf16.msra.mxu0 %v761
    %2511 = vmatprep.subr.bf16.mxu0 %v766
    %2512 = vmatpush1.bf16.msra.mxu0 %v765
    %2513 = vmatprep.subr.bf16.mxu0 %v770
    %2514 = vmatpush1.bf16.msra.mxu0 %v769
    %2515 = vmatprep.subr.bf16.mxu0 %v774
    %2516 = vmatpush1.bf16.msra.mxu0 %v773
    %2517 = vmatprep.subr.bf16.mxu0 %v778
    %2518 = vmatpush1.bf16.msra.mxu0 %v777
    %2519 = vmatprep.subr.bf16.mxu0 %v782
    %2520 = vmatpush1.bf16.msra.mxu0 %v781
    %2521 = vmatprep.subr.bf16.mxu0 %v786
    %2522 = vmatpush1.bf16.msra.mxu0 %v785
    %2523 = vmatprep.subr.bf16.mxu0 %v790
    %2524 = vmatpush1.bf16.msra.mxu0 %v789
    %2525 = vmatprep.subr.bf16.mxu0 0
    %2526 = vmatpush1.bf16.msra.mxu0 0
    %2527 = vmatprep.subr.bf16.mxu0 0
    %2528 = vmatpush1.bf16.msra.mxu0 0
    %2529 = vmatprep.subr.bf16.mxu0 0
    %2530 = vmatpush1.bf16.msra.mxu0 0
    %2531 = vmatprep.subr.bf16.mxu0 0
    %2532 = vmatpush1.bf16.msra.mxu0 0
    %2533 = vmatprep.subr.bf16.mxu0 0
    %2534 = vmatpush1.bf16.msra.mxu0 0
    %2535 = vmatprep.subr.bf16.mxu0 0
    %2536 = vmatpush1.bf16.msra.mxu0 0
    %2537 = vmatprep.subr.bf16.mxu0 0
    %2538 = vmatpush1.bf16.msra.mxu0 0
    %2539 = vmatprep.subr.bf16.mxu0 0
    %2540 = vmatpush1.bf16.msra.mxu0 0
    %2541 = vmatprep.mubr.bf16.mxu0 0
    %2542 = vmatmul.mubr.bf16.gmra.mrb[0].mxu0 %v2395
    %v2543 = vpop.f32.mrb[0].mxu0
    %v2544 = vadd.f32 0.0, %v2543
    %v2545 = vpop.f32.mrb[0].mxu0
    %v2546 = vadd.f32 0.0, %v2545
    %v2547 = vpop.f32.mrb[0].mxu0
    %v2548 = vpop.f32.mrb[0].mxu0
    %2549 = vdwg.mxu0
    %2550 = vmatprep.subr.bf16.mxu0 %v764
    %2551 = vmatpush1.bf16.msra.mxu0 %v763
    %2552 = vmatprep.subr.bf16.mxu0 %v768
    %2553 = vmatpush1.bf16.msra.mxu0 %v767
    %2554 = vmatprep.subr.bf16.mxu0 %v772
    %2555 = vmatpush1.bf16.msra.mxu0 %v771
    %2556 = vmatprep.subr.bf16.mxu0 %v776
    %2557 = vmatpush1.bf16.msra.mxu0 %v775
    %2558 = vmatprep.subr.bf16.mxu0 %v780
    %2559 = vmatpush1.bf16.msra.mxu0 %v779
    %2560 = vmatprep.subr.bf16.mxu0 %v784
    %2561 = vmatpush1.bf16.msra.mxu0 %v783
    %2562 = vmatprep.subr.bf16.mxu0 %v788
    %2563 = vmatpush1.bf16.msra.mxu0 %v787
    %2564 = vmatprep.subr.bf16.mxu0 %v792
    %2565 = vmatpush1.bf16.msra.mxu0 %v791
    %2566 = vmatprep.subr.bf16.mxu0 0
    %2567 = vmatpush1.bf16.msra.mxu0 0
    %2568 = vmatprep.subr.bf16.mxu0 0
    %2569 = vmatpush1.bf16.msra.mxu0 0
    %2570 = vmatprep.subr.bf16.mxu0 0
    %2571 = vmatpush1.bf16.msra.mxu0 0
    %2572 = vmatprep.subr.bf16.mxu0 0
    %2573 = vmatpush1.bf16.msra.mxu0 0
    %2574 = vmatprep.subr.bf16.mxu0 0
    %2575 = vmatpush1.bf16.msra.mxu0 0
    %2576 = vmatprep.subr.bf16.mxu0 0
    %2577 = vmatpush1.bf16.msra.mxu0 0
    %2578 = vmatprep.subr.bf16.mxu0 0
    %2579 = vmatpush1.bf16.msra.mxu0 0
    %2580 = vmatprep.subr.bf16.mxu0 0
    %2581 = vmatpush1.bf16.msra.mxu0 0
    %2582 = vmatprep.mubr.bf16.mxu0 0
    %2583 = vmatmul.mubr.bf16.gmra.mrb[0].mxu0 %v2395
    %v2584 = vpop.f32.mrb[0].mxu0
    %v2585 = vadd.f32 0.0, %v2584
    %v2586 = vpop.f32.mrb[0].mxu0
    %v2587 = vadd.f32 0.0, %v2586
    %v2588 = vpop.f32.mrb[0].mxu0
    %v2589 = vpop.f32.mrb[0].mxu0
    %2590 = vdwg.mxu0
    %v2591 = vadd.f32 %v2505, %v2544
    %v2592 = vadd.f32 %v2506, %v2546
    %v2593 = vadd.f32 %v2507, %v2585
    %v2594 = vadd.f32 %v2508, %v2587
    %v2595 = vxor.u32 %v2591, 2147483648
    %v2596 = vxor.u32 %v2592, 2147483648
    %v2597 = vxor.u32 %v2593, 2147483648
    %v2598 = vmul.f32 %v2595, 1.442695
    %v2599 = vpow.pop %v2598
    %v2600 = vmul.f32 %v2596, 1.442695
    %v2601 = vpow.pop %v2600
    %v2602 = vmul.f32 %v2597, 1.442695
    %v2603 = vpow.pop %v2602
    %v2604 = vadd.f32 %v2599, 1.0
    %v2605 = vadd.f32 %v2601, 1.0
    %v2606 = vadd.f32 %v2603, 1.0
    %v2607 = vrcp.pop %v2604
    %v2608 = vmul.f32 1.0, %v2607
    %v2609 = vrcp.pop %v2605
    %v2610 = vmul.f32 1.0, %v2609
    %v2611 = vrcp.pop %v2606
    %v2612 = vmul.f32 1.0, %v2611
    %v2613 = vtanh.pop %v2594
    %v2614 = vmul.f32 %v2610, %v2392
    %v2615 = vmul.f32 %v2608, %v2613
    %v2616 = vadd.f32 %v2614, %v2615
    %v2617 = vtanh.pop %v2616
    %v2618 = vmul.f32 %v2612, %v2617
    %v2619 = vpack.c.bf16 %v2618, %v2618
    %v2620 = vpack.c.bf16 %v2502, %v2502
    %2621 = vmatprep.subr.bf16.mxu0 %v1151
    %2622 = vmatpush1.bf16.msra.mxu0 %v1150
    %2623 = vmatprep.subr.bf16.mxu0 %v1155
    %2624 = vmatpush1.bf16.msra.mxu0 %v1154
    %2625 = vmatprep.subr.bf16.mxu0 %v1159
    %2626 = vmatpush1.bf16.msra.mxu0 %v1158
    %2627 = vmatprep.subr.bf16.mxu0 %v1163
    %2628 = vmatpush1.bf16.msra.mxu0 %v1162
    %2629 = vmatprep.subr.bf16.mxu0 %v1167
    %2630 = vmatpush1.bf16.msra.mxu0 %v1166
    %2631 = vmatprep.subr.bf16.mxu0 %v1171
    %2632 = vmatpush1.bf16.msra.mxu0 %v1170
    %2633 = vmatprep.subr.bf16.mxu0 %v1175
    %2634 = vmatpush1.bf16.msra.mxu0 %v1174
    %2635 = vmatprep.subr.bf16.mxu0 %v1179
    %2636 = vmatpush1.bf16.msra.mxu0 %v1178
    %2637 = vmatprep.subr.bf16.mxu0 %v1183
    %2638 = vmatpush1.bf16.msra.mxu0 %v1182
    %2639 = vmatprep.subr.bf16.mxu0 %v1187
    %2640 = vmatpush1.bf16.msra.mxu0 %v1186
    %2641 = vmatprep.subr.bf16.mxu0 %v1191
    %2642 = vmatpush1.bf16.msra.mxu0 %v1190
    %2643 = vmatprep.subr.bf16.mxu0 %v1195
    %2644 = vmatpush1.bf16.msra.mxu0 %v1194
    %2645 = vmatprep.subr.bf16.mxu0 %v1199
    %2646 = vmatpush1.bf16.msra.mxu0 %v1198
    %2647 = vmatprep.subr.bf16.mxu0 %v1203
    %2648 = vmatpush1.bf16.msra.mxu0 %v1202
    %2649 = vmatprep.subr.bf16.mxu0 %v1207
    %2650 = vmatpush1.bf16.msra.mxu0 %v1206
    %2651 = vmatprep.subr.bf16.mxu0 %v1211
    %2652 = vmatpush1.bf16.msra.mxu0 %v1210
    %2653 = vmatprep.mubr.bf16.mxu0 %v2620
    %2654 = vmatmul.mubr.bf16.gmra.mrb[0].mxu0 %v2619
    %v2655 = vpop.f32.mrb[0].mxu0
    %v2656 = vadd.f32 %v941, %v2655
    %v2657 = vpop.f32.mrb[0].mxu0
    %v2658 = vadd.f32 %v945, %v2657
    %v2659 = vpop.f32.mrb[0].mxu0
    %v2660 = vpop.f32.mrb[0].mxu0
    %2661 = vdwg.mxu0
    %2662 = vmatprep.subr.bf16.mxu0 %v1153
    %2663 = vmatpush1.bf16.msra.mxu0 %v1152
    %2664 = vmatprep.subr.bf16.mxu0 %v1157
    %2665 = vmatpush1.bf16.msra.mxu0 %v1156
    %2666 = vmatprep.subr.bf16.mxu0 %v1161
    %2667 = vmatpush1.bf16.msra.mxu0 %v1160
    %2668 = vmatprep.subr.bf16.mxu0 %v1165
    %2669 = vmatpush1.bf16.msra.mxu0 %v1164
    %2670 = vmatprep.subr.bf16.mxu0 %v1169
    %2671 = vmatpush1.bf16.msra.mxu0 %v1168
    %2672 = vmatprep.subr.bf16.mxu0 %v1173
    %2673 = vmatpush1.bf16.msra.mxu0 %v1172
    %2674 = vmatprep.subr.bf16.mxu0 %v1177
    %2675 = vmatpush1.bf16.msra.mxu0 %v1176
    %2676 = vmatprep.subr.bf16.mxu0 %v1181
    %2677 = vmatpush1.bf16.msra.mxu0 %v1180
    %2678 = vmatprep.subr.bf16.mxu0 %v1185
    %2679 = vmatpush1.bf16.msra.mxu0 %v1184
    %2680 = vmatprep.subr.bf16.mxu0 %v1189
    %2681 = vmatpush1.bf16.msra.mxu0 %v1188
    %2682 = vmatprep.subr.bf16.mxu0 %v1193
    %2683 = vmatpush1.bf16.msra.mxu0 %v1192
    %2684 = vmatprep.subr.bf16.mxu0 %v1197
    %2685 = vmatpush1.bf16.msra.mxu0 %v1196
    %2686 = vmatprep.subr.bf16.mxu0 %v1201
    %2687 = vmatpush1.bf16.msra.mxu0 %v1200
    %2688 = vmatprep.subr.bf16.mxu0 %v1205
    %2689 = vmatpush1.bf16.msra.mxu0 %v1204
    %2690 = vmatprep.subr.bf16.mxu0 %v1209
    %2691 = vmatpush1.bf16.msra.mxu0 %v1208
    %2692 = vmatprep.subr.bf16.mxu0 %v1213
    %2693 = vmatpush1.bf16.msra.mxu0 %v1212
    %2694 = vmatprep.mubr.bf16.mxu0 %v2620
    %2695 = vmatmul.mubr.bf16.gmra.mrb[0].mxu0 %v2619
    %v2696 = vpop.f32.mrb[0].mxu0
    %v2697 = vadd.f32 %v949, %v2696
    %v2698 = vpop.f32.mrb[0].mxu0
    %v2699 = vadd.f32 %v953, %v2698
    %v2700 = vpop.f32.mrb[0].mxu0
    %v2701 = vpop.f32.mrb[0].mxu0
    %2702 = vdwg.mxu0
    %v2703 = vxor.u32 %v2656, 2147483648
    %v2704 = vxor.u32 %v2658, 2147483648
    %v2705 = vxor.u32 %v2697, 2147483648
    %v2706 = vmul.f32 %v2703, 1.442695
    %v2707 = vpow.pop %v2706
    %v2708 = vmul.f32 %v2704, 1.442695
    %v2709 = vpow.pop %v2708
    %v2710 = vmul.f32 %v2705, 1.442695
    %v2711 = vpow.pop %v2710
    %v2712 = vadd.f32 %v2707, 1.0
    %v2713 = vadd.f32 %v2709, 1.0
    %v2714 = vadd.f32 %v2711, 1.0
    %v2715 = vrcp.pop %v2712
    %v2716 = vmul.f32 1.0, %v2715
    %v2717 = vrcp.pop %v2713
    %v2718 = vmul.f32 1.0, %v2717
    %v2719 = vrcp.pop %v2714
    %v2720 = vmul.f32 1.0, %v2719
    %v2721 = vtanh.pop %v2699
    %v2722 = vmul.f32 %v2718, %v2500
    %v2723 = vmul.f32 %v2716, %v2721
    %v2724 = vadd.f32 %v2722, %v2723
    %v2725 = vtanh.pop %v2724
    %v2726 = vmul.f32 %v2720, %v2725
    %s2727 = scalar_lea.vmem [#allocation17], 48
    %2728 = vst [vmem:[%s2727] sm:$0xff] %v2726
    %v2729 = vld [vmem:[#allocation2 + $0xe0] sm:$0xff]
    %v2730 = vld [vmem:[#allocation2 + $0xe8] sm:$0xff]
    %v2731 = vld [vmem:[#allocation2 + $0xf0] sm:$0xff]
    %v2732 = vld [vmem:[#allocation2 + $0xf8] sm:$0xff]
    %2733 = vmatprep.subr.bf16.mxu0 %v762
    %2734 = vmatpush1.bf16.msra.mxu0 %v761
    %2735 = vmatprep.subr.bf16.mxu0 %v766
    %2736 = vmatpush1.bf16.msra.mxu0 %v765
    %2737 = vmatprep.subr.bf16.mxu0 %v770
    %2738 = vmatpush1.bf16.msra.mxu0 %v769
    %2739 = vmatprep.subr.bf16.mxu0 %v774
    %2740 = vmatpush1.bf16.msra.mxu0 %v773
    %2741 = vmatprep.subr.bf16.mxu0 %v778
    %2742 = vmatpush1.bf16.msra.mxu0 %v777
    %2743 = vmatprep.subr.bf16.mxu0 %v782
    %2744 = vmatpush1.bf16.msra.mxu0 %v781
    %2745 = vmatprep.subr.bf16.mxu0 %v786
    %2746 = vmatpush1.bf16.msra.mxu0 %v785
    %2747 = vmatprep.subr.bf16.mxu0 %v790
    %2748 = vmatpush1.bf16.msra.mxu0 %v789
    %2749 = vmatprep.subr.bf16.mxu0 0
    %2750 = vmatpush1.bf16.msra.mxu0 0
    %2751 = vmatprep.subr.bf16.mxu0 0
    %2752 = vmatpush1.bf16.msra.mxu0 0
    %2753 = vmatprep.subr.bf16.mxu0 0
    %2754 = vmatpush1.bf16.msra.mxu0 0
    %2755 = vmatprep.subr.bf16.mxu0 0
    %2756 = vmatpush1.bf16.msra.mxu0 0
    %2757 = vmatprep.subr.bf16.mxu0 0
    %2758 = vmatpush1.bf16.msra.mxu0 0
    %2759 = vmatprep.subr.bf16.mxu0 0
    %2760 = vmatpush1.bf16.msra.mxu0 0
    %2761 = vmatprep.subr.bf16.mxu0 0
    %2762 = vmatpush1.bf16.msra.mxu0 0
    %2763 = vmatprep.subr.bf16.mxu0 0
    %2764 = vmatpush1.bf16.msra.mxu0 0
    %2765 = vmatprep.mubr.bf16.mxu0 0
    %2766 = vmatmul.mubr.bf16.gmra.mrb[0].mxu0 %v2619
    %v2767 = vpop.f32.mrb[0].mxu0
    %v2768 = vadd.f32 0.0, %v2767
    %v2769 = vpop.f32.mrb[0].mxu0
    %v2770 = vadd.f32 0.0, %v2769
    %v2771 = vpop.f32.mrb[0].mxu0
    %v2772 = vpop.f32.mrb[0].mxu0
    %2773 = vdwg.mxu0
    %2774 = vmatprep.subr.bf16.mxu0 %v764
    %2775 = vmatpush1.bf16.msra.mxu0 %v763
    %2776 = vmatprep.subr.bf16.mxu0 %v768
    %2777 = vmatpush1.bf16.msra.mxu0 %v767
    %2778 = vmatprep.subr.bf16.mxu0 %v772
    %2779 = vmatpush1.bf16.msra.mxu0 %v771
    %2780 = vmatprep.subr.bf16.mxu0 %v776
    %2781 = vmatpush1.bf16.msra.mxu0 %v775
    %2782 = vmatprep.subr.bf16.mxu0 %v780
    %2783 = vmatpush1.bf16.msra.mxu0 %v779
    %2784 = vmatprep.subr.bf16.mxu0 %v784
    %2785 = vmatpush1.bf16.msra.mxu0 %v783
    %2786 = vmatprep.subr.bf16.mxu0 %v788
    %2787 = vmatpush1.bf16.msra.mxu0 %v787
    %2788 = vmatprep.subr.bf16.mxu0 %v792
    %2789 = vmatpush1.bf16.msra.mxu0 %v791
    %2790 = vmatprep.subr.bf16.mxu0 0
    %2791 = vmatpush1.bf16.msra.mxu0 0
    %2792 = vmatprep.subr.bf16.mxu0 0
    %2793 = vmatpush1.bf16.msra.mxu0 0
    %2794 = vmatprep.subr.bf16.mxu0 0
    %2795 = vmatpush1.bf16.msra.mxu0 0
    %2796 = vmatprep.subr.bf16.mxu0 0
    %2797 = vmatpush1.bf16.msra.mxu0 0
    %2798 = vmatprep.subr.bf16.mxu0 0
    %2799 = vmatpush1.bf16.msra.mxu0 0
    %2800 = vmatprep.subr.bf16.mxu0 0
    %2801 = vmatpush1.bf16.msra.mxu0 0
    %2802 = vmatprep.subr.bf16.mxu0 0
    %2803 = vmatpush1.bf16.msra.mxu0 0
    %2804 = vmatprep.subr.bf16.mxu0 0
    %2805 = vmatpush1.bf16.msra.mxu0 0
    %2806 = vmatprep.mubr.bf16.mxu0 0
    %2807 = vmatmul.mubr.bf16.gmra.mrb[0].mxu0 %v2619
    %v2808 = vpop.f32.mrb[0].mxu0
    %v2809 = vadd.f32 0.0, %v2808
    %v2810 = vpop.f32.mrb[0].mxu0
    %v2811 = vadd.f32 0.0, %v2810
    %v2812 = vpop.f32.mrb[0].mxu0
    %v2813 = vpop.f32.mrb[0].mxu0
    %2814 = vdwg.mxu0
    %v2815 = vadd.f32 %v2729, %v2768
    %v2816 = vadd.f32 %v2730, %v2770
    %v2817 = vadd.f32 %v2731, %v2809
    %v2818 = vadd.f32 %v2732, %v2811
    %v2819 = vxor.u32 %v2815, 2147483648
    %v2820 = vxor.u32 %v2816, 2147483648
    %v2821 = vxor.u32 %v2817, 2147483648
    %v2822 = vmul.f32 %v2819, 1.442695
    %v2823 = vpow.pop %v2822
    %v2824 = vmul.f32 %v2820, 1.442695
    %v2825 = vpow.pop %v2824
    %v2826 = vmul.f32 %v2821, 1.442695
    %v2827 = vpow.pop %v2826
    %v2828 = vadd.f32 %v2823, 1.0
    %v2829 = vadd.f32 %v2825, 1.0
    %v2830 = vadd.f32 %v2827, 1.0
    %v2831 = vrcp.pop %v2828
    %v2832 = vmul.f32 1.0, %v2831
    %v2833 = vrcp.pop %v2829
    %v2834 = vmul.f32 1.0, %v2833
    %v2835 = vrcp.pop %v2830
    %v2836 = vmul.f32 1.0, %v2835
    %v2837 = vtanh.pop %v2818
    %v2838 = vmul.f32 %v2834, %v2616
    %v2839 = vmul.f32 %v2832, %v2837
    %v2840 = vadd.f32 %v2838, %v2839
    %v2841 = vtanh.pop %v2840
    %v2842 = vmul.f32 %v2836, %v2841
    %v2843 = vpack.c.bf16 %v2842, %v2842
    %v2844 = vpack.c.bf16 %v2726, %v2726
    %2845 = vmatprep.subr.bf16.mxu0 %v1151
    %2846 = vmatpush1.bf16.msra.mxu0 %v1150
    %2847 = vmatprep.subr.bf16.mxu0 %v1155
    %2848 = vmatpush1.bf16.msra.mxu0 %v1154
    %2849 = vmatprep.subr.bf16.mxu0 %v1159
    %2850 = vmatpush1.bf16.msra.mxu0 %v1158
    %2851 = vmatprep.subr.bf16.mxu0 %v1163
    %2852 = vmatpush1.bf16.msra.mxu0 %v1162
    %2853 = vmatprep.subr.bf16.mxu0 %v1167
    %2854 = vmatpush1.bf16.msra.mxu0 %v1166
    %2855 = vmatprep.subr.bf16.mxu0 %v1171
    %2856 = vmatpush1.bf16.msra.mxu0 %v1170
    %2857 = vmatprep.subr.bf16.mxu0 %v1175
    %2858 = vmatpush1.bf16.msra.mxu0 %v1174
    %2859 = vmatprep.subr.bf16.mxu0 %v1179
    %2860 = vmatpush1.bf16.msra.mxu0 %v1178
    %2861 = vmatprep.subr.bf16.mxu0 %v1183
    %2862 = vmatpush1.bf16.msra.mxu0 %v1182
    %2863 = vmatprep.subr.bf16.mxu0 %v1187
    %2864 = vmatpush1.bf16.msra.mxu0 %v1186
    %2865 = vmatprep.subr.bf16.mxu0 %v1191
    %2866 = vmatpush1.bf16.msra.mxu0 %v1190
    %2867 = vmatprep.subr.bf16.mxu0 %v1195
    %2868 = vmatpush1.bf16.msra.mxu0 %v1194
    %2869 = vmatprep.subr.bf16.mxu0 %v1199
    %2870 = vmatpush1.bf16.msra.mxu0 %v1198
    %2871 = vmatprep.subr.bf16.mxu0 %v1203
    %2872 = vmatpush1.bf16.msra.mxu0 %v1202
    %2873 = vmatprep.subr.bf16.mxu0 %v1207
    %2874 = vmatpush1.bf16.msra.mxu0 %v1206
    %2875 = vmatprep.subr.bf16.mxu0 %v1211
    %2876 = vmatpush1.bf16.msra.mxu0 %v1210
    %2877 = vmatprep.mubr.bf16.mxu0 %v2844
    %2878 = vmatmul.mubr.bf16.gmra.mrb[0].mxu0 %v2843
    %v2879 = vpop.f32.mrb[0].mxu0
    %v2880 = vadd.f32 %v941, %v2879
    %v2881 = vpop.f32.mrb[0].mxu0
    %v2882 = vadd.f32 %v945, %v2881
    %v2883 = vpop.f32.mrb[0].mxu0
    %v2884 = vpop.f32.mrb[0].mxu0
    %2885 = vdwg.mxu0
    %2886 = vmatprep.subr.bf16.mxu0 %v1153
    %2887 = vmatpush1.bf16.msra.mxu0 %v1152
    %2888 = vmatprep.subr.bf16.mxu0 %v1157
    %2889 = vmatpush1.bf16.msra.mxu0 %v1156
    %2890 = vmatprep.subr.bf16.mxu0 %v1161
    %2891 = vmatpush1.bf16.msra.mxu0 %v1160
    %2892 = vmatprep.subr.bf16.mxu0 %v1165
    %2893 = vmatpush1.bf16.msra.mxu0 %v1164
    %2894 = vmatprep.subr.bf16.mxu0 %v1169
    %2895 = vmatpush1.bf16.msra.mxu0 %v1168
    %2896 = vmatprep.subr.bf16.mxu0 %v1173
    %2897 = vmatpush1.bf16.msra.mxu0 %v1172
    %2898 = vmatprep.subr.bf16.mxu0 %v1177
    %2899 = vmatpush1.bf16.msra.mxu0 %v1176
    %2900 = vmatprep.subr.bf16.mxu0 %v1181
    %2901 = vmatpush1.bf16.msra.mxu0 %v1180
    %2902 = vmatprep.subr.bf16.mxu0 %v1185
    %2903 = vmatpush1.bf16.msra.mxu0 %v1184
    %2904 = vmatprep.subr.bf16.mxu0 %v1189
    %2905 = vmatpush1.bf16.msra.mxu0 %v1188
    %2906 = vmatprep.subr.bf16.mxu0 %v1193
    %2907 = vmatpush1.bf16.msra.mxu0 %v1192
    %2908 = vmatprep.subr.bf16.mxu0 %v1197
    %2909 = vmatpush1.bf16.msra.mxu0 %v1196
    %2910 = vmatprep.subr.bf16.mxu0 %v1201
    %2911 = vmatpush1.bf16.msra.mxu0 %v1200
    %2912 = vmatprep.subr.bf16.mxu0 %v1205
    %2913 = vmatpush1.bf16.msra.mxu0 %v1204
    %2914 = vmatprep.subr.bf16.mxu0 %v1209
    %2915 = vmatpush1.bf16.msra.mxu0 %v1208
    %2916 = vmatprep.subr.bf16.mxu0 %v1213
    %2917 = vmatpush1.bf16.msra.mxu0 %v1212
    %2918 = vmatprep.mubr.bf16.mxu0 %v2844
    %2919 = vmatmul.mubr.bf16.gmra.mrb[0].mxu0 %v2843
    %v2920 = vpop.f32.mrb[0].mxu0
    %v2921 = vadd.f32 %v949, %v2920
    %v2922 = vpop.f32.mrb[0].mxu0
    %v2923 = vadd.f32 %v953, %v2922
    %v2924 = vpop.f32.mrb[0].mxu0
    %v2925 = vpop.f32.mrb[0].mxu0
    %2926 = vdwg.mxu0
    %v2927 = vxor.u32 %v2880, 2147483648
    %v2928 = vxor.u32 %v2882, 2147483648
    %v2929 = vxor.u32 %v2921, 2147483648
    %v2930 = vmul.f32 %v2927, 1.442695
    %v2931 = vpow.pop %v2930
    %v2932 = vmul.f32 %v2928, 1.442695
    %v2933 = vpow.pop %v2932
    %v2934 = vmul.f32 %v2929, 1.442695
    %v2935 = vpow.pop %v2934
    %v2936 = vadd.f32 %v2931, 1.0
    %v2937 = vadd.f32 %v2933, 1.0
    %v2938 = vadd.f32 %v2935, 1.0
    %v2939 = vrcp.pop %v2936
    %v2940 = vmul.f32 1.0, %v2939
    %v2941 = vrcp.pop %v2937
    %v2942 = vmul.f32 1.0, %v2941
    %v2943 = vrcp.pop %v2938
    %v2944 = vmul.f32 1.0, %v2943
    %v2945 = vtanh.pop %v2923
    %v2946 = vmul.f32 %v2942, %v2724
    %v2947 = vmul.f32 %v2940, %v2945
    %v2948 = vadd.f32 %v2946, %v2947
    %v2949 = vtanh.pop %v2948
    %v2950 = vmul.f32 %v2944, %v2949
    %s2951 = scalar_lea.vmem [#allocation17], 56
    %2952 = vst [vmem:[%s2951] sm:$0xff] %v2950
    %2953 = vst [vmem:[#allocation18] sm:$0xff] %v2842
    %2954 = vst [vmem:[#allocation20] sm:$0xff] %v2840
    %s2955 = scalar_lea.vmem [#allocation18], 8
    %2956 = vst [vmem:[%s2955] sm:$0xff] %v2950
    %s2957 = scalar_lea.vmem [#allocation20], 8
    %2958 = vst [vmem:[%s2957] sm:$0xff] %v2948
    %v2959 = vld [vmem:[#allocation14] sm:$0xff]
    %v2960 = vld [vmem:[#allocation14 + $0x8] sm:$0xff]
    %v2961 = vld [vmem:[#allocation14 + $0x10] sm:$0xff]
    %v2962 = vld [vmem:[#allocation14 + $0x18] sm:$0xff]
    %v2963 = vld [vmem:[#allocation14 + $0x20] sm:$0xff]
    %v2964 = vld [vmem:[#allocation14 + $0x28] sm:$0xff]
    %v2965 = vld [vmem:[#allocation14 + $0x30] sm:$0xff]
    %v2966 = vld [vmem:[#allocation14 + $0x38] sm:$0xff]
    %v2967 = vld [vmem:[#allocation14 + $0x40] sm:$0xff]
    %v2968 = vld [vmem:[#allocation14 + $0x48] sm:$0xff]
    %v2969 = vld [vmem:[#allocation14 + $0x50] sm:$0xff]
    %v2970 = vld [vmem:[#allocation14 + $0x58] sm:$0xff]
    %v2971 = vld [vmem:[#allocation14 + $0x60] sm:$0xff]
    %v2972 = vld [vmem:[#allocation14 + $0x68] sm:$0xff]
    %v2973 = vld [vmem:[#allocation14 + $0x70] sm:$0xff]
    %v2974 = vld [vmem:[#allocation14 + $0x78] sm:$0xff]
    %v2975 = vld [vmem:[#allocation15] sm:$0x1]
    %v2977 = vlaneseq
    %v2978 = vshrl.u32 %v2977, 7
    %v2979 = vsub.s32 0, %v2978
    %v2980 = vrot.slane %v2975, %v2979
    %2982 = vmatprep.subr.mxu0 0.0
    %2983 = vmatpush1.msra.mxu0 %v2959
    %2984 = vmatprep.subr.mxu0 0.0
    %2985 = vmatpush1.msra.mxu0 %v2960
    %2986 = vmatprep.subr.mxu0 0.0
    %2987 = vmatpush1.msra.mxu0 %v2961
    %2988 = vmatprep.subr.mxu0 0.0
    %2989 = vmatpush1.msra.mxu0 %v2962
    %2990 = vmatprep.subr.mxu0 0.0
    %2991 = vmatpush1.msra.mxu0 %v2963
    %2992 = vmatprep.subr.mxu0 0.0
    %2993 = vmatpush1.msra.mxu0 %v2964
    %2994 = vmatprep.subr.mxu0 0.0
    %2995 = vmatpush1.msra.mxu0 %v2965
    %2996 = vmatprep.subr.mxu0 0.0
    %2997 = vmatpush1.msra.mxu0 %v2966
    %2998 = vmatprep.subr.mxu0 0.0
    %2999 = vmatpush1.msra.mxu0 %v2967
    %3000 = vmatprep.subr.mxu0 0.0
    %3001 = vmatpush1.msra.mxu0 %v2968
    %3002 = vmatprep.subr.mxu0 0.0
    %3003 = vmatpush1.msra.mxu0 %v2969
    %3004 = vmatprep.subr.mxu0 0.0
    %3005 = vmatpush1.msra.mxu0 %v2970
    %3006 = vmatprep.subr.mxu0 0.0
    %3007 = vmatpush1.msra.mxu0 %v2971
    %3008 = vmatprep.subr.mxu0 0.0
    %3009 = vmatpush1.msra.mxu0 %v2972
    %3010 = vmatprep.subr.mxu0 0.0
    %3011 = vmatpush1.msra.mxu0 %v2973
    %3012 = vmatprep.subr.mxu0 0.0
    %3013 = vmatpush1.msra.mxu0 %v2974
    %3014 = vmatprep.subr.mxu0 0.0
    %3015 = vmatpush1.msra.mxu0 0.0
    %3016 = vmatprep.subr.mxu0 0.0
    %3017 = vmatpush1.msra.mxu0 0.0
    %3018 = vmatprep.subr.mxu0 0.0
    %3019 = vmatpush1.msra.mxu0 0.0
    %3020 = vmatprep.subr.mxu0 0.0
    %3021 = vmatpush1.msra.mxu0 0.0
    %3022 = vmatprep.subr.mxu0 0.0
    %3023 = vmatpush1.msra.mxu0 0.0
    %3024 = vmatprep.subr.mxu0 0.0
    %3025 = vmatpush1.msra.mxu0 0.0
    %3026 = vmatprep.subr.mxu0 0.0
    %3027 = vmatpush1.msra.mxu0 0.0
    %3028 = vmatprep.subr.mxu0 0.0
    %3029 = vmatpush1.msra.mxu0 0.0
    %3030 = vmatprep.subr.mxu0 0.0
    %3031 = vmatpush1.msra.mxu0 0.0
    %3032 = vmatprep.subr.mxu0 0.0
    %3033 = vmatpush1.msra.mxu0 0.0
    %3034 = vmatprep.subr.mxu0 0.0
    %3035 = vmatpush1.msra.mxu0 0.0
    %3036 = vmatprep.subr.mxu0 0.0
    %3037 = vmatpush1.msra.mxu0 0.0
    %3038 = vmatprep.subr.mxu0 0.0
    %3039 = vmatpush1.msra.mxu0 0.0
    %3040 = vmatprep.subr.mxu0 0.0
    %3041 = vmatpush1.msra.mxu0 0.0
    %3042 = vmatprep.subr.mxu0 0.0
    %3043 = vmatpush1.msra.mxu0 0.0
    %3044 = vmatprep.subr.mxu0 0.0
    %3045 = vmatpush1.msra.mxu0 0.0
    %3046 = vmatprep.mubr.f32.mxu0 0.0
    %3047 = vmatmul.mubr.f32.gmra.mrb[0].mxu0 %v2950
    %v3048 = vpop.f32.mrb[0].mxu0
    %v3049 = vadd.f32 %v2980, %v3048
    %v3050 = vpop.f32.mrb[0].mxu0
    %3051 = vdwg.mxu0
    %3052 = vst [vmem:[#allocation21] sm:$0xff] %v3049
    // Predicated region
    $region66: #{tpu_custom_call.1} parent=1 // pred_check
      _
    $region67: #{tpu_custom_call.1} parent=1 // pred_check_branch
      %3054 = sbr.rel (0) target = $region69
    $region68: #{tpu_custom_call.1} parent=1 // pred_region
      %s3056 = ssub.s32 1024, 1024
      %3057 = vsyncadd [#allocation5], %s3056
      %s3058 = sshll.u32 [#allocation17], 4
      %s3059 = int_to_ptr.vmem [resolvable:$true] %s3058
      %3064 = dma.vmem_to_hbm [thread:$0]  %s3059, 1024, %s8, [#allocation5], 128, 128, 8
    $region69: #{tpu_custom_call.1} parent=1 // pred_fallthru
      _
    // Predicated region
    $region70: #{tpu_custom_call.1} parent=1 // pred_check
      _
    $region71: #{tpu_custom_call.1} parent=1 // pred_check_branch
      %3066 = sbr.rel (0) target = $region73
    $region72: #{tpu_custom_call.1} parent=1 // pred_region
      %s3068 = ssub.s32 256, 256
      %3069 = vsyncadd [#allocation19], %s3068
      %s3070 = sshll.u32 [#allocation18], 4
      %s3071 = int_to_ptr.vmem [resolvable:$true] %s3070
      %3076 = dma.vmem_to_hbm [thread:$0]  %s3071, 256, %s9, [#allocation19], 128, 128, 8
    $region73: #{tpu_custom_call.1} parent=1 // pred_fallthru
      _
    // Predicated region
    $region74: #{tpu_custom_call.1} parent=1 // pred_check
      _
    $region75: #{tpu_custom_call.1} parent=1 // pred_check_branch
      %3078 = sbr.rel (0) target = $region77
    $region76: #{tpu_custom_call.1} parent=1 // pred_region
      %s3080 = ssub.s32 256, 256
      %3081 = vsyncadd [#allocation19], %s3080
      %s3082 = sshll.u32 [#allocation20], 4
      %s3083 = int_to_ptr.vmem [resolvable:$true] %s3082
      %3088 = dma.vmem_to_hbm [thread:$0]  %s3083, 256, %s10, [#allocation19], 128, 128, 8
    $region77: #{tpu_custom_call.1} parent=1 // pred_fallthru
      _
    // Predicated region
    $region78: #{tpu_custom_call.1} parent=1 // pred_check
      _
    $region79: #{tpu_custom_call.1} parent=1 // pred_check_branch
      %3090 = sbr.rel (0) target = $region81
    $region80: #{tpu_custom_call.1} parent=1 // pred_region
      %s3092 = ssub.s32 128, 128
      %3093 = vsyncadd [#allocation22], %s3092
      %s3095 = sshll.u32 [#allocation21], 4
      %s3096 = int_to_ptr.vmem [resolvable:$true] %s3095
      %3098 = dma.vmem_to_hbm [thread:$0]  %s3096, 128, %s11, [#allocation22]
    $region81: #{tpu_custom_call.1} parent=1 // pred_fallthru
      _
    // Predicated region
    $region82: #{tpu_custom_call.1} parent=1 // pred_check
      _
    $region83: #{tpu_custom_call.1} parent=1 // pred_check_branch
      %3100 = sbr.rel (0) target = $region85
    $region84: #{tpu_custom_call.1} parent=1 // pred_region
      %3101 = dma.done [#allocation5], 1024
    $region85: #{tpu_custom_call.1} parent=1 // pred_fallthru
      _
    // Predicated region
    $region86: #{tpu_custom_call.1} parent=1 // pred_check
      _
    $region87: #{tpu_custom_call.1} parent=1 // pred_check_branch
      %3103 = sbr.rel (0) target = $region89
    $region88: #{tpu_custom_call.1} parent=1 // pred_region
      %3104 = dma.done [#allocation19], 256
    $region89: #{tpu_custom_call.1} parent=1 // pred_fallthru
      _
    // Predicated region
    $region90: #{tpu_custom_call.1} parent=1 // pred_check
      _
    $region91: #{tpu_custom_call.1} parent=1 // pred_check_branch
      %3106 = sbr.rel (0) target = $region93
    $region92: #{tpu_custom_call.1} parent=1 // pred_region
      %3107 = dma.done [#allocation19], 256
    $region93: #{tpu_custom_call.1} parent=1 // pred_fallthru
      _
    // Predicated region
    $region94: #{tpu_custom_call.1} parent=1 // pred_check
      _
    $region95: #{tpu_custom_call.1} parent=1 // pred_check_branch
      %3109 = sbr.rel (0) target = $region97
    $region96: #{tpu_custom_call.1} parent=1 // pred_region
      %3110 = dma.done [#allocation22], 128
    $region97: #{tpu_custom_call.1} parent=1 // pred_fallthru
      _
    %3111 = vsyncpa [#allocation4], 1
    %3112 = vsyncpa [#allocation7], 1
    %3113 = vsyncpa [#allocation10], 1
    %3114 = vsyncpa [#allocation13], 1
    %3115 = vsyncpa [#allocation16], 1
    %3116 = vsyncpa [#allocation5], 1
    %3117 = vsyncpa [#allocation19], 1
    %3118 = vsyncpa [#allocation22], 1

</llo_original>
